<compile_context>
chip_gen: v7x
topology: tpu7x:2x2x1
jax: 0.10.0
libtpu: 0.0.40
codegen_flags: <defaults>
</compile_context>

<pallas_src>
import functools

import numpy as np
import jax
import jax.numpy as jnp
from jax import lax
from jax.experimental import pallas as pl
from jax.experimental.pallas import tpu as pltpu

BN_EPS = 1e-5
NEG_SLOPE = 0.1


def _round_up(x, m):
    return (x + m - 1) // m * m


def _conv_stats_kernel(mask_ref, xa_ref, xb_ref, w_ref, y_ref, stat_ref, xwin_ref,
                       *, tm, cin_pad, cpad, kh, kw, w_img, padr_al):
    # Stage rows [t*tm, t*tm + tm + padr_al) of the flattened image into one
    # contiguous f32 VMEM window so every tap window is a plain 2-D slice.
    xwin_ref[0:tm, :] = xa_ref[...].astype(jnp.float32)
    xwin_ref[tm:tm + padr_al, :] = xb_ref[0:padr_al, :].astype(jnp.float32)

    # 3x3 VALID conv as kh*kw shifted GEMMs accumulated in f32 (no HBM im2col).
    acc = jnp.zeros((tm, cpad), jnp.float32)
    for tap in range(kh * kw):
        di, dj = tap // kw, tap % kw
        off = di * w_img + dj
        xt = xwin_ref[off:off + tm, :].astype(jnp.bfloat16)        # (tm, cin_pad)
        wt = w_ref[tap * cin_pad:(tap + 1) * cin_pad, :]           # (cin_pad, cpad)
        acc = acc + jnp.dot(xt, wt, preferred_element_type=jnp.float32)
    y_ref[...] = acc

    # Per-tile BN partial sums on the MXU: mask row 0 is the validity mask for the
    # tile's rows (invalid / padded rows get weight 0), rows 1..7 are zero.
    msk = mask_ref[...]                                            # (8, tm) f32
    stat_ref[0:8, :] = jnp.dot(msk, acc, preferred_element_type=jnp.float32)
    stat_ref[8:16, :] = jnp.dot(msk, acc * acc, preferred_element_type=jnp.float32)


def _bn_lrelu_kernel(scale_ref, shift_ref, y_ref, o_ref):
    y_hat = y_ref[...] * scale_ref[...] + shift_ref[...]
    o_ref[...] = jnp.where(y_hat >= 0, y_hat, NEG_SLOPE * y_hat)


def conv2d_norm_activation(x_nchw, weight, *, stride=1, padding=0, dilation=1,
                           tile_m=256):
    """x_nchw: (N, Cin, H, W) f32; weight: (Cout, Cin, KH, KW) f32 (PyTorch layout)."""
    assert stride == 1 and padding == 0 and dilation == 1, "module defaults only"
    n, cin, h, w = x_nchw.shape
    cout, cin_w, kh, kw = weight.shape
    assert cin == cin_w
    ho, wo = h - (kh - 1), w - (kw - 1)

    cin_pad = _round_up(cin, 16)      # clean bf16 MXU contraction tiles
    cpad = _round_up(cout, 128)       # lane-dense output columns / unmasked stores

    padr = (kh - 1) * w + (kw - 1)    # max flat-row shift of any tap
    padr_al = _round_up(padr, 16)
    tm = max(_round_up(tile_m, 8), padr_al)

    m_total = n * h * w
    num_tiles = pl.cdiv(m_total, tm)
    m_grid = num_tiles * tm

    # ---- glue: NCHW -> NHWC -> flattened (rows, cin_pad) bf16; single pass, no 9x copy.
    # TODO(synk): if the caller could accept NHWC end-to-end, these boundary
    # transposes (and the final one) would disappear entirely.
    x_nhwc = jnp.transpose(x_nchw, (0, 2, 3, 1))                     # (N, H, W, Cin)
    x_rows = jnp.zeros((m_grid + tm, cin_pad), jnp.bfloat16)         # +tm: tap overhang
    x_rows = x_rows.at[:m_total, :cin].set(
        x_nhwc.reshape(m_total, cin).astype(jnp.bfloat16))

    # weights: (Cout, Cin, KH, KW) -> (KH*KW*cin_pad, cpad), zero-padded, bf16.
    w_taps = jnp.transpose(weight, (2, 3, 1, 0))                     # (KH, KW, Cin, Cout)
    w_taps = jnp.pad(w_taps, ((0, 0), (0, 0), (0, cin_pad - cin), (0, cpad - cout)))
    w_mat = w_taps.reshape(kh * kw * cin_pad, cpad).astype(jnp.bfloat16)

    # Validity mask (trace-time constant): row m is a real VALID-conv output iff its
    # (i, j) position is inside (Ho, Wo) and it belongs to a real image.
    idx = np.arange(m_grid)
    valid = ((idx % w) < wo) & (((idx // w) % h) < ho) & (idx < m_total)
    mask_np = np.zeros((num_tiles, 8, tm), np.float32)
    mask_np[:, 0, :] = valid.astype(np.float32).reshape(num_tiles, tm)
    mask = jnp.asarray(mask_np)

    kernel1 = functools.partial(
        _conv_stats_kernel, tm=tm, cin_pad=cin_pad, cpad=cpad,
        kh=kh, kw=kw, w_img=w, padr_al=padr_al)

    conv_flops = 2 * n * ho * wo * cin * kh * kw * cout
    conv_bytes = (x_rows.size * 2 + w_mat.size * 2 + m_grid * cpad * 4
                  + num_tiles * 16 * cpad * 4)

    y_pre, stats = pl.pallas_call(
        kernel1,
        out_shape=(jax.ShapeDtypeStruct((m_grid, cpad), jnp.float32),
                   jax.ShapeDtypeStruct((num_tiles, 16, cpad), jnp.float32)),
        grid=(num_tiles,),
        in_specs=[
            pl.BlockSpec((None, 8, tm), lambda t: (t, 0, 0)),            # mask
            pl.BlockSpec((tm, cin_pad), lambda t: (t, 0)),               # tile t rows
            pl.BlockSpec((tm, cin_pad), lambda t: (t + 1, 0)),           # next rows (overhang)
            pl.BlockSpec((kh * kw * cin_pad, cpad), lambda t: (0, 0)),   # weights (resident)
        ],
        out_specs=(
            pl.BlockSpec((tm, cpad), lambda t: (t, 0)),                  # pre-BN conv out
            pl.BlockSpec((None, 16, cpad), lambda t: (t, 0, 0)),         # per-tile sums
        ),
        scratch_shapes=[pltpu.VMEM((tm + padr_al, cin_pad), jnp.float32)],
        compiler_params=pltpu.CompilerParams(
            dimension_semantics=("parallel",),
            vmem_limit_bytes=32 * 1024 * 1024),
        cost_estimate=pl.CostEstimate(
            flops=conv_flops, transcendentals=0, bytes_accessed=conv_bytes),
    )(mask, x_rows, x_rows, w_mat)

    # ---- finalize global BN statistics (f32, biased variance = PyTorch train mode).
    count = float(n * ho * wo)
    ch_sum = jnp.sum(stats[:, 0, :], axis=0)
    ch_ssq = jnp.sum(stats[:, 8, :], axis=0)
    mean = ch_sum / count
    var = jnp.maximum(ch_ssq / count - mean * mean, 0.0)
    rstd = lax.rsqrt(var + BN_EPS)
    scale = rstd.reshape(1, cpad)            # gamma = 1
    shift = (-mean * rstd).reshape(1, cpad)  # beta = 0

    out_flat = pl.pallas_call(
        _bn_lrelu_kernel,
        out_shape=jax.ShapeDtypeStruct((m_grid, cpad), jnp.float32),
        grid=(num_tiles,),
        in_specs=[
            pl.BlockSpec((1, cpad), lambda t: (0, 0)),
            pl.BlockSpec((1, cpad), lambda t: (0, 0)),
            pl.BlockSpec((tm, cpad), lambda t: (t, 0)),
        ],
        out_specs=pl.BlockSpec((tm, cpad), lambda t: (t, 0)),
        compiler_params=pltpu.CompilerParams(
            dimension_semantics=("parallel",),
            vmem_limit_bytes=32 * 1024 * 1024),
        cost_estimate=pl.CostEstimate(
            flops=3 * m_grid * cpad, transcendentals=0,
            bytes_accessed=2 * m_grid * cpad * 4),
    )(scale, shift, y_pre)

    # ---- glue: flattened rows -> NCHW (keep only the valid conv window / channels).
    out = out_flat[:m_total].reshape(n, h, w, cpad)[:, :ho, :wo, :cout]
    return jnp.transpose(out, (0, 3, 1, 2))


def _reference(x_nchw, weight, *, cast_bf16):
    xw = x_nchw.astype(jnp.bfloat16) if cast_bf16 else x_nchw
    ww = weight.astype(jnp.bfloat16) if cast_bf16 else weight
    y = lax.conv_general_dilated(
        xw, ww, window_strides=(1, 1), padding="VALID",
        dimension_numbers=("NCHW", "OIHW", "NCHW"),
        preferred_element_type=jnp.float32)
    mean = jnp.mean(y, axis=(0, 2, 3), keepdims=True)
    var = jnp.mean((y - mean) ** 2, axis=(0, 2, 3), keepdims=True)
    y_hat = (y - mean) * lax.rsqrt(var + BN_EPS)
    return jnp.where(y_hat >= 0, y_hat, NEG_SLOPE * y_hat)


if __name__ == "__main__":
    key = jax.random.PRNGKey(0)
    kx, kw_ = jax.random.split(key)

    N, CIN, H, W = 2, 4, 16, 16
    COUT, KH, KW = 8, 3, 3

    x = jax.random.normal(kx, (N, CIN, H, W), dtype=jnp.float32)
    fan_in = CIN * KH * KW
    bound = (1.0 / fan_in) ** 0.5
    weight = jax.random.uniform(kw_, (COUT, CIN, KH, KW), dtype=jnp.float32,
                                minval=-bound, maxval=bound)

    out = jax.block_until_ready(conv2d_norm_activation(x, weight))
    assert out.shape == (N, COUT, H - 2, W - 2)

    # Strict check vs a reference that uses the same bf16-rounded conv inputs
    # (f32 accumulation on both sides => differences are accumulation-order only).
    ref_bf16 = _reference(x, weight, cast_bf16=True)
    assert jnp.allclose(out, ref_bf16, atol=1e-4, rtol=1e-4), "mismatch vs bf16-conv reference"

    # Semantics check vs the full-f32 reference (bf16 MXU operands => looser tol).
    ref_f32 = _reference(x, weight, cast_bf16=False)
    assert jnp.allclose(out, ref_f32, atol=2e-2, rtol=2e-2), "mismatch vs f32 reference"

    print("KERNEL_OK")
</pallas_src>

<mosaic_0001>
module attributes {stable_mosaic.version = 11 : i64} {
  func.func @_conv_stats_kernel(%arg0: i32, %arg1: memref<1x8x256xf32, #tpu.memory_space<vmem>>, %arg2: memref<256x16xbf16, #tpu.memory_space<vmem>>, %arg3: memref<256x16xbf16, #tpu.memory_space<vmem>>, %arg4: memref<144x128xbf16, #tpu.memory_space<vmem>>, %arg5: memref<256x128xf32, #tpu.memory_space<vmem>>, %arg6: memref<1x16x128xf32, #tpu.memory_space<vmem>>, %arg7: memref<304x16xf32, #tpu.memory_space<vmem>>) attributes {dimension_semantics = [#tpu.dimension_semantics<parallel>], iteration_bounds = array<i64: 2>, scalar_prefetch = 0 : i64, scratch_operands = 1 : i64, tpu.core_type = #tpu.core_type<tc>, window_params = [{transform_indices = @transform_0, window_bounds = array<i64: 1, 8, 256>}, {transform_indices = @transform_1, window_bounds = array<i64: 256, 16>}, {transform_indices = @transform_2, window_bounds = array<i64: 256, 16>}, {pipeline_mode = #tpu.pipeline_mode<synchronous>, transform_indices = @transform_3, window_bounds = array<i64: 144, 128>}, {transform_indices = @transform_4, window_bounds = array<i64: 256, 128>}, {transform_indices = @transform_5, window_bounds = array<i64: 1, 16, 128>}]} {
    %c0 = arith.constant 0 : index
    %c0_0 = arith.constant 0 : index
    %0 = vector.load %arg2[%c0, %c0_0] : memref<256x16xbf16, #tpu.memory_space<vmem>>, vector<256x16xbf16>
    %1 = arith.extf %0 : vector<256x16xbf16> to vector<256x16xf32>
    %c0_1 = arith.constant 0 : index
    %c0_2 = arith.constant 0 : index
    %2 = vector.load %arg7[%c0_1, %c0_2] : memref<304x16xf32, #tpu.memory_space<vmem>>, vector<256x16xf32>
    tpu.vector_store %arg7[%c0_1, %c0_2], %1 {strides = array<i32>} : memref<304x16xf32, #tpu.memory_space<vmem>>, vector<256x16xf32>,
    %c0_3 = arith.constant 0 : index
    %c0_4 = arith.constant 0 : index
    %3 = vector.load %arg3[%c0_3, %c0_4] : memref<256x16xbf16, #tpu.memory_space<vmem>>, vector<48x16xbf16>
    %4 = arith.extf %3 : vector<48x16xbf16> to vector<48x16xf32>
    %c256 = arith.constant 256 : index
    %c0_5 = arith.constant 0 : index
    %5 = vector.load %arg7[%c256, %c0_5] : memref<304x16xf32, #tpu.memory_space<vmem>>, vector<48x16xf32>
    tpu.vector_store %arg7[%c256, %c0_5], %4 {strides = array<i32>} : memref<304x16xf32, #tpu.memory_space<vmem>>, vector<48x16xf32>,
    %cst = arith.constant 0.000000e+00 : f32
    %6 = vector.broadcast %cst : f32 to vector<256x128xf32>
    %c0_6 = arith.constant 0 : index
    %c0_7 = arith.constant 0 : index
    %7 = vector.load %arg7[%c0_6, %c0_7] : memref<304x16xf32, #tpu.memory_space<vmem>>, vector<256x16xf32>
    %8 = arith.truncf %7 : vector<256x16xf32> to vector<256x16xbf16>
    %c0_8 = arith.constant 0 : index
    %c0_9 = arith.constant 0 : index
    %9 = vector.load %arg4[%c0_8, %c0_9] : memref<144x128xbf16, #tpu.memory_space<vmem>>, vector<16x128xbf16>
    %cst_10 = arith.constant dense<0.000000e+00> : vector<256x128xf32>
    %10 = tpu.matmul %8, %9, %cst_10 {dimension_numbers = #tpu.dot_dimension_numbers<[1], [0], [0], [1], [0, 0, 1, 1], [], []>} : vector<256x16xbf16>, vector<16x128xbf16>, vector<256x128xf32> -> vector<256x128xf32>
    %11 = arith.addf %6, %10 : vector<256x128xf32>
    %c1 = arith.constant 1 : index
    %c0_11 = arith.constant 0 : index
    %12 = vector.load %arg7[%c1, %c0_11] : memref<304x16xf32, #tpu.memory_space<vmem>>, vector<256x16xf32>
    %13 = arith.truncf %12 : vector<256x16xf32> to vector<256x16xbf16>
    %c16 = arith.constant 16 : index
    %c0_12 = arith.constant 0 : index
    %14 = vector.load %arg4[%c16, %c0_12] : memref<144x128xbf16, #tpu.memory_space<vmem>>, vector<16x128xbf16>
    %cst_13 = arith.constant dense<0.000000e+00> : vector<256x128xf32>
    %15 = tpu.matmul %13, %14, %cst_13 {dimension_numbers = #tpu.dot_dimension_numbers<[1], [0], [0], [1], [0, 0, 1, 1], [], []>} : vector<256x16xbf16>, vector<16x128xbf16>, vector<256x128xf32> -> vector<256x128xf32>
    %16 = arith.addf %11, %15 : vector<256x128xf32>
    %c2 = arith.constant 2 : index
    %c0_14 = arith.constant 0 : index
    %17 = vector.load %arg7[%c2, %c0_14] : memref<304x16xf32, #tpu.memory_space<vmem>>, vector<256x16xf32>
    %18 = arith.truncf %17 : vector<256x16xf32> to vector<256x16xbf16>
    %c32 = arith.constant 32 : index
    %c0_15 = arith.constant 0 : index
    %19 = vector.load %arg4[%c32, %c0_15] : memref<144x128xbf16, #tpu.memory_space<vmem>>, vector<16x128xbf16>
    %cst_16 = arith.constant dense<0.000000e+00> : vector<256x128xf32>
    %20 = tpu.matmul %18, %19, %cst_16 {dimension_numbers = #tpu.dot_dimension_numbers<[1], [0], [0], [1], [0, 0, 1, 1], [], []>} : vector<256x16xbf16>, vector<16x128xbf16>, vector<256x128xf32> -> vector<256x128xf32>
    %21 = arith.addf %16, %20 : vector<256x128xf32>
    %c16_17 = arith.constant 16 : index
    %c0_18 = arith.constant 0 : index
    %22 = vector.load %arg7[%c16_17, %c0_18] : memref<304x16xf32, #tpu.memory_space<vmem>>, vector<256x16xf32>
    %23 = arith.truncf %22 : vector<256x16xf32> to vector<256x16xbf16>
    %c48 = arith.constant 48 : index
    %c0_19 = arith.constant 0 : index
    %24 = vector.load %arg4[%c48, %c0_19] : memref<144x128xbf16, #tpu.memory_space<vmem>>, vector<16x128xbf16>
    %cst_20 = arith.constant dense<0.000000e+00> : vector<256x128xf32>
    %25 = tpu.matmul %23, %24, %cst_20 {dimension_numbers = #tpu.dot_dimension_numbers<[1], [0], [0], [1], [0, 0, 1, 1], [], []>} : vector<256x16xbf16>, vector<16x128xbf16>, vector<256x128xf32> -> vector<256x128xf32>
    %26 = arith.addf %21, %25 : vector<256x128xf32>
    %c17 = arith.constant 17 : index
    %c0_21 = arith.constant 0 : index
    %27 = vector.load %arg7[%c17, %c0_21] : memref<304x16xf32, #tpu.memory_space<vmem>>, vector<256x16xf32>
    %28 = arith.truncf %27 : vector<256x16xf32> to vector<256x16xbf16>
    %c64 = arith.constant 64 : index
    %c0_22 = arith.constant 0 : index
    %29 = vector.load %arg4[%c64, %c0_22] : memref<144x128xbf16, #tpu.memory_space<vmem>>, vector<16x128xbf16>
    %cst_23 = arith.constant dense<0.000000e+00> : vector<256x128xf32>
    %30 = tpu.matmul %28, %29, %cst_23 {dimension_numbers = #tpu.dot_dimension_numbers<[1], [0], [0], [1], [0, 0, 1, 1], [], []>} : vector<256x16xbf16>, vector<16x128xbf16>, vector<256x128xf32> -> vector<256x128xf32>
    %31 = arith.addf %26, %30 : vector<256x128xf32>
    %c18 = arith.constant 18 : index
    %c0_24 = arith.constant 0 : index
    %32 = vector.load %arg7[%c18, %c0_24] : memref<304x16xf32, #tpu.memory_space<vmem>>, vector<256x16xf32>
    %33 = arith.truncf %32 : vector<256x16xf32> to vector<256x16xbf16>
    %c80 = arith.constant 80 : index
    %c0_25 = arith.constant 0 : index
    %34 = vector.load %arg4[%c80, %c0_25] : memref<144x128xbf16, #tpu.memory_space<vmem>>, vector<16x128xbf16>
    %cst_26 = arith.constant dense<0.000000e+00> : vector<256x128xf32>
    %35 = tpu.matmul %33, %34, %cst_26 {dimension_numbers = #tpu.dot_dimension_numbers<[1], [0], [0], [1], [0, 0, 1, 1], [], []>} : vector<256x16xbf16>, vector<16x128xbf16>, vector<256x128xf32> -> vector<256x128xf32>
    %36 = arith.addf %31, %35 : vector<256x128xf32>
    %c32_27 = arith.constant 32 : index
    %c0_28 = arith.constant 0 : index
    %37 = vector.load %arg7[%c32_27, %c0_28] : memref<304x16xf32, #tpu.memory_space<vmem>>, vector<256x16xf32>
    %38 = arith.truncf %37 : vector<256x16xf32> to vector<256x16xbf16>
    %c96 = arith.constant 96 : index
    %c0_29 = arith.constant 0 : index
    %39 = vector.load %arg4[%c96, %c0_29] : memref<144x128xbf16, #tpu.memory_space<vmem>>, vector<16x128xbf16>
    %cst_30 = arith.constant dense<0.000000e+00> : vector<256x128xf32>
    %40 = tpu.matmul %38, %39, %cst_30 {dimension_numbers = #tpu.dot_dimension_numbers<[1], [0], [0], [1], [0, 0, 1, 1], [], []>} : vector<256x16xbf16>, vector<16x128xbf16>, vector<256x128xf32> -> vector<256x128xf32>
    %41 = arith.addf %36, %40 : vector<256x128xf32>
    %c33 = arith.constant 33 : index
    %c0_31 = arith.constant 0 : index
    %42 = vector.load %arg7[%c33, %c0_31] : memref<304x16xf32, #tpu.memory_space<vmem>>, vector<256x16xf32>
    %43 = arith.truncf %42 : vector<256x16xf32> to vector<256x16xbf16>
    %c112 = arith.constant 112 : index
    %c0_32 = arith.constant 0 : index
    %44 = vector.load %arg4[%c112, %c0_32] : memref<144x128xbf16, #tpu.memory_space<vmem>>, vector<16x128xbf16>
    %cst_33 = arith.constant dense<0.000000e+00> : vector<256x128xf32>
    %45 = tpu.matmul %43, %44, %cst_33 {dimension_numbers = #tpu.dot_dimension_numbers<[1], [0], [0], [1], [0, 0, 1, 1], [], []>} : vector<256x16xbf16>, vector<16x128xbf16>, vector<256x128xf32> -> vector<256x128xf32>
    %46 = arith.addf %41, %45 : vector<256x128xf32>
    %c34 = arith.constant 34 : index
    %c0_34 = arith.constant 0 : index
    %47 = vector.load %arg7[%c34, %c0_34] : memref<304x16xf32, #tpu.memory_space<vmem>>, vector<256x16xf32>
    %48 = arith.truncf %47 : vector<256x16xf32> to vector<256x16xbf16>
    %c128 = arith.constant 128 : index
    %c0_35 = arith.constant 0 : index
    %49 = vector.load %arg4[%c128, %c0_35] : memref<144x128xbf16, #tpu.memory_space<vmem>>, vector<16x128xbf16>
    %cst_36 = arith.constant dense<0.000000e+00> : vector<256x128xf32>
    %50 = tpu.matmul %48, %49, %cst_36 {dimension_numbers = #tpu.dot_dimension_numbers<[1], [0], [0], [1], [0, 0, 1, 1], [], []>} : vector<256x16xbf16>, vector<16x128xbf16>, vector<256x128xf32> -> vector<256x128xf32>
    %51 = arith.addf %46, %50 : vector<256x128xf32>
    %c0_37 = arith.constant 0 : index
    %c0_38 = arith.constant 0 : index
    %52 = vector.load %arg5[%c0_37, %c0_38] : memref<256x128xf32, #tpu.memory_space<vmem>>, vector<256x128xf32>
    tpu.vector_store %arg5[%c0_37, %c0_38], %51 {strides = array<i32>} : memref<256x128xf32, #tpu.memory_space<vmem>>, vector<256x128xf32>,
    %c0_39 = arith.constant 0 : index
    %c0_40 = arith.constant 0 : index
    %c0_41 = arith.constant 0 : index
    %53 = vector.load %arg1[%c0_39, %c0_40, %c0_41] : memref<1x8x256xf32, #tpu.memory_space<vmem>>, vector<1x8x256xf32>
    %54 = vector.shape_cast %53 : vector<1x8x256xf32> to vector<8x256xf32>
    %cst_42 = arith.constant dense<0.000000e+00> : vector<8x128xf32>
    %55 = tpu.matmul %54, %51, %cst_42 {dimension_numbers = #tpu.dot_dimension_numbers<[1], [0], [0], [1], [0, 0, 1, 1], [], []>} : vector<8x256xf32>, vector<256x128xf32>, vector<8x128xf32> -> vector<8x128xf32>
    %c0_43 = arith.constant 0 : index
    %c0_44 = arith.constant 0 : index
    %c0_45 = arith.constant 0 : index
    %56 = vector.load %arg6[%c0_43, %c0_44, %c0_45] : memref<1x16x128xf32, #tpu.memory_space<vmem>>, vector<1x8x128xf32>
    %57 = vector.shape_cast %56 : vector<1x8x128xf32> to vector<8x128xf32>
    %58 = vector.shape_cast %55 : vector<8x128xf32> to vector<1x8x128xf32>
    tpu.vector_store %arg6[%c0_43, %c0_44, %c0_45], %58 {strides = array<i32>} : memref<1x16x128xf32, #tpu.memory_space<vmem>>, vector<1x8x128xf32>,
    %59 = arith.mulf %51, %51 : vector<256x128xf32>
    %cst_46 = arith.constant dense<0.000000e+00> : vector<8x128xf32>
    %60 = tpu.matmul %54, %59, %cst_46 {dimension_numbers = #tpu.dot_dimension_numbers<[1], [0], [0], [1], [0, 0, 1, 1], [], []>} : vector<8x256xf32>, vector<256x128xf32>, vector<8x128xf32> -> vector<8x128xf32>
    %c0_47 = arith.constant 0 : index
    %c8 = arith.constant 8 : index
    %c0_48 = arith.constant 0 : index
    %61 = vector.load %arg6[%c0_47, %c8, %c0_48] : memref<1x16x128xf32, #tpu.memory_space<vmem>>, vector<1x8x128xf32>
    %62 = vector.shape_cast %61 : vector<1x8x128xf32> to vector<8x128xf32>
    %63 = vector.shape_cast %60 : vector<8x128xf32> to vector<1x8x128xf32>
    tpu.vector_store %arg6[%c0_47, %c8, %c0_48], %63 {strides = array<i32>} : memref<1x16x128xf32, #tpu.memory_space<vmem>>, vector<1x8x128xf32>,
    return
  }
  func.func @transform_0(%arg0: i32) -> (i32, i32, i32) {
    %c0_i32 = arith.constant 0 : i32
    %c0_i32_0 = arith.constant 0 : i32
    %c0_i32_1 = arith.constant 0 : i32
    return %arg0, %c0_i32, %c0_i32_0 : i32, i32, i32
  }
  func.func @transform_1(%arg0: i32) -> (i32, i32) {
    %c0_i32 = arith.constant 0 : i32
    %c0_i32_0 = arith.constant 0 : i32
    return %arg0, %c0_i32 : i32, i32
  }
  func.func @transform_2(%arg0: i32) -> (i32, i32) {
    %c1_i32 = arith.constant 1 : i32
    %0 = arith.addi %arg0, %c1_i32 : i32
    %c0_i32 = arith.constant 0 : i32
    %c0_i32_0 = arith.constant 0 : i32
    return %0, %c0_i32 : i32, i32
  }
  func.func @transform_3(%arg0: i32) -> (i32, i32) {
    %c0_i32 = arith.constant 0 : i32
    %c0_i32_0 = arith.constant 0 : i32
    %c0_i32_1 = arith.constant 0 : i32
    return %c0_i32, %c0_i32_0 : i32, i32
  }
  func.func @transform_4(%arg0: i32) -> (i32, i32) {
    %c0_i32 = arith.constant 0 : i32
    %c0_i32_0 = arith.constant 0 : i32
    return %arg0, %c0_i32 : i32, i32
  }
  func.func @transform_5(%arg0: i32) -> (i32, i32, i32) {
    %c0_i32 = arith.constant 0 : i32
    %c0_i32_0 = arith.constant 0 : i32
    %c0_i32_1 = arith.constant 0 : i32
    return %arg0, %c0_i32, %c0_i32_0 : i32, i32, i32
  }
}

</mosaic_0001>

<llo_original>
// kernel: tpu_custom_call.1
$region0: #{tpu_custom_call.1}
  #allocation0 [shape = 'u32[]', space=smem, size = 0x4, offset = 0x4, fixed_abs, tag = 'smem constant byte address 0x4 - core index']
  #allocation1 [shape = 'u32[144,128]{1,0:T(1,128)}', space=vmem, size = 0x12000, scoped, tag = 'internal scratch']
  #allocation2 [shape = 'f32[304,16]{1,0:T(8,128)}', space=vmem, size = 0x26000, scoped, tag = 'scratch operand']
  %s0 = inlined_call_operand.vmem [shape: f32[2,8,256], index: 0, kind: input, shape index: {}]
  %s1 = inlined_call_operand.vmem [shape: bf16[768,16], index: 1, kind: input, shape index: {}]
  %s2 = inlined_call_operand.vmem [shape: bf16[768,16], index: 2, kind: input, shape index: {}]
  %s3 = inlined_call_operand.vmem [shape: bf16[144,128], index: 3, kind: input, shape index: {}]
  %s4 = inlined_call_operand.hbm [shape: f32[512,128], index: 4, kind: output, shape index: {0}]
  %s5 = inlined_call_operand.hbm [shape: f32[2,16,128], index: 5, kind: output, shape index: {1}]
  %6 = xla_tuple %s4, %s5
  %s7 = sld [smem:[#allocation0]]
  $region57: #{tpu_custom_call.1} parent=0
    _
  %s9 = ssub.s32 1, %s7
  %s10 = scalar_select 0, %s9, %s7
  $region1: #{tpu_custom_call.1} parent=0
    #allocation3 [shape = 'u8[262144]{0}', space=vmem, size = 0x40000, scoped, tag = 'output window, operand 0']
    #allocation4 [shape = 's32[2]{0}', space=sflag, size = 0x8, scoped, tag = 'scoped memory for tpu_custom_call.1']
    #allocation5 [shape = 'u8[16384]{0}', space=vmem, size = 0x4000, scoped, tag = 'output window, operand 1']
    #allocation6 [shape = 's32[2]{0}', space=sflag, size = 0x8, scoped, tag = 'scoped memory for tpu_custom_call.1']
    %11 = vsyncpa [#allocation4], 0
    %s12 = scalar_lea.sflag [#allocation4], 1
    %13 = vsyncpa %s12, 0
    %14 = vsyncpa [#allocation6], 0
    %s15 = scalar_lea.sflag [#allocation6], 1
    %16 = vsyncpa %s15, 0
    loop: start=0, step=1, limit=4
    $region2: #{tpu_custom_call.1} parent=1 // loop_pre_header
      _
    $region3: #{tpu_custom_call.1} parent=1 // loop_header
      %s18 = sphi 0, %s22
      %p19 = scmp.ge.s32.totalorder %s18, 4
      %s28 = sphi 0, %s30
      %s31 = sphi 0, %s28
      %s32 = sphi 0, %s31
      %s48 = sphi 0, %s32
      %s54 = sphi 0, %s56
      %s57 = sphi 0, %s54
      %s58 = sphi 0, %s57
      %s74 = sphi 0, %s58
      %s82 = sphi 0, %s84
      %s85 = sphi 0, %s82
      %s86 = sphi 0, %s85
      %s102 = sphi 0, %s86
      %s106 = sphi 0, %s106
      %s108 = sphi 0, %s106
      %s109 = sphi 0, %s108
      %s123 = sphi 0, %s109
      %s129 = sphi 0, %s131
      %s132 = sphi 0, %s129
      %s133 = sphi 0, %s132
      %s149 = sphi 0, %s133
      %s155 = sphi 0, %s157
      %s158 = sphi 0, %s155
      %s159 = sphi 0, %s158
      %s175 = sphi 0, %s159
    $region4: #{tpu_custom_call.1} parent=1 // loop_header_branch
      %21 = sbr.rel (%p19) target = $region8
    $region5: #{tpu_custom_call.1} parent=1 // loop_body
      %s23 = ssub.s32 %s18, 1
      %s24 = ssub.s32 %s18, 2
      %s25 = sadd.s32 %s18, 1
      %s26 = ssub.s32 %s18, %s25
      %p27 = scmp.eq.s32.totalorder %s26, 0
      %s29 = sadd.s32 %s28, 1
      %s30 = scalar_select %p27, %s28, %s29
      %p33 = pneg %p27
      %p34 = scmp.eq.s32.totalorder %s18, 1
      %p35 = por %p33, %p34
      %p36 = scmp.ne.s32.totalorder %s28, %s31
      %p37 = scmp.eq.s32.totalorder %s18, 0
      %p38 = por %p36, %p37
      %p39 = scmp.ne.s32.totalorder %s28, %s31
      %p40 = scmp.eq.s32.totalorder %s23, 1
      %p41 = por %p39, %p40
      %p42 = scmp.ne.s32.totalorder %s31, %s32
      %p43 = scmp.eq.s32.totalorder %s23, 0
      %p44 = por %p42, %p43
      %p45 = scmp.ne.s32.totalorder %s31, %s32
      %p46 = scmp.eq.s32.totalorder %s24, 1
      %p47 = por %p45, %p46
      %p49 = scmp.ne.s32.totalorder %s32, %s48
      %p50 = scmp.eq.s32.totalorder %s24, 0
      %p51 = por %p49, %p50
      %s52 = ssub.s32 %s18, %s25
      %p53 = scmp.eq.s32.totalorder %s52, 0
      %s55 = sadd.s32 %s54, 1
      %s56 = scalar_select %p53, %s54, %s55
      %p59 = pneg %p53
      %p60 = scmp.eq.s32.totalorder %s18, 1
      %p61 = por %p59, %p60
      %p62 = scmp.ne.s32.totalorder %s54, %s57
      %p63 = scmp.eq.s32.totalorder %s18, 0
      %p64 = por %p62, %p63
      %p65 = scmp.ne.s32.totalorder %s54, %s57
      %p66 = scmp.eq.s32.totalorder %s23, 1
      %p67 = por %p65, %p66
      %p68 = scmp.ne.s32.totalorder %s57, %s58
      %p69 = scmp.eq.s32.totalorder %s23, 0
      %p70 = por %p68, %p69
      %p71 = scmp.ne.s32.totalorder %s57, %s58
      %p72 = scmp.eq.s32.totalorder %s24, 1
      %p73 = por %p71, %p72
      %p75 = scmp.ne.s32.totalorder %s58, %s74
      %p76 = scmp.eq.s32.totalorder %s24, 0
      %p77 = por %p75, %p76
      %s78 = sadd.s32 %s18, 1
      %s79 = sadd.s32 %s25, 1
      %s80 = ssub.s32 %s78, %s79
      %p81 = scmp.eq.s32.totalorder %s80, 0
      %s83 = sadd.s32 %s82, 1
      %s84 = scalar_select %p81, %s82, %s83
      %p87 = pneg %p81
      %p88 = scmp.eq.s32.totalorder %s18, 1
      %p89 = por %p87, %p88
      %p90 = scmp.ne.s32.totalorder %s82, %s85
      %p91 = scmp.eq.s32.totalorder %s18, 0
      %p92 = por %p90, %p91
      %p93 = scmp.ne.s32.totalorder %s82, %s85
      %p94 = scmp.eq.s32.totalorder %s23, 1
      %p95 = por %p93, %p94
      %p96 = scmp.ne.s32.totalorder %s85, %s86
      %p97 = scmp.eq.s32.totalorder %s23, 0
      %p98 = por %p96, %p97
      %p99 = scmp.ne.s32.totalorder %s85, %s86
      %p100 = scmp.eq.s32.totalorder %s24, 1
      %p101 = por %p99, %p100
      %p103 = scmp.ne.s32.totalorder %s86, %s102
      %p104 = scmp.eq.s32.totalorder %s24, 0
      %p105 = por %p103, %p104
      %s107 = sadd.s32 %s106, 1
      %p110 = scmp.eq.s32.totalorder %s18, 1
      %p111 = scmp.ne.s32.totalorder %s106, %s108
      %p112 = scmp.eq.s32.totalorder %s18, 0
      %p113 = por %p111, %p112
      %p114 = scmp.ne.s32.totalorder %s106, %s108
      %p115 = scmp.eq.s32.totalorder %s23, 1
      %p116 = por %p114, %p115
      %p117 = scmp.ne.s32.totalorder %s108, %s109
      %p118 = scmp.eq.s32.totalorder %s23, 0
      %p119 = por %p117, %p118
      %p120 = scmp.ne.s32.totalorder %s108, %s109
      %p121 = scmp.eq.s32.totalorder %s24, 1
      %p122 = por %p120, %p121
      %p124 = scmp.ne.s32.totalorder %s109, %s123
      %p125 = scmp.eq.s32.totalorder %s24, 0
      %p126 = por %p124, %p125
      %s127 = ssub.s32 %s18, %s25
      %p128 = scmp.eq.s32.totalorder %s127, 0
      %s130 = sadd.s32 %s129, 1
      %s131 = scalar_select %p128, %s129, %s130
      %p134 = pneg %p128
      %p135 = scmp.eq.s32.totalorder %s18, 1
      %p136 = por %p134, %p135
      %p137 = scmp.ne.s32.totalorder %s129, %s132
      %p138 = scmp.eq.s32.totalorder %s18, 0
      %p139 = por %p137, %p138
      %p140 = scmp.ne.s32.totalorder %s129, %s132
      %p141 = scmp.eq.s32.totalorder %s23, 1
      %p142 = por %p140, %p141
      %p143 = scmp.ne.s32.totalorder %s132, %s133
      %p144 = scmp.eq.s32.totalorder %s23, 0
      %p145 = por %p143, %p144
      %p146 = scmp.ne.s32.totalorder %s132, %s133
      %p147 = scmp.eq.s32.totalorder %s24, 1
      %p148 = por %p146, %p147
      %p150 = scmp.ne.s32.totalorder %s133, %s149
      %p151 = scmp.eq.s32.totalorder %s24, 0
      %p152 = por %p150, %p151
      %s153 = ssub.s32 %s18, %s25
      %p154 = scmp.eq.s32.totalorder %s153, 0
      %s156 = sadd.s32 %s155, 1
      %s157 = scalar_select %p154, %s155, %s156
      %p160 = pneg %p154
      %p161 = scmp.eq.s32.totalorder %s18, 1
      %p162 = por %p160, %p161
      %p163 = scmp.ne.s32.totalorder %s155, %s158
      %p164 = scmp.eq.s32.totalorder %s18, 0
      %p165 = por %p163, %p164
      %p166 = scmp.ne.s32.totalorder %s155, %s158
      %p167 = scmp.eq.s32.totalorder %s23, 1
      %p168 = por %p166, %p167
      %p169 = scmp.ne.s32.totalorder %s158, %s159
      %p170 = scmp.eq.s32.totalorder %s23, 0
      %p171 = por %p169, %p170
      %p172 = scmp.ne.s32.totalorder %s158, %s159
      %p173 = scmp.eq.s32.totalorder %s24, 1
      %p174 = por %p172, %p173
      %p176 = scmp.ne.s32.totalorder %s159, %s175
      %p177 = scmp.eq.s32.totalorder %s24, 0
      %p178 = por %p176, %p177
      %p179 = scmp.le.s32.totalorder 1, %s18
      %p180 = scmp.lt.s32.totalorder %s18, 3
      %p181 = pnand %p179, %p180
      %p182 = pneg %p181
      // Predicated region
      $region9: #{tpu_custom_call.1} parent=5 // pred_check
        _
      $region10: #{tpu_custom_call.1} parent=5 // pred_check_branch
        %184 = sbr.rel (%p181) target = $region12
      $region11: #{tpu_custom_call.1} parent=5 // pred_region
        %s185 = ssub.s32 %s18, 1
        // Predicated region
        $region13: #{tpu_custom_call.1} parent=11 // pred_check
          %p186 = pneg %p119
        $region14: #{tpu_custom_call.1} parent=11 // pred_check_branch
          %188 = sbr.rel (%p186) target = $region16
        $region15: #{tpu_custom_call.1} parent=11 // pred_region
          _
        $region16: #{tpu_custom_call.1} parent=11 // pred_fallthru
          _
      $region12: #{tpu_custom_call.1} parent=5 // pred_fallthru
        _
      %p189 = scmp.lt.s32.totalorder %s18, 2
      // Predicated region
      $region17: #{tpu_custom_call.1} parent=5 // pred_check
        %p190 = pneg %p189
      $region18: #{tpu_custom_call.1} parent=5 // pred_check_branch
        %192 = sbr.rel (%p190) target = $region20
      $region19: #{tpu_custom_call.1} parent=5 // pred_region
        // Predicated region
        $region21: #{tpu_custom_call.1} parent=19 // pred_check
          %p193 = pneg %p38
        $region22: #{tpu_custom_call.1} parent=19 // pred_check_branch
          %195 = sbr.rel (%p193) target = $region24
        $region23: #{tpu_custom_call.1} parent=19 // pred_region
          %p196 = scmp.lt.s32.totalorder %s18, 1
          %s197 = scalar_select %p196, %s18, 1
          %s198 = smul.addr %s197, 2
          %s199 = smul.addr %s198, 8
          %s200 = scalar_lea.vmem %s0, %s199
        $region24: #{tpu_custom_call.1} parent=19 // pred_fallthru
          _
        // Predicated region
        $region25: #{tpu_custom_call.1} parent=19 // pred_check
          %p201 = pneg %p64
        $region26: #{tpu_custom_call.1} parent=19 // pred_check_branch
          %203 = sbr.rel (%p201) target = $region28
        $region27: #{tpu_custom_call.1} parent=19 // pred_region
          %s204 = smul.u32 32, %s18
          %p205 = scmp.lt.s32.totalorder %s204, 95
          %s206 = scalar_select %p205, %s204, 95
          %s207 = smul.addr %s206, 4
          %s208 = scalar_lea.vmem %s1, %s207
          %s209 = smul.u32 32, %s18
        $region28: #{tpu_custom_call.1} parent=19 // pred_fallthru
          _
        // Predicated region
        $region29: #{tpu_custom_call.1} parent=19 // pred_check
          %p210 = pneg %p92
        $region30: #{tpu_custom_call.1} parent=19 // pred_check_branch
          %212 = sbr.rel (%p210) target = $region32
        $region31: #{tpu_custom_call.1} parent=19 // pred_region
          %s213 = sadd.s32 %s18, 1
          %s214 = smul.u32 32, %s213
          %p215 = scmp.lt.s32.totalorder %s214, 95
          %s216 = scalar_select %p215, %s214, 95
          %s217 = smul.addr %s216, 4
          %s218 = scalar_lea.vmem %s2, %s217
          %s219 = sadd.s32 %s18, 1
          %s220 = smul.u32 32, %s219
        $region32: #{tpu_custom_call.1} parent=19 // pred_fallthru
          _
      $region20: #{tpu_custom_call.1} parent=5 // pred_fallthru
        _
      %p221 = scmp.le.s32.totalorder 1, %s18
      %p222 = scmp.lt.s32.totalorder %s18, 3
      %p223 = pnand %p221, %p222
      %p224 = pneg %p223
      // Predicated region
      $region33: #{tpu_custom_call.1} parent=5 // pred_check
        _
      $region34: #{tpu_custom_call.1} parent=5 // pred_check_branch
        %226 = sbr.rel (%p223) target = $region36
      $region35: #{tpu_custom_call.1} parent=5 // pred_region
        %s227 = ssub.s32 %s18, 1
        %p228 = scmp.lt.s32.totalorder %s23, 1
        %s229 = scalar_select %p228, %s23, 1
        %s230 = smul.addr %s229, 2
        %s231 = smul.addr %s230, 8
        %s232 = scalar_lea.vmem %s0, %s231
        %p233 = pneg %p44
        %p234 = pneg %p41
        %s235 = smul.u32 32, %s23
        %p236 = scmp.lt.s32.totalorder %s235, 95
        %s237 = scalar_select %p236, %s235, 95
        %s238 = smul.addr %s237, 4
        %s239 = scalar_lea.vmem %s1, %s238
        %p240 = pneg %p70
        %p241 = pneg %p67
        %s242 = sadd.s32 %s23, 1
        %s243 = smul.u32 32, %s242
        %p244 = scmp.lt.s32.totalorder %s243, 95
        %s245 = scalar_select %p244, %s243, 95
        %s246 = smul.addr %s245, 4
        %s247 = scalar_lea.vmem %s2, %s246
        %p248 = pneg %p98
        %p249 = pneg %p95
        %p250 = pneg %p119
        %p251 = pneg %p116
        %p252 = pneg %p145
        %p253 = pneg %p142
        %s254 = sand.u32 %s132, 1
        %s255 = scalar_lea.sflag [#allocation4], %s254
        %s256 = sand.u32 %s132, 1
        %s257 = smul.addr %s256, 256
        %s258 = scalar_lea.vmem [#allocation3], %s257
        %p259 = pneg %p171
        %p260 = pneg %p168
        %s261 = sand.u32 %s158, 1
        %s262 = scalar_lea.sflag [#allocation6], %s261
        %s263 = sand.u32 %s158, 1
        %s264 = smul.addr %s263, 16
        %s265 = scalar_lea.vmem [#allocation5], %s264
        %p266 = scmp.lt.s32.totalorder %s23, 1
        %s267 = scalar_select %p266, %s23, 1
        %s268 = smul.addr %s267, 2
        %s269 = smul.addr %s268, 8
        %s270 = scalar_lea.vmem %s0, %s269
        %s271 = smul.u32 32, %s23
        %p272 = scmp.lt.s32.totalorder %s271, 95
        %s273 = scalar_select %p272, %s271, 95
        %s274 = smul.addr %s273, 4
        %s275 = scalar_lea.vmem %s1, %s274
        %s276 = smul.u32 32, %s23
        %s277 = sadd.s32 %s23, 1
        %s278 = smul.u32 32, %s277
        %p279 = scmp.lt.s32.totalorder %s278, 95
        %s280 = scalar_select %p279, %s278, 95
        %s281 = smul.addr %s280, 4
        %s282 = scalar_lea.vmem %s2, %s281
        %s283 = sadd.s32 %s23, 1
        %s284 = smul.u32 32, %s283
        %s285 = smul.u32 32, %s23
        %v287 = vld [vmem:[%s275] sm:$0xf]
        %v288 = vld [vmem:[%s275 + $0x4] sm:$0xf]
        %v289 = vld [vmem:[%s275 + $0x8] sm:$0xf]
        %v290 = vld [vmem:[%s275 + $0xc] sm:$0xf]
        %v291 = vld [vmem:[%s275 + $0x10] sm:$0xf]
        %v292 = vld [vmem:[%s275 + $0x14] sm:$0xf]
        %v293 = vld [vmem:[%s275 + $0x18] sm:$0xf]
        %v294 = vld [vmem:[%s275 + $0x1c] sm:$0xf]
        %v295 = vld [vmem:[%s275 + $0x20] sm:$0xf]
        %v296 = vld [vmem:[%s275 + $0x24] sm:$0xf]
        %v297 = vld [vmem:[%s275 + $0x28] sm:$0xf]
        %v298 = vld [vmem:[%s275 + $0x2c] sm:$0xf]
        %v299 = vld [vmem:[%s275 + $0x30] sm:$0xf]
        %v300 = vld [vmem:[%s275 + $0x34] sm:$0xf]
        %v301 = vld [vmem:[%s275 + $0x38] sm:$0xf]
        %v302 = vld [vmem:[%s275 + $0x3c] sm:$0xf]
        %v303 = vld [vmem:[%s275 + $0x40] sm:$0xf]
        %v304 = vld [vmem:[%s275 + $0x44] sm:$0xf]
        %v305 = vld [vmem:[%s275 + $0x48] sm:$0xf]
        %v306 = vld [vmem:[%s275 + $0x4c] sm:$0xf]
        %v307 = vld [vmem:[%s275 + $0x50] sm:$0xf]
        %v308 = vld [vmem:[%s275 + $0x54] sm:$0xf]
        %v309 = vld [vmem:[%s275 + $0x58] sm:$0xf]
        %v310 = vld [vmem:[%s275 + $0x5c] sm:$0xf]
        %v311 = vld [vmem:[%s275 + $0x60] sm:$0xf]
        %v312 = vld [vmem:[%s275 + $0x64] sm:$0xf]
        %v313 = vld [vmem:[%s275 + $0x68] sm:$0xf]
        %v314 = vld [vmem:[%s275 + $0x6c] sm:$0xf]
        %v315 = vld [vmem:[%s275 + $0x70] sm:$0xf]
        %v316 = vld [vmem:[%s275 + $0x74] sm:$0xf]
        %v317 = vld [vmem:[%s275 + $0x78] sm:$0xf]
        %v318 = vld [vmem:[%s275 + $0x7c] sm:$0xf]
        %v319 = vunpack.c.l.bf16 %v287
        %v320 = vunpack.c.l.bf16 %v288
        %v321 = vunpack.c.l.bf16 %v289
        %v322 = vunpack.c.l.bf16 %v290
        %v323 = vunpack.c.l.bf16 %v291
        %v324 = vunpack.c.l.bf16 %v292
        %v325 = vunpack.c.l.bf16 %v293
        %v326 = vunpack.c.l.bf16 %v294
        %v327 = vunpack.c.l.bf16 %v295
        %v328 = vunpack.c.l.bf16 %v296
        %v329 = vunpack.c.l.bf16 %v297
        %v330 = vunpack.c.l.bf16 %v298
        %v331 = vunpack.c.l.bf16 %v299
        %v332 = vunpack.c.l.bf16 %v300
        %v333 = vunpack.c.l.bf16 %v301
        %v334 = vunpack.c.l.bf16 %v302
        %v335 = vunpack.c.l.bf16 %v303
        %v336 = vunpack.c.l.bf16 %v304
        %v337 = vunpack.c.l.bf16 %v305
        %v338 = vunpack.c.l.bf16 %v306
        %v339 = vunpack.c.l.bf16 %v307
        %v340 = vunpack.c.l.bf16 %v308
        %v341 = vunpack.c.l.bf16 %v309
        %v342 = vunpack.c.l.bf16 %v310
        %v343 = vunpack.c.l.bf16 %v311
        %v344 = vunpack.c.l.bf16 %v312
        %v345 = vunpack.c.l.bf16 %v313
        %v346 = vunpack.c.l.bf16 %v314
        %v347 = vunpack.c.l.bf16 %v315
        %v348 = vunpack.c.l.bf16 %v316
        %v349 = vunpack.c.l.bf16 %v317
        %v350 = vunpack.c.l.bf16 %v318
        %vm351 = vcmask 130048
        %352 = vst.msk [vmem:[#allocation2] sm:$0xff] %vm351, %v319
        %353 = vst.msk [vmem:[#allocation2 + $0x8] sm:$0xff] %vm351, %v320
        %354 = vst.msk [vmem:[#allocation2 + $0x10] sm:$0xff] %vm351, %v321
        %355 = vst.msk [vmem:[#allocation2 + $0x18] sm:$0xff] %vm351, %v322
        %356 = vst.msk [vmem:[#allocation2 + $0x20] sm:$0xff] %vm351, %v323
        %357 = vst.msk [vmem:[#allocation2 + $0x28] sm:$0xff] %vm351, %v324
        %358 = vst.msk [vmem:[#allocation2 + $0x30] sm:$0xff] %vm351, %v325
        %359 = vst.msk [vmem:[#allocation2 + $0x38] sm:$0xff] %vm351, %v326
        %360 = vst.msk [vmem:[#allocation2 + $0x40] sm:$0xff] %vm351, %v327
        %361 = vst.msk [vmem:[#allocation2 + $0x48] sm:$0xff] %vm351, %v328
        %362 = vst.msk [vmem:[#allocation2 + $0x50] sm:$0xff] %vm351, %v329
        %363 = vst.msk [vmem:[#allocation2 + $0x58] sm:$0xff] %vm351, %v330
        %364 = vst.msk [vmem:[#allocation2 + $0x60] sm:$0xff] %vm351, %v331
        %365 = vst.msk [vmem:[#allocation2 + $0x68] sm:$0xff] %vm351, %v332
        %366 = vst.msk [vmem:[#allocation2 + $0x70] sm:$0xff] %vm351, %v333
        %367 = vst.msk [vmem:[#allocation2 + $0x78] sm:$0xff] %vm351, %v334
        %368 = vst.msk [vmem:[#allocation2 + $0x80] sm:$0xff] %vm351, %v335
        %369 = vst.msk [vmem:[#allocation2 + $0x88] sm:$0xff] %vm351, %v336
        %370 = vst.msk [vmem:[#allocation2 + $0x90] sm:$0xff] %vm351, %v337
        %371 = vst.msk [vmem:[#allocation2 + $0x98] sm:$0xff] %vm351, %v338
        %372 = vst.msk [vmem:[#allocation2 + $0xa0] sm:$0xff] %vm351, %v339
        %373 = vst.msk [vmem:[#allocation2 + $0xa8] sm:$0xff] %vm351, %v340
        %374 = vst.msk [vmem:[#allocation2 + $0xb0] sm:$0xff] %vm351, %v341
        %375 = vst.msk [vmem:[#allocation2 + $0xb8] sm:$0xff] %vm351, %v342
        %376 = vst.msk [vmem:[#allocation2 + $0xc0] sm:$0xff] %vm351, %v343
        %377 = vst.msk [vmem:[#allocation2 + $0xc8] sm:$0xff] %vm351, %v344
        %378 = vst.msk [vmem:[#allocation2 + $0xd0] sm:$0xff] %vm351, %v345
        %379 = vst.msk [vmem:[#allocation2 + $0xd8] sm:$0xff] %vm351, %v346
        %380 = vst.msk [vmem:[#allocation2 + $0xe0] sm:$0xff] %vm351, %v347
        %381 = vst.msk [vmem:[#allocation2 + $0xe8] sm:$0xff] %vm351, %v348
        %382 = vst.msk [vmem:[#allocation2 + $0xf0] sm:$0xff] %vm351, %v349
        %383 = vst.msk [vmem:[#allocation2 + $0xf8] sm:$0xff] %vm351, %v350
        %v384 = vld [vmem:[%s282] sm:$0xf]
        %v385 = vld [vmem:[%s282 + $0x4] sm:$0xf]
        %v386 = vld [vmem:[%s282 + $0x8] sm:$0xf]
        %v387 = vld [vmem:[%s282 + $0xc] sm:$0xf]
        %v388 = vld [vmem:[%s282 + $0x10] sm:$0xf]
        %v389 = vld [vmem:[%s282 + $0x14] sm:$0xf]
        %v390 = vunpack.c.l.bf16 %v384
        %v391 = vunpack.c.l.bf16 %v385
        %v392 = vunpack.c.l.bf16 %v386
        %v393 = vunpack.c.l.bf16 %v387
        %v394 = vunpack.c.l.bf16 %v388
        %v395 = vunpack.c.l.bf16 %v389
        %396 = vst.msk [vmem:[#allocation2 + $0x100] sm:$0xff] %vm351, %v390
        %397 = vst.msk [vmem:[#allocation2 + $0x108] sm:$0xff] %vm351, %v391
        %398 = vst.msk [vmem:[#allocation2 + $0x110] sm:$0xff] %vm351, %v392
        %399 = vst.msk [vmem:[#allocation2 + $0x118] sm:$0xff] %vm351, %v393
        %400 = vst.msk [vmem:[#allocation2 + $0x120] sm:$0xff] %vm351, %v394
        %401 = vst.msk [vmem:[#allocation2 + $0x128] sm:$0xff] %vm351, %v395
        %v402 = vld [vmem:[#allocation2] sm:$0xff]
        %v403 = vld [vmem:[#allocation2 + $0x8] sm:$0xff]
        %v404 = vld [vmem:[#allocation2 + $0x10] sm:$0xff]
        %v405 = vld [vmem:[#allocation2 + $0x18] sm:$0xff]
        %v406 = vld [vmem:[#allocation2 + $0x20] sm:$0xff]
        %v407 = vld [vmem:[#allocation2 + $0x28] sm:$0xff]
        %v408 = vld [vmem:[#allocation2 + $0x30] sm:$0xff]
        %v409 = vld [vmem:[#allocation2 + $0x38] sm:$0xff]
        %v410 = vld [vmem:[#allocation2 + $0x40] sm:$0xff]
        %v411 = vld [vmem:[#allocation2 + $0x48] sm:$0xff]
        %v412 = vld [vmem:[#allocation2 + $0x50] sm:$0xff]
        %v413 = vld [vmem:[#allocation2 + $0x58] sm:$0xff]
        %v414 = vld [vmem:[#allocation2 + $0x60] sm:$0xff]
        %v415 = vld [vmem:[#allocation2 + $0x68] sm:$0xff]
        %v416 = vld [vmem:[#allocation2 + $0x70] sm:$0xff]
        %v417 = vld [vmem:[#allocation2 + $0x78] sm:$0xff]
        %v418 = vld [vmem:[#allocation2 + $0x80] sm:$0xff]
        %v419 = vld [vmem:[#allocation2 + $0x88] sm:$0xff]
        %v420 = vld [vmem:[#allocation2 + $0x90] sm:$0xff]
        %v421 = vld [vmem:[#allocation2 + $0x98] sm:$0xff]
        %v422 = vld [vmem:[#allocation2 + $0xa0] sm:$0xff]
        %v423 = vld [vmem:[#allocation2 + $0xa8] sm:$0xff]
        %v424 = vld [vmem:[#allocation2 + $0xb0] sm:$0xff]
        %v425 = vld [vmem:[#allocation2 + $0xb8] sm:$0xff]
        %v426 = vld [vmem:[#allocation2 + $0xc0] sm:$0xff]
        %v427 = vld [vmem:[#allocation2 + $0xc8] sm:$0xff]
        %v428 = vld [vmem:[#allocation2 + $0xd0] sm:$0xff]
        %v429 = vld [vmem:[#allocation2 + $0xd8] sm:$0xff]
        %v430 = vld [vmem:[#allocation2 + $0xe0] sm:$0xff]
        %v431 = vld [vmem:[#allocation2 + $0xe8] sm:$0xff]
        %v432 = vld [vmem:[#allocation2 + $0xf0] sm:$0xff]
        %v433 = vld [vmem:[#allocation2 + $0xf8] sm:$0xff]
        %v434 = vpack.c.bf16 %v403, %v402
        %v435 = vpack.c.bf16 %v405, %v404
        %v436 = vpack.c.bf16 %v407, %v406
        %v437 = vpack.c.bf16 %v409, %v408
        %v438 = vpack.c.bf16 %v411, %v410
        %v439 = vpack.c.bf16 %v413, %v412
        %v440 = vpack.c.bf16 %v415, %v414
        %v441 = vpack.c.bf16 %v417, %v416
        %v442 = vpack.c.bf16 %v419, %v418
        %v443 = vpack.c.bf16 %v421, %v420
        %v444 = vpack.c.bf16 %v423, %v422
        %v445 = vpack.c.bf16 %v425, %v424
        %v446 = vpack.c.bf16 %v427, %v426
        %v447 = vpack.c.bf16 %v429, %v428
        %v448 = vpack.c.bf16 %v431, %v430
        %v449 = vpack.c.bf16 %v433, %v432
        %v450 = vld [vmem:[%s3] sm:$0xf]
        %v451 = vld [vmem:[%s3 + $0x4] sm:$0xf]
        %v452 = vld [vmem:[#allocation2 + $0x1] sm:$0xff]
        %v453 = vld [vmem:[#allocation2 + $0x9] sm:$0xff]
        %v454 = vld [vmem:[#allocation2 + $0x11] sm:$0xff]
        %v455 = vld [vmem:[#allocation2 + $0x19] sm:$0xff]
        %v456 = vld [vmem:[#allocation2 + $0x21] sm:$0xff]
        %v457 = vld [vmem:[#allocation2 + $0x29] sm:$0xff]
        %v458 = vld [vmem:[#allocation2 + $0x31] sm:$0xff]
        %v459 = vld [vmem:[#allocation2 + $0x39] sm:$0xff]
        %v460 = vld [vmem:[#allocation2 + $0x41] sm:$0xff]
        %v461 = vld [vmem:[#allocation2 + $0x49] sm:$0xff]
        %v462 = vld [vmem:[#allocation2 + $0x51] sm:$0xff]
        %v463 = vld [vmem:[#allocation2 + $0x59] sm:$0xff]
        %v464 = vld [vmem:[#allocation2 + $0x61] sm:$0xff]
        %v465 = vld [vmem:[#allocation2 + $0x69] sm:$0xff]
        %v466 = vld [vmem:[#allocation2 + $0x71] sm:$0xff]
        %v467 = vld [vmem:[#allocation2 + $0x79] sm:$0xff]
        %v468 = vld [vmem:[#allocation2 + $0x81] sm:$0xff]
        %v469 = vld [vmem:[#allocation2 + $0x89] sm:$0xff]
        %v470 = vld [vmem:[#allocation2 + $0x91] sm:$0xff]
        %v471 = vld [vmem:[#allocation2 + $0x99] sm:$0xff]
        %v472 = vld [vmem:[#allocation2 + $0xa1] sm:$0xff]
        %v473 = vld [vmem:[#allocation2 + $0xa9] sm:$0xff]
        %v474 = vld [vmem:[#allocation2 + $0xb1] sm:$0xff]
        %v475 = vld [vmem:[#allocation2 + $0xb9] sm:$0xff]
        %v476 = vld [vmem:[#allocation2 + $0xc1] sm:$0xff]
        %v477 = vld [vmem:[#allocation2 + $0xc9] sm:$0xff]
        %v478 = vld [vmem:[#allocation2 + $0xd1] sm:$0xff]
        %v479 = vld [vmem:[#allocation2 + $0xd9] sm:$0xff]
        %v480 = vld [vmem:[#allocation2 + $0xe1] sm:$0xff]
        %v481 = vld [vmem:[#allocation2 + $0xe9] sm:$0xff]
        %v482 = vld [vmem:[#allocation2 + $0xf1] sm:$0xff]
        %v483 = vld [vmem:[#allocation2 + $0xf9] sm:$0xff]
        %v484 = vpack.c.bf16 %v453, %v452
        %v485 = vpack.c.bf16 %v455, %v454
        %v486 = vpack.c.bf16 %v457, %v456
        %v487 = vpack.c.bf16 %v459, %v458
        %v488 = vpack.c.bf16 %v461, %v460
        %v489 = vpack.c.bf16 %v463, %v462
        %v490 = vpack.c.bf16 %v465, %v464
        %v491 = vpack.c.bf16 %v467, %v466
        %v492 = vpack.c.bf16 %v469, %v468
        %v493 = vpack.c.bf16 %v471, %v470
        %v494 = vpack.c.bf16 %v473, %v472
        %v495 = vpack.c.bf16 %v475, %v474
        %v496 = vpack.c.bf16 %v477, %v476
        %v497 = vpack.c.bf16 %v479, %v478
        %v498 = vpack.c.bf16 %v481, %v480
        %v499 = vpack.c.bf16 %v483, %v482
        %v500 = vld [vmem:[%s3 + $0x8] sm:$0xf]
        %v501 = vld [vmem:[%s3 + $0xc] sm:$0xf]
        %v504 = vunpack.c.l.b16 %v500
        %v505 = vunpack.c.l.b16 %v501
        %v506 = vpack.c.b16 %v505, %v504
        %v509 = vsel %vm351, %v484, 0
        %v512 = vsel %vm351, %v485, 0
        %v515 = vsel %vm351, %v486, 0
        %v518 = vsel %vm351, %v487, 0
        %v521 = vsel %vm351, %v488, 0
        %v524 = vsel %vm351, %v489, 0
        %v527 = vsel %vm351, %v490, 0
        %v530 = vsel %vm351, %v491, 0
        %v533 = vsel %vm351, %v492, 0
        %v536 = vsel %vm351, %v493, 0
        %v539 = vsel %vm351, %v494, 0
        %v542 = vsel %vm351, %v495, 0
        %v545 = vsel %vm351, %v496, 0
        %v548 = vsel %vm351, %v497, 0
        %v551 = vsel %vm351, %v498, 0
        %v554 = vsel %vm351, %v499, 0
        %556 = vmatprep.subr.bf16.mxu0 0
        %557 = vmatpush1.bf16.msra.mxu0 %v506
        %558 = vmatprep.subr.bf16.mxu0 0
        %559 = vmatpush1.bf16.msra.mxu0 0
        %560 = vmatprep.subr.bf16.mxu0 0
        %561 = vmatpush1.bf16.msra.mxu0 0
        %562 = vmatprep.subr.bf16.mxu0 0
        %563 = vmatpush1.bf16.msra.mxu0 0
        %564 = vmatprep.subr.bf16.mxu0 0
        %565 = vmatpush1.bf16.msra.mxu0 0
        %566 = vmatprep.subr.bf16.mxu0 0
        %567 = vmatpush1.bf16.msra.mxu0 0
        %568 = vmatprep.subr.bf16.mxu0 0
        %569 = vmatpush1.bf16.msra.mxu0 0
        %570 = vmatprep.subr.bf16.mxu0 0
        %571 = vmatpush1.bf16.msra.mxu0 0
        %572 = vmatprep.subr.bf16.mxu0 0
        %573 = vmatpush1.bf16.msra.mxu0 0
        %574 = vmatprep.subr.bf16.mxu0 0
        %575 = vmatpush1.bf16.msra.mxu0 0
        %576 = vmatprep.subr.bf16.mxu0 0
        %577 = vmatpush1.bf16.msra.mxu0 0
        %578 = vmatprep.subr.bf16.mxu0 0
        %579 = vmatpush1.bf16.msra.mxu0 0
        %580 = vmatprep.subr.bf16.mxu0 0
        %581 = vmatpush1.bf16.msra.mxu0 0
        %582 = vmatprep.subr.bf16.mxu0 0
        %583 = vmatpush1.bf16.msra.mxu0 0
        %584 = vmatprep.subr.bf16.mxu0 0
        %585 = vmatpush1.bf16.msra.mxu0 0
        %586 = vmatprep.subr.bf16.mxu0 0
        %587 = vmatpush1.bf16.msra.mxu0 0
        %588 = vmatprep.mubr.bf16.mxu0 0
        %589 = vmatmul.mubr.bf16.gmra.mrb[0].mxu0 %v509
        %v590 = vpop.f32.mrb[0].mxu0
        %v591 = vadd.f32 0.0, %v590
        %v592 = vpop.f32.mrb[0].mxu0
        %v593 = vpop.f32.mrb[0].mxu0
        %v594 = vadd.f32 0.0, %v593
        %v595 = vpop.f32.mrb[0].mxu0
        %596 = vmatprep.mubr.bf16.mxu0 0
        %597 = vmatmul.mubr.bf16.gmra.mrb[0].mxu0 %v512
        %v598 = vpop.f32.mrb[0].mxu0
        %v599 = vadd.f32 0.0, %v598
        %v600 = vpop.f32.mrb[0].mxu0
        %v601 = vpop.f32.mrb[0].mxu0
        %v602 = vadd.f32 0.0, %v601
        %v603 = vpop.f32.mrb[0].mxu0
        %604 = vmatprep.mubr.bf16.mxu0 0
        %605 = vmatmul.mubr.bf16.gmra.mrb[0].mxu0 %v515
        %v606 = vpop.f32.mrb[0].mxu0
        %v607 = vadd.f32 0.0, %v606
        %v608 = vpop.f32.mrb[0].mxu0
        %v609 = vpop.f32.mrb[0].mxu0
        %v610 = vadd.f32 0.0, %v609
        %v611 = vpop.f32.mrb[0].mxu0
        %612 = vmatprep.mubr.bf16.mxu0 0
        %613 = vmatmul.mubr.bf16.gmra.mrb[0].mxu0 %v518
        %v614 = vpop.f32.mrb[0].mxu0
        %v615 = vadd.f32 0.0, %v614
        %v616 = vpop.f32.mrb[0].mxu0
        %v617 = vpop.f32.mrb[0].mxu0
        %v618 = vadd.f32 0.0, %v617
        %v619 = vpop.f32.mrb[0].mxu0
        %620 = vmatprep.mubr.bf16.mxu0 0
        %621 = vmatmul.mubr.bf16.gmra.mrb[0].mxu0 %v521
        %v622 = vpop.f32.mrb[0].mxu0
        %v623 = vadd.f32 0.0, %v622
        %v624 = vpop.f32.mrb[0].mxu0
        %v625 = vpop.f32.mrb[0].mxu0
        %v626 = vadd.f32 0.0, %v625
        %v627 = vpop.f32.mrb[0].mxu0
        %628 = vmatprep.mubr.bf16.mxu0 0
        %629 = vmatmul.mubr.bf16.gmra.mrb[0].mxu0 %v524
        %v630 = vpop.f32.mrb[0].mxu0
        %v631 = vadd.f32 0.0, %v630
        %v632 = vpop.f32.mrb[0].mxu0
        %v633 = vpop.f32.mrb[0].mxu0
        %v634 = vadd.f32 0.0, %v633
        %v635 = vpop.f32.mrb[0].mxu0
        %636 = vmatprep.mubr.bf16.mxu0 0
        %637 = vmatmul.mubr.bf16.gmra.mrb[0].mxu0 %v527
        %v638 = vpop.f32.mrb[0].mxu0
        %v639 = vadd.f32 0.0, %v638
        %v640 = vpop.f32.mrb[0].mxu0
        %v641 = vpop.f32.mrb[0].mxu0
        %v642 = vadd.f32 0.0, %v641
        %v643 = vpop.f32.mrb[0].mxu0
        %644 = vmatprep.mubr.bf16.mxu0 0
        %645 = vmatmul.mubr.bf16.gmra.mrb[0].mxu0 %v530
        %v646 = vpop.f32.mrb[0].mxu0
        %v647 = vadd.f32 0.0, %v646
        %v648 = vpop.f32.mrb[0].mxu0
        %v649 = vpop.f32.mrb[0].mxu0
        %v650 = vadd.f32 0.0, %v649
        %v651 = vpop.f32.mrb[0].mxu0
        %652 = vmatprep.mubr.bf16.mxu0 0
        %653 = vmatmul.mubr.bf16.gmra.mrb[0].mxu0 %v533
        %v654 = vpop.f32.mrb[0].mxu0
        %v655 = vadd.f32 0.0, %v654
        %v656 = vpop.f32.mrb[0].mxu0
        %v657 = vpop.f32.mrb[0].mxu0
        %v658 = vadd.f32 0.0, %v657
        %v659 = vpop.f32.mrb[0].mxu0
        %660 = vmatprep.mubr.bf16.mxu0 0
        %661 = vmatmul.mubr.bf16.gmra.mrb[0].mxu0 %v536
        %v662 = vpop.f32.mrb[0].mxu0
        %v663 = vadd.f32 0.0, %v662
        %v664 = vpop.f32.mrb[0].mxu0
        %v665 = vpop.f32.mrb[0].mxu0
        %v666 = vadd.f32 0.0, %v665
        %v667 = vpop.f32.mrb[0].mxu0
        %668 = vmatprep.mubr.bf16.mxu0 0
        %669 = vmatmul.mubr.bf16.gmra.mrb[0].mxu0 %v539
        %v670 = vpop.f32.mrb[0].mxu0
        %v671 = vadd.f32 0.0, %v670
        %v672 = vpop.f32.mrb[0].mxu0
        %v673 = vpop.f32.mrb[0].mxu0
        %v674 = vadd.f32 0.0, %v673
        %v675 = vpop.f32.mrb[0].mxu0
        %676 = vmatprep.mubr.bf16.mxu0 0
        %677 = vmatmul.mubr.bf16.gmra.mrb[0].mxu0 %v542
        %v678 = vpop.f32.mrb[0].mxu0
        %v679 = vadd.f32 0.0, %v678
        %v680 = vpop.f32.mrb[0].mxu0
        %v681 = vpop.f32.mrb[0].mxu0
        %v682 = vadd.f32 0.0, %v681
        %v683 = vpop.f32.mrb[0].mxu0
        %684 = vmatprep.mubr.bf16.mxu0 0
        %685 = vmatmul.mubr.bf16.gmra.mrb[0].mxu0 %v545
        %v686 = vpop.f32.mrb[0].mxu0
        %v687 = vadd.f32 0.0, %v686
        %v688 = vpop.f32.mrb[0].mxu0
        %v689 = vpop.f32.mrb[0].mxu0
        %v690 = vadd.f32 0.0, %v689
        %v691 = vpop.f32.mrb[0].mxu0
        %692 = vmatprep.mubr.bf16.mxu0 0
        %693 = vmatmul.mubr.bf16.gmra.mrb[0].mxu0 %v548
        %v694 = vpop.f32.mrb[0].mxu0
        %v695 = vadd.f32 0.0, %v694
        %v696 = vpop.f32.mrb[0].mxu0
        %v697 = vpop.f32.mrb[0].mxu0
        %v698 = vadd.f32 0.0, %v697
        %v699 = vpop.f32.mrb[0].mxu0
        %700 = vmatprep.mubr.bf16.mxu0 0
        %701 = vmatmul.mubr.bf16.gmra.mrb[0].mxu0 %v551
        %v702 = vpop.f32.mrb[0].mxu0
        %v703 = vadd.f32 0.0, %v702
        %v704 = vpop.f32.mrb[0].mxu0
        %v705 = vpop.f32.mrb[0].mxu0
        %v706 = vadd.f32 0.0, %v705
        %v707 = vpop.f32.mrb[0].mxu0
        %708 = vmatprep.mubr.bf16.mxu0 0
        %709 = vmatmul.mubr.bf16.gmra.mrb[0].mxu0 %v554
        %v710 = vpop.f32.mrb[0].mxu0
        %v711 = vadd.f32 0.0, %v710
        %v712 = vpop.f32.mrb[0].mxu0
        %v713 = vpop.f32.mrb[0].mxu0
        %v714 = vadd.f32 0.0, %v713
        %v715 = vpop.f32.mrb[0].mxu0
        %716 = vdwg.mxu0
        %v719 = vunpack.c.l.b16 %v450
        %v720 = vunpack.c.l.b16 %v451
        %v721 = vpack.c.b16 %v720, %v719
        %v724 = vsel %vm351, %v434, 0
        %v727 = vsel %vm351, %v435, 0
        %v730 = vsel %vm351, %v436, 0
        %v733 = vsel %vm351, %v437, 0
        %v736 = vsel %vm351, %v438, 0
        %v739 = vsel %vm351, %v439, 0
        %v742 = vsel %vm351, %v440, 0
        %v745 = vsel %vm351, %v441, 0
        %v748 = vsel %vm351, %v442, 0
        %v751 = vsel %vm351, %v443, 0
        %v754 = vsel %vm351, %v444, 0
        %v757 = vsel %vm351, %v445, 0
        %v760 = vsel %vm351, %v446, 0
        %v763 = vsel %vm351, %v447, 0
        %v766 = vsel %vm351, %v448, 0
        %v769 = vsel %vm351, %v449, 0
        %771 = vmatprep.subr.bf16.mxu0 0
        %772 = vmatpush1.bf16.msra.mxu0 %v721
        %773 = vmatprep.subr.bf16.mxu0 0
        %774 = vmatpush1.bf16.msra.mxu0 0
        %775 = vmatprep.subr.bf16.mxu0 0
        %776 = vmatpush1.bf16.msra.mxu0 0
        %777 = vmatprep.subr.bf16.mxu0 0
        %778 = vmatpush1.bf16.msra.mxu0 0
        %779 = vmatprep.subr.bf16.mxu0 0
        %780 = vmatpush1.bf16.msra.mxu0 0
        %781 = vmatprep.subr.bf16.mxu0 0
        %782 = vmatpush1.bf16.msra.mxu0 0
        %783 = vmatprep.subr.bf16.mxu0 0
        %784 = vmatpush1.bf16.msra.mxu0 0
        %785 = vmatprep.subr.bf16.mxu0 0
        %786 = vmatpush1.bf16.msra.mxu0 0
        %787 = vmatprep.subr.bf16.mxu0 0
        %788 = vmatpush1.bf16.msra.mxu0 0
        %789 = vmatprep.subr.bf16.mxu0 0
        %790 = vmatpush1.bf16.msra.mxu0 0
        %791 = vmatprep.subr.bf16.mxu0 0
        %792 = vmatpush1.bf16.msra.mxu0 0
        %793 = vmatprep.subr.bf16.mxu0 0
        %794 = vmatpush1.bf16.msra.mxu0 0
        %795 = vmatprep.subr.bf16.mxu0 0
        %796 = vmatpush1.bf16.msra.mxu0 0
        %797 = vmatprep.subr.bf16.mxu0 0
        %798 = vmatpush1.bf16.msra.mxu0 0
        %799 = vmatprep.subr.bf16.mxu0 0
        %800 = vmatpush1.bf16.msra.mxu0 0
        %801 = vmatprep.subr.bf16.mxu0 0
        %802 = vmatpush1.bf16.msra.mxu0 0
        %803 = vmatprep.mubr.bf16.mxu0 0
        %804 = vmatmul.mubr.bf16.gmra.mrb[0].mxu0 %v724
        %v805 = vpop.f32.mrb[0].mxu0
        %v806 = vadd.f32 %v591, %v805
        %v807 = vpop.f32.mrb[0].mxu0
        %v808 = vpop.f32.mrb[0].mxu0
        %v809 = vadd.f32 %v594, %v808
        %v810 = vpop.f32.mrb[0].mxu0
        %811 = vmatprep.mubr.bf16.mxu0 0
        %812 = vmatmul.mubr.bf16.gmra.mrb[0].mxu0 %v727
        %v813 = vpop.f32.mrb[0].mxu0
        %v814 = vadd.f32 %v599, %v813
        %v815 = vpop.f32.mrb[0].mxu0
        %v816 = vpop.f32.mrb[0].mxu0
        %v817 = vadd.f32 %v602, %v816
        %v818 = vpop.f32.mrb[0].mxu0
        %819 = vmatprep.mubr.bf16.mxu0 0
        %820 = vmatmul.mubr.bf16.gmra.mrb[0].mxu0 %v730
        %v821 = vpop.f32.mrb[0].mxu0
        %v822 = vadd.f32 %v607, %v821
        %v823 = vpop.f32.mrb[0].mxu0
        %v824 = vpop.f32.mrb[0].mxu0
        %v825 = vadd.f32 %v610, %v824
        %v826 = vpop.f32.mrb[0].mxu0
        %827 = vmatprep.mubr.bf16.mxu0 0
        %828 = vmatmul.mubr.bf16.gmra.mrb[0].mxu0 %v733
        %v829 = vpop.f32.mrb[0].mxu0
        %v830 = vadd.f32 %v615, %v829
        %v831 = vpop.f32.mrb[0].mxu0
        %v832 = vpop.f32.mrb[0].mxu0
        %v833 = vadd.f32 %v618, %v832
        %v834 = vpop.f32.mrb[0].mxu0
        %835 = vmatprep.mubr.bf16.mxu0 0
        %836 = vmatmul.mubr.bf16.gmra.mrb[0].mxu0 %v736
        %v837 = vpop.f32.mrb[0].mxu0
        %v838 = vadd.f32 %v623, %v837
        %v839 = vpop.f32.mrb[0].mxu0
        %v840 = vpop.f32.mrb[0].mxu0
        %v841 = vadd.f32 %v626, %v840
        %v842 = vpop.f32.mrb[0].mxu0
        %843 = vmatprep.mubr.bf16.mxu0 0
        %844 = vmatmul.mubr.bf16.gmra.mrb[0].mxu0 %v739
        %v845 = vpop.f32.mrb[0].mxu0
        %v846 = vadd.f32 %v631, %v845
        %v847 = vpop.f32.mrb[0].mxu0
        %v848 = vpop.f32.mrb[0].mxu0
        %v849 = vadd.f32 %v634, %v848
        %v850 = vpop.f32.mrb[0].mxu0
        %851 = vmatprep.mubr.bf16.mxu0 0
        %852 = vmatmul.mubr.bf16.gmra.mrb[0].mxu0 %v742
        %v853 = vpop.f32.mrb[0].mxu0
        %v854 = vadd.f32 %v639, %v853
        %v855 = vpop.f32.mrb[0].mxu0
        %v856 = vpop.f32.mrb[0].mxu0
        %v857 = vadd.f32 %v642, %v856
        %v858 = vpop.f32.mrb[0].mxu0
        %859 = vmatprep.mubr.bf16.mxu0 0
        %860 = vmatmul.mubr.bf16.gmra.mrb[0].mxu0 %v745
        %v861 = vpop.f32.mrb[0].mxu0
        %v862 = vadd.f32 %v647, %v861
        %v863 = vpop.f32.mrb[0].mxu0
        %v864 = vpop.f32.mrb[0].mxu0
        %v865 = vadd.f32 %v650, %v864
        %v866 = vpop.f32.mrb[0].mxu0
        %867 = vmatprep.mubr.bf16.mxu0 0
        %868 = vmatmul.mubr.bf16.gmra.mrb[0].mxu0 %v748
        %v869 = vpop.f32.mrb[0].mxu0
        %v870 = vadd.f32 %v655, %v869
        %v871 = vpop.f32.mrb[0].mxu0
        %v872 = vpop.f32.mrb[0].mxu0
        %v873 = vadd.f32 %v658, %v872
        %v874 = vpop.f32.mrb[0].mxu0
        %875 = vmatprep.mubr.bf16.mxu0 0
        %876 = vmatmul.mubr.bf16.gmra.mrb[0].mxu0 %v751
        %v877 = vpop.f32.mrb[0].mxu0
        %v878 = vadd.f32 %v663, %v877
        %v879 = vpop.f32.mrb[0].mxu0
        %v880 = vpop.f32.mrb[0].mxu0
        %v881 = vadd.f32 %v666, %v880
        %v882 = vpop.f32.mrb[0].mxu0
        %883 = vmatprep.mubr.bf16.mxu0 0
        %884 = vmatmul.mubr.bf16.gmra.mrb[0].mxu0 %v754
        %v885 = vpop.f32.mrb[0].mxu0
        %v886 = vadd.f32 %v671, %v885
        %v887 = vpop.f32.mrb[0].mxu0
        %v888 = vpop.f32.mrb[0].mxu0
        %v889 = vadd.f32 %v674, %v888
        %v890 = vpop.f32.mrb[0].mxu0
        %891 = vmatprep.mubr.bf16.mxu0 0
        %892 = vmatmul.mubr.bf16.gmra.mrb[0].mxu0 %v757
        %v893 = vpop.f32.mrb[0].mxu0
        %v894 = vadd.f32 %v679, %v893
        %v895 = vpop.f32.mrb[0].mxu0
        %v896 = vpop.f32.mrb[0].mxu0
        %v897 = vadd.f32 %v682, %v896
        %v898 = vpop.f32.mrb[0].mxu0
        %899 = vmatprep.mubr.bf16.mxu0 0
        %900 = vmatmul.mubr.bf16.gmra.mrb[0].mxu0 %v760
        %v901 = vpop.f32.mrb[0].mxu0
        %v902 = vadd.f32 %v687, %v901
        %v903 = vpop.f32.mrb[0].mxu0
        %v904 = vpop.f32.mrb[0].mxu0
        %v905 = vadd.f32 %v690, %v904
        %v906 = vpop.f32.mrb[0].mxu0
        %907 = vmatprep.mubr.bf16.mxu0 0
        %908 = vmatmul.mubr.bf16.gmra.mrb[0].mxu0 %v763
        %v909 = vpop.f32.mrb[0].mxu0
        %v910 = vadd.f32 %v695, %v909
        %v911 = vpop.f32.mrb[0].mxu0
        %v912 = vpop.f32.mrb[0].mxu0
        %v913 = vadd.f32 %v698, %v912
        %v914 = vpop.f32.mrb[0].mxu0
        %915 = vmatprep.mubr.bf16.mxu0 0
        %916 = vmatmul.mubr.bf16.gmra.mrb[0].mxu0 %v766
        %v917 = vpop.f32.mrb[0].mxu0
        %v918 = vadd.f32 %v703, %v917
        %v919 = vpop.f32.mrb[0].mxu0
        %v920 = vpop.f32.mrb[0].mxu0
        %v921 = vadd.f32 %v706, %v920
        %v922 = vpop.f32.mrb[0].mxu0
        %923 = vmatprep.mubr.bf16.mxu0 0
        %924 = vmatmul.mubr.bf16.gmra.mrb[0].mxu0 %v769
        %v925 = vpop.f32.mrb[0].mxu0
        %v926 = vadd.f32 %v711, %v925
        %v927 = vpop.f32.mrb[0].mxu0
        %v928 = vpop.f32.mrb[0].mxu0
        %v929 = vadd.f32 %v714, %v928
        %v930 = vpop.f32.mrb[0].mxu0
        %931 = vdwg.mxu0
        %v932 = vld [vmem:[#allocation2 + $0x2] sm:$0xff]
        %v933 = vld [vmem:[#allocation2 + $0xa] sm:$0xff]
        %v934 = vld [vmem:[#allocation2 + $0x12] sm:$0xff]
        %v935 = vld [vmem:[#allocation2 + $0x1a] sm:$0xff]
        %v936 = vld [vmem:[#allocation2 + $0x22] sm:$0xff]
        %v937 = vld [vmem:[#allocation2 + $0x2a] sm:$0xff]
        %v938 = vld [vmem:[#allocation2 + $0x32] sm:$0xff]
        %v939 = vld [vmem:[#allocation2 + $0x3a] sm:$0xff]
        %v940 = vld [vmem:[#allocation2 + $0x42] sm:$0xff]
        %v941 = vld [vmem:[#allocation2 + $0x4a] sm:$0xff]
        %v942 = vld [vmem:[#allocation2 + $0x52] sm:$0xff]
        %v943 = vld [vmem:[#allocation2 + $0x5a] sm:$0xff]
        %v944 = vld [vmem:[#allocation2 + $0x62] sm:$0xff]
        %v945 = vld [vmem:[#allocation2 + $0x6a] sm:$0xff]
        %v946 = vld [vmem:[#allocation2 + $0x72] sm:$0xff]
        %v947 = vld [vmem:[#allocation2 + $0x7a] sm:$0xff]
        %v948 = vld [vmem:[#allocation2 + $0x82] sm:$0xff]
        %v949 = vld [vmem:[#allocation2 + $0x8a] sm:$0xff]
        %v950 = vld [vmem:[#allocation2 + $0x92] sm:$0xff]
        %v951 = vld [vmem:[#allocation2 + $0x9a] sm:$0xff]
        %v952 = vld [vmem:[#allocation2 + $0xa2] sm:$0xff]
        %v953 = vld [vmem:[#allocation2 + $0xaa] sm:$0xff]
        %v954 = vld [vmem:[#allocation2 + $0xb2] sm:$0xff]
        %v955 = vld [vmem:[#allocation2 + $0xba] sm:$0xff]
        %v956 = vld [vmem:[#allocation2 + $0xc2] sm:$0xff]
        %v957 = vld [vmem:[#allocation2 + $0xca] sm:$0xff]
        %v958 = vld [vmem:[#allocation2 + $0xd2] sm:$0xff]
        %v959 = vld [vmem:[#allocation2 + $0xda] sm:$0xff]
        %v960 = vld [vmem:[#allocation2 + $0xe2] sm:$0xff]
        %v961 = vld [vmem:[#allocation2 + $0xea] sm:$0xff]
        %v962 = vld [vmem:[#allocation2 + $0xf2] sm:$0xff]
        %v963 = vld [vmem:[#allocation2 + $0xfa] sm:$0xff]
        %v964 = vpack.c.bf16 %v933, %v932
        %v965 = vpack.c.bf16 %v935, %v934
        %v966 = vpack.c.bf16 %v937, %v936
        %v967 = vpack.c.bf16 %v939, %v938
        %v968 = vpack.c.bf16 %v941, %v940
        %v969 = vpack.c.bf16 %v943, %v942
        %v970 = vpack.c.bf16 %v945, %v944
        %v971 = vpack.c.bf16 %v947, %v946
        %v972 = vpack.c.bf16 %v949, %v948
        %v973 = vpack.c.bf16 %v951, %v950
        %v974 = vpack.c.bf16 %v953, %v952
        %v975 = vpack.c.bf16 %v955, %v954
        %v976 = vpack.c.bf16 %v957, %v956
        %v977 = vpack.c.bf16 %v959, %v958
        %v978 = vpack.c.bf16 %v961, %v960
        %v979 = vpack.c.bf16 %v963, %v962
        %v980 = vld [vmem:[%s3 + $0x10] sm:$0xf]
        %v981 = vld [vmem:[%s3 + $0x14] sm:$0xf]
        %v984 = vunpack.c.l.b16 %v980
        %v985 = vunpack.c.l.b16 %v981
        %v986 = vpack.c.b16 %v985, %v984
        %v989 = vsel %vm351, %v964, 0
        %v992 = vsel %vm351, %v965, 0
        %v995 = vsel %vm351, %v966, 0
        %v998 = vsel %vm351, %v967, 0
        %v1001 = vsel %vm351, %v968, 0
        %v1004 = vsel %vm351, %v969, 0
        %v1007 = vsel %vm351, %v970, 0
        %v1010 = vsel %vm351, %v971, 0
        %v1013 = vsel %vm351, %v972, 0
        %v1016 = vsel %vm351, %v973, 0
        %v1019 = vsel %vm351, %v974, 0
        %v1022 = vsel %vm351, %v975, 0
        %v1025 = vsel %vm351, %v976, 0
        %v1028 = vsel %vm351, %v977, 0
        %v1031 = vsel %vm351, %v978, 0
        %v1034 = vsel %vm351, %v979, 0
        %1036 = vmatprep.subr.bf16.mxu0 0
        %1037 = vmatpush1.bf16.msra.mxu0 %v986
        %1038 = vmatprep.subr.bf16.mxu0 0
        %1039 = vmatpush1.bf16.msra.mxu0 0
        %1040 = vmatprep.subr.bf16.mxu0 0
        %1041 = vmatpush1.bf16.msra.mxu0 0
        %1042 = vmatprep.subr.bf16.mxu0 0
        %1043 = vmatpush1.bf16.msra.mxu0 0
        %1044 = vmatprep.subr.bf16.mxu0 0
        %1045 = vmatpush1.bf16.msra.mxu0 0
        %1046 = vmatprep.subr.bf16.mxu0 0
        %1047 = vmatpush1.bf16.msra.mxu0 0
        %1048 = vmatprep.subr.bf16.mxu0 0
        %1049 = vmatpush1.bf16.msra.mxu0 0
        %1050 = vmatprep.subr.bf16.mxu0 0
        %1051 = vmatpush1.bf16.msra.mxu0 0
        %1052 = vmatprep.subr.bf16.mxu0 0
        %1053 = vmatpush1.bf16.msra.mxu0 0
        %1054 = vmatprep.subr.bf16.mxu0 0
        %1055 = vmatpush1.bf16.msra.mxu0 0
        %1056 = vmatprep.subr.bf16.mxu0 0
        %1057 = vmatpush1.bf16.msra.mxu0 0
        %1058 = vmatprep.subr.bf16.mxu0 0
        %1059 = vmatpush1.bf16.msra.mxu0 0
        %1060 = vmatprep.subr.bf16.mxu0 0
        %1061 = vmatpush1.bf16.msra.mxu0 0
        %1062 = vmatprep.subr.bf16.mxu0 0
        %1063 = vmatpush1.bf16.msra.mxu0 0
        %1064 = vmatprep.subr.bf16.mxu0 0
        %1065 = vmatpush1.bf16.msra.mxu0 0
        %1066 = vmatprep.subr.bf16.mxu0 0
        %1067 = vmatpush1.bf16.msra.mxu0 0
        %1068 = vmatprep.mubr.bf16.mxu0 0
        %1069 = vmatmul.mubr.bf16.gmra.mrb[0].mxu0 %v989
        %v1070 = vpop.f32.mrb[0].mxu0
        %v1071 = vadd.f32 0.0, %v1070
        %v1072 = vpop.f32.mrb[0].mxu0
        %v1073 = vpop.f32.mrb[0].mxu0
        %v1074 = vadd.f32 0.0, %v1073
        %v1075 = vpop.f32.mrb[0].mxu0
        %1076 = vmatprep.mubr.bf16.mxu0 0
        %1077 = vmatmul.mubr.bf16.gmra.mrb[0].mxu0 %v992
        %v1078 = vpop.f32.mrb[0].mxu0
        %v1079 = vadd.f32 0.0, %v1078
        %v1080 = vpop.f32.mrb[0].mxu0
        %v1081 = vpop.f32.mrb[0].mxu0
        %v1082 = vadd.f32 0.0, %v1081
        %v1083 = vpop.f32.mrb[0].mxu0
        %1084 = vmatprep.mubr.bf16.mxu0 0
        %1085 = vmatmul.mubr.bf16.gmra.mrb[0].mxu0 %v995
        %v1086 = vpop.f32.mrb[0].mxu0
        %v1087 = vadd.f32 0.0, %v1086
        %v1088 = vpop.f32.mrb[0].mxu0
        %v1089 = vpop.f32.mrb[0].mxu0
        %v1090 = vadd.f32 0.0, %v1089
        %v1091 = vpop.f32.mrb[0].mxu0
        %1092 = vmatprep.mubr.bf16.mxu0 0
        %1093 = vmatmul.mubr.bf16.gmra.mrb[0].mxu0 %v998
        %v1094 = vpop.f32.mrb[0].mxu0
        %v1095 = vadd.f32 0.0, %v1094
        %v1096 = vpop.f32.mrb[0].mxu0
        %v1097 = vpop.f32.mrb[0].mxu0
        %v1098 = vadd.f32 0.0, %v1097
        %v1099 = vpop.f32.mrb[0].mxu0
        %1100 = vmatprep.mubr.bf16.mxu0 0
        %1101 = vmatmul.mubr.bf16.gmra.mrb[0].mxu0 %v1001
        %v1102 = vpop.f32.mrb[0].mxu0
        %v1103 = vadd.f32 0.0, %v1102
        %v1104 = vpop.f32.mrb[0].mxu0
        %v1105 = vpop.f32.mrb[0].mxu0
        %v1106 = vadd.f32 0.0, %v1105
        %v1107 = vpop.f32.mrb[0].mxu0
        %1108 = vmatprep.mubr.bf16.mxu0 0
        %1109 = vmatmul.mubr.bf16.gmra.mrb[0].mxu0 %v1004
        %v1110 = vpop.f32.mrb[0].mxu0
        %v1111 = vadd.f32 0.0, %v1110
        %v1112 = vpop.f32.mrb[0].mxu0
        %v1113 = vpop.f32.mrb[0].mxu0
        %v1114 = vadd.f32 0.0, %v1113
        %v1115 = vpop.f32.mrb[0].mxu0
        %1116 = vmatprep.mubr.bf16.mxu0 0
        %1117 = vmatmul.mubr.bf16.gmra.mrb[0].mxu0 %v1007
        %v1118 = vpop.f32.mrb[0].mxu0
        %v1119 = vadd.f32 0.0, %v1118
        %v1120 = vpop.f32.mrb[0].mxu0
        %v1121 = vpop.f32.mrb[0].mxu0
        %v1122 = vadd.f32 0.0, %v1121
        %v1123 = vpop.f32.mrb[0].mxu0
        %1124 = vmatprep.mubr.bf16.mxu0 0
        %1125 = vmatmul.mubr.bf16.gmra.mrb[0].mxu0 %v1010
        %v1126 = vpop.f32.mrb[0].mxu0
        %v1127 = vadd.f32 0.0, %v1126
        %v1128 = vpop.f32.mrb[0].mxu0
        %v1129 = vpop.f32.mrb[0].mxu0
        %v1130 = vadd.f32 0.0, %v1129
        %v1131 = vpop.f32.mrb[0].mxu0
        %1132 = vmatprep.mubr.bf16.mxu0 0
        %1133 = vmatmul.mubr.bf16.gmra.mrb[0].mxu0 %v1013
        %v1134 = vpop.f32.mrb[0].mxu0
        %v1135 = vadd.f32 0.0, %v1134
        %v1136 = vpop.f32.mrb[0].mxu0
        %v1137 = vpop.f32.mrb[0].mxu0
        %v1138 = vadd.f32 0.0, %v1137
        %v1139 = vpop.f32.mrb[0].mxu0
        %1140 = vmatprep.mubr.bf16.mxu0 0
        %1141 = vmatmul.mubr.bf16.gmra.mrb[0].mxu0 %v1016
        %v1142 = vpop.f32.mrb[0].mxu0
        %v1143 = vadd.f32 0.0, %v1142
        %v1144 = vpop.f32.mrb[0].mxu0
        %v1145 = vpop.f32.mrb[0].mxu0
        %v1146 = vadd.f32 0.0, %v1145
        %v1147 = vpop.f32.mrb[0].mxu0
        %1148 = vmatprep.mubr.bf16.mxu0 0
        %1149 = vmatmul.mubr.bf16.gmra.mrb[0].mxu0 %v1019
        %v1150 = vpop.f32.mrb[0].mxu0
        %v1151 = vadd.f32 0.0, %v1150
        %v1152 = vpop.f32.mrb[0].mxu0
        %v1153 = vpop.f32.mrb[0].mxu0
        %v1154 = vadd.f32 0.0, %v1153
        %v1155 = vpop.f32.mrb[0].mxu0
        %1156 = vmatprep.mubr.bf16.mxu0 0
        %1157 = vmatmul.mubr.bf16.gmra.mrb[0].mxu0 %v1022
        %v1158 = vpop.f32.mrb[0].mxu0
        %v1159 = vadd.f32 0.0, %v1158
        %v1160 = vpop.f32.mrb[0].mxu0
        %v1161 = vpop.f32.mrb[0].mxu0
        %v1162 = vadd.f32 0.0, %v1161
        %v1163 = vpop.f32.mrb[0].mxu0
        %1164 = vmatprep.mubr.bf16.mxu0 0
        %1165 = vmatmul.mubr.bf16.gmra.mrb[0].mxu0 %v1025
        %v1166 = vpop.f32.mrb[0].mxu0
        %v1167 = vadd.f32 0.0, %v1166
        %v1168 = vpop.f32.mrb[0].mxu0
        %v1169 = vpop.f32.mrb[0].mxu0
        %v1170 = vadd.f32 0.0, %v1169
        %v1171 = vpop.f32.mrb[0].mxu0
        %1172 = vmatprep.mubr.bf16.mxu0 0
        %1173 = vmatmul.mubr.bf16.gmra.mrb[0].mxu0 %v1028
        %v1174 = vpop.f32.mrb[0].mxu0
        %v1175 = vadd.f32 0.0, %v1174
        %v1176 = vpop.f32.mrb[0].mxu0
        %v1177 = vpop.f32.mrb[0].mxu0
        %v1178 = vadd.f32 0.0, %v1177
        %v1179 = vpop.f32.mrb[0].mxu0
        %1180 = vmatprep.mubr.bf16.mxu0 0
        %1181 = vmatmul.mubr.bf16.gmra.mrb[0].mxu0 %v1031
        %v1182 = vpop.f32.mrb[0].mxu0
        %v1183 = vadd.f32 0.0, %v1182
        %v1184 = vpop.f32.mrb[0].mxu0
        %v1185 = vpop.f32.mrb[0].mxu0
        %v1186 = vadd.f32 0.0, %v1185
        %v1187 = vpop.f32.mrb[0].mxu0
        %1188 = vmatprep.mubr.bf16.mxu0 0
        %1189 = vmatmul.mubr.bf16.gmra.mrb[0].mxu0 %v1034
        %v1190 = vpop.f32.mrb[0].mxu0
        %v1191 = vadd.f32 0.0, %v1190
        %v1192 = vpop.f32.mrb[0].mxu0
        %v1193 = vpop.f32.mrb[0].mxu0
        %v1194 = vadd.f32 0.0, %v1193
        %v1195 = vpop.f32.mrb[0].mxu0
        %1196 = vdwg.mxu0
        %v1197 = vadd.f32 %v806, %v1071
        %v1198 = vadd.f32 %v809, %v1074
        %v1199 = vadd.f32 %v814, %v1079
        %v1200 = vadd.f32 %v817, %v1082
        %v1201 = vadd.f32 %v822, %v1087
        %v1202 = vadd.f32 %v825, %v1090
        %v1203 = vadd.f32 %v830, %v1095
        %v1204 = vadd.f32 %v833, %v1098
        %v1205 = vadd.f32 %v838, %v1103
        %v1206 = vadd.f32 %v841, %v1106
        %v1207 = vadd.f32 %v846, %v1111
        %v1208 = vadd.f32 %v849, %v1114
        %v1209 = vadd.f32 %v854, %v1119
        %v1210 = vadd.f32 %v857, %v1122
        %v1211 = vadd.f32 %v862, %v1127
        %v1212 = vadd.f32 %v865, %v1130
        %v1213 = vadd.f32 %v870, %v1135
        %v1214 = vadd.f32 %v873, %v1138
        %v1215 = vadd.f32 %v878, %v1143
        %v1216 = vadd.f32 %v881, %v1146
        %v1217 = vadd.f32 %v886, %v1151
        %v1218 = vadd.f32 %v889, %v1154
        %v1219 = vadd.f32 %v894, %v1159
        %v1220 = vadd.f32 %v897, %v1162
        %v1221 = vadd.f32 %v902, %v1167
        %v1222 = vadd.f32 %v905, %v1170
        %v1223 = vadd.f32 %v910, %v1175
        %v1224 = vadd.f32 %v913, %v1178
        %v1225 = vadd.f32 %v918, %v1183
        %v1226 = vadd.f32 %v921, %v1186
        %v1227 = vadd.f32 %v926, %v1191
        %v1228 = vadd.f32 %v929, %v1194
        %v1229 = vld [vmem:[#allocation2 + $0x10] sm:$0xff]
        %v1230 = vld [vmem:[#allocation2 + $0x18] sm:$0xff]
        %v1231 = vld [vmem:[#allocation2 + $0x20] sm:$0xff]
        %v1232 = vld [vmem:[#allocation2 + $0x28] sm:$0xff]
        %v1233 = vld [vmem:[#allocation2 + $0x30] sm:$0xff]
        %v1234 = vld [vmem:[#allocation2 + $0x38] sm:$0xff]
        %v1235 = vld [vmem:[#allocation2 + $0x40] sm:$0xff]
        %v1236 = vld [vmem:[#allocation2 + $0x48] sm:$0xff]
        %v1237 = vld [vmem:[#allocation2 + $0x50] sm:$0xff]
        %v1238 = vld [vmem:[#allocation2 + $0x58] sm:$0xff]
        %v1239 = vld [vmem:[#allocation2 + $0x60] sm:$0xff]
        %v1240 = vld [vmem:[#allocation2 + $0x68] sm:$0xff]
        %v1241 = vld [vmem:[#allocation2 + $0x70] sm:$0xff]
        %v1242 = vld [vmem:[#allocation2 + $0x78] sm:$0xff]
        %v1243 = vld [vmem:[#allocation2 + $0x80] sm:$0xff]
        %v1244 = vld [vmem:[#allocation2 + $0x88] sm:$0xff]
        %v1245 = vld [vmem:[#allocation2 + $0x90] sm:$0xff]
        %v1246 = vld [vmem:[#allocation2 + $0x98] sm:$0xff]
        %v1247 = vld [vmem:[#allocation2 + $0xa0] sm:$0xff]
        %v1248 = vld [vmem:[#allocation2 + $0xa8] sm:$0xff]
        %v1249 = vld [vmem:[#allocation2 + $0xb0] sm:$0xff]
        %v1250 = vld [vmem:[#allocation2 + $0xb8] sm:$0xff]
        %v1251 = vld [vmem:[#allocation2 + $0xc0] sm:$0xff]
        %v1252 = vld [vmem:[#allocation2 + $0xc8] sm:$0xff]
        %v1253 = vld [vmem:[#allocation2 + $0xd0] sm:$0xff]
        %v1254 = vld [vmem:[#allocation2 + $0xd8] sm:$0xff]
        %v1255 = vld [vmem:[#allocation2 + $0xe0] sm:$0xff]
        %v1256 = vld [vmem:[#allocation2 + $0xe8] sm:$0xff]
        %v1257 = vld [vmem:[#allocation2 + $0xf0] sm:$0xff]
        %v1258 = vld [vmem:[#allocation2 + $0xf8] sm:$0xff]
        %v1259 = vld [vmem:[#allocation2 + $0x100] sm:$0xff]
        %v1260 = vld [vmem:[#allocation2 + $0x108] sm:$0xff]
        %v1261 = vpack.c.bf16 %v1230, %v1229
        %v1262 = vpack.c.bf16 %v1232, %v1231
        %v1263 = vpack.c.bf16 %v1234, %v1233
        %v1264 = vpack.c.bf16 %v1236, %v1235
        %v1265 = vpack.c.bf16 %v1238, %v1237
        %v1266 = vpack.c.bf16 %v1240, %v1239
        %v1267 = vpack.c.bf16 %v1242, %v1241
        %v1268 = vpack.c.bf16 %v1244, %v1243
        %v1269 = vpack.c.bf16 %v1246, %v1245
        %v1270 = vpack.c.bf16 %v1248, %v1247
        %v1271 = vpack.c.bf16 %v1250, %v1249
        %v1272 = vpack.c.bf16 %v1252, %v1251
        %v1273 = vpack.c.bf16 %v1254, %v1253
        %v1274 = vpack.c.bf16 %v1256, %v1255
        %v1275 = vpack.c.bf16 %v1258, %v1257
        %v1276 = vpack.c.bf16 %v1260, %v1259
        %v1277 = vld [vmem:[%s3 + $0x18] sm:$0xf]
        %v1278 = vld [vmem:[%s3 + $0x1c] sm:$0xf]
        %v1281 = vunpack.c.l.b16 %v1277
        %v1282 = vunpack.c.l.b16 %v1278
        %v1283 = vpack.c.b16 %v1282, %v1281
        %v1286 = vsel %vm351, %v1261, 0
        %v1289 = vsel %vm351, %v1262, 0
        %v1292 = vsel %vm351, %v1263, 0
        %v1295 = vsel %vm351, %v1264, 0
        %v1298 = vsel %vm351, %v1265, 0
        %v1301 = vsel %vm351, %v1266, 0
        %v1304 = vsel %vm351, %v1267, 0
        %v1307 = vsel %vm351, %v1268, 0
        %v1310 = vsel %vm351, %v1269, 0
        %v1313 = vsel %vm351, %v1270, 0
        %v1316 = vsel %vm351, %v1271, 0
        %v1319 = vsel %vm351, %v1272, 0
        %v1322 = vsel %vm351, %v1273, 0
        %v1325 = vsel %vm351, %v1274, 0
        %v1328 = vsel %vm351, %v1275, 0
        %v1331 = vsel %vm351, %v1276, 0
        %1333 = vmatprep.subr.bf16.mxu0 0
        %1334 = vmatpush1.bf16.msra.mxu0 %v1283
        %1335 = vmatprep.subr.bf16.mxu0 0
        %1336 = vmatpush1.bf16.msra.mxu0 0
        %1337 = vmatprep.subr.bf16.mxu0 0
        %1338 = vmatpush1.bf16.msra.mxu0 0
        %1339 = vmatprep.subr.bf16.mxu0 0
        %1340 = vmatpush1.bf16.msra.mxu0 0
        %1341 = vmatprep.subr.bf16.mxu0 0
        %1342 = vmatpush1.bf16.msra.mxu0 0
        %1343 = vmatprep.subr.bf16.mxu0 0
        %1344 = vmatpush1.bf16.msra.mxu0 0
        %1345 = vmatprep.subr.bf16.mxu0 0
        %1346 = vmatpush1.bf16.msra.mxu0 0
        %1347 = vmatprep.subr.bf16.mxu0 0
        %1348 = vmatpush1.bf16.msra.mxu0 0
        %1349 = vmatprep.subr.bf16.mxu0 0
        %1350 = vmatpush1.bf16.msra.mxu0 0
        %1351 = vmatprep.subr.bf16.mxu0 0
        %1352 = vmatpush1.bf16.msra.mxu0 0
        %1353 = vmatprep.subr.bf16.mxu0 0
        %1354 = vmatpush1.bf16.msra.mxu0 0
        %1355 = vmatprep.subr.bf16.mxu0 0
        %1356 = vmatpush1.bf16.msra.mxu0 0
        %1357 = vmatprep.subr.bf16.mxu0 0
        %1358 = vmatpush1.bf16.msra.mxu0 0
        %1359 = vmatprep.subr.bf16.mxu0 0
        %1360 = vmatpush1.bf16.msra.mxu0 0
        %1361 = vmatprep.subr.bf16.mxu0 0
        %1362 = vmatpush1.bf16.msra.mxu0 0
        %1363 = vmatprep.subr.bf16.mxu0 0
        %1364 = vmatpush1.bf16.msra.mxu0 0
        %1365 = vmatprep.mubr.bf16.mxu0 0
        %1366 = vmatmul.mubr.bf16.gmra.mrb[0].mxu0 %v1286
        %v1367 = vpop.f32.mrb[0].mxu0
        %v1368 = vadd.f32 0.0, %v1367
        %v1369 = vpop.f32.mrb[0].mxu0
        %v1370 = vpop.f32.mrb[0].mxu0
        %v1371 = vadd.f32 0.0, %v1370
        %v1372 = vpop.f32.mrb[0].mxu0
        %1373 = vmatprep.mubr.bf16.mxu0 0
        %1374 = vmatmul.mubr.bf16.gmra.mrb[0].mxu0 %v1289
        %v1375 = vpop.f32.mrb[0].mxu0
        %v1376 = vadd.f32 0.0, %v1375
        %v1377 = vpop.f32.mrb[0].mxu0
        %v1378 = vpop.f32.mrb[0].mxu0
        %v1379 = vadd.f32 0.0, %v1378
        %v1380 = vpop.f32.mrb[0].mxu0
        %1381 = vmatprep.mubr.bf16.mxu0 0
        %1382 = vmatmul.mubr.bf16.gmra.mrb[0].mxu0 %v1292
        %v1383 = vpop.f32.mrb[0].mxu0
        %v1384 = vadd.f32 0.0, %v1383
        %v1385 = vpop.f32.mrb[0].mxu0
        %v1386 = vpop.f32.mrb[0].mxu0
        %v1387 = vadd.f32 0.0, %v1386
        %v1388 = vpop.f32.mrb[0].mxu0
        %1389 = vmatprep.mubr.bf16.mxu0 0
        %1390 = vmatmul.mubr.bf16.gmra.mrb[0].mxu0 %v1295
        %v1391 = vpop.f32.mrb[0].mxu0
        %v1392 = vadd.f32 0.0, %v1391
        %v1393 = vpop.f32.mrb[0].mxu0
        %v1394 = vpop.f32.mrb[0].mxu0
        %v1395 = vadd.f32 0.0, %v1394
        %v1396 = vpop.f32.mrb[0].mxu0
        %1397 = vmatprep.mubr.bf16.mxu0 0
        %1398 = vmatmul.mubr.bf16.gmra.mrb[0].mxu0 %v1298
        %v1399 = vpop.f32.mrb[0].mxu0
        %v1400 = vadd.f32 0.0, %v1399
        %v1401 = vpop.f32.mrb[0].mxu0
        %v1402 = vpop.f32.mrb[0].mxu0
        %v1403 = vadd.f32 0.0, %v1402
        %v1404 = vpop.f32.mrb[0].mxu0
        %1405 = vmatprep.mubr.bf16.mxu0 0
        %1406 = vmatmul.mubr.bf16.gmra.mrb[0].mxu0 %v1301
        %v1407 = vpop.f32.mrb[0].mxu0
        %v1408 = vadd.f32 0.0, %v1407
        %v1409 = vpop.f32.mrb[0].mxu0
        %v1410 = vpop.f32.mrb[0].mxu0
        %v1411 = vadd.f32 0.0, %v1410
        %v1412 = vpop.f32.mrb[0].mxu0
        %1413 = vmatprep.mubr.bf16.mxu0 0
        %1414 = vmatmul.mubr.bf16.gmra.mrb[0].mxu0 %v1304
        %v1415 = vpop.f32.mrb[0].mxu0
        %v1416 = vadd.f32 0.0, %v1415
        %v1417 = vpop.f32.mrb[0].mxu0
        %v1418 = vpop.f32.mrb[0].mxu0
        %v1419 = vadd.f32 0.0, %v1418
        %v1420 = vpop.f32.mrb[0].mxu0
        %1421 = vmatprep.mubr.bf16.mxu0 0
        %1422 = vmatmul.mubr.bf16.gmra.mrb[0].mxu0 %v1307
        %v1423 = vpop.f32.mrb[0].mxu0
        %v1424 = vadd.f32 0.0, %v1423
        %v1425 = vpop.f32.mrb[0].mxu0
        %v1426 = vpop.f32.mrb[0].mxu0
        %v1427 = vadd.f32 0.0, %v1426
        %v1428 = vpop.f32.mrb[0].mxu0
        %1429 = vmatprep.mubr.bf16.mxu0 0
        %1430 = vmatmul.mubr.bf16.gmra.mrb[0].mxu0 %v1310
        %v1431 = vpop.f32.mrb[0].mxu0
        %v1432 = vadd.f32 0.0, %v1431
        %v1433 = vpop.f32.mrb[0].mxu0
        %v1434 = vpop.f32.mrb[0].mxu0
        %v1435 = vadd.f32 0.0, %v1434
        %v1436 = vpop.f32.mrb[0].mxu0
        %1437 = vmatprep.mubr.bf16.mxu0 0
        %1438 = vmatmul.mubr.bf16.gmra.mrb[0].mxu0 %v1313
        %v1439 = vpop.f32.mrb[0].mxu0
        %v1440 = vadd.f32 0.0, %v1439
        %v1441 = vpop.f32.mrb[0].mxu0
        %v1442 = vpop.f32.mrb[0].mxu0
        %v1443 = vadd.f32 0.0, %v1442
        %v1444 = vpop.f32.mrb[0].mxu0
        %1445 = vmatprep.mubr.bf16.mxu0 0
        %1446 = vmatmul.mubr.bf16.gmra.mrb[0].mxu0 %v1316
        %v1447 = vpop.f32.mrb[0].mxu0
        %v1448 = vadd.f32 0.0, %v1447
        %v1449 = vpop.f32.mrb[0].mxu0
        %v1450 = vpop.f32.mrb[0].mxu0
        %v1451 = vadd.f32 0.0, %v1450
        %v1452 = vpop.f32.mrb[0].mxu0
        %1453 = vmatprep.mubr.bf16.mxu0 0
        %1454 = vmatmul.mubr.bf16.gmra.mrb[0].mxu0 %v1319
        %v1455 = vpop.f32.mrb[0].mxu0
        %v1456 = vadd.f32 0.0, %v1455
        %v1457 = vpop.f32.mrb[0].mxu0
        %v1458 = vpop.f32.mrb[0].mxu0
        %v1459 = vadd.f32 0.0, %v1458
        %v1460 = vpop.f32.mrb[0].mxu0
        %1461 = vmatprep.mubr.bf16.mxu0 0
        %1462 = vmatmul.mubr.bf16.gmra.mrb[0].mxu0 %v1322
        %v1463 = vpop.f32.mrb[0].mxu0
        %v1464 = vadd.f32 0.0, %v1463
        %v1465 = vpop.f32.mrb[0].mxu0
        %v1466 = vpop.f32.mrb[0].mxu0
        %v1467 = vadd.f32 0.0, %v1466
        %v1468 = vpop.f32.mrb[0].mxu0
        %1469 = vmatprep.mubr.bf16.mxu0 0
        %1470 = vmatmul.mubr.bf16.gmra.mrb[0].mxu0 %v1325
        %v1471 = vpop.f32.mrb[0].mxu0
        %v1472 = vadd.f32 0.0, %v1471
        %v1473 = vpop.f32.mrb[0].mxu0
        %v1474 = vpop.f32.mrb[0].mxu0
        %v1475 = vadd.f32 0.0, %v1474
        %v1476 = vpop.f32.mrb[0].mxu0
        %1477 = vmatprep.mubr.bf16.mxu0 0
        %1478 = vmatmul.mubr.bf16.gmra.mrb[0].mxu0 %v1328
        %v1479 = vpop.f32.mrb[0].mxu0
        %v1480 = vadd.f32 0.0, %v1479
        %v1481 = vpop.f32.mrb[0].mxu0
        %v1482 = vpop.f32.mrb[0].mxu0
        %v1483 = vadd.f32 0.0, %v1482
        %v1484 = vpop.f32.mrb[0].mxu0
        %1485 = vmatprep.mubr.bf16.mxu0 0
        %1486 = vmatmul.mubr.bf16.gmra.mrb[0].mxu0 %v1331
        %v1487 = vpop.f32.mrb[0].mxu0
        %v1488 = vadd.f32 0.0, %v1487
        %v1489 = vpop.f32.mrb[0].mxu0
        %v1490 = vpop.f32.mrb[0].mxu0
        %v1491 = vadd.f32 0.0, %v1490
        %v1492 = vpop.f32.mrb[0].mxu0
        %1493 = vdwg.mxu0
        %v1494 = vadd.f32 %v1197, %v1368
        %v1495 = vadd.f32 %v1198, %v1371
        %v1496 = vadd.f32 %v1199, %v1376
        %v1497 = vadd.f32 %v1200, %v1379
        %v1498 = vadd.f32 %v1201, %v1384
        %v1499 = vadd.f32 %v1202, %v1387
        %v1500 = vadd.f32 %v1203, %v1392
        %v1501 = vadd.f32 %v1204, %v1395
        %v1502 = vadd.f32 %v1205, %v1400
        %v1503 = vadd.f32 %v1206, %v1403
        %v1504 = vadd.f32 %v1207, %v1408
        %v1505 = vadd.f32 %v1208, %v1411
        %v1506 = vadd.f32 %v1209, %v1416
        %v1507 = vadd.f32 %v1210, %v1419
        %v1508 = vadd.f32 %v1211, %v1424
        %v1509 = vadd.f32 %v1212, %v1427
        %v1510 = vadd.f32 %v1213, %v1432
        %v1511 = vadd.f32 %v1214, %v1435
        %v1512 = vadd.f32 %v1215, %v1440
        %v1513 = vadd.f32 %v1216, %v1443
        %v1514 = vadd.f32 %v1217, %v1448
        %v1515 = vadd.f32 %v1218, %v1451
        %v1516 = vadd.f32 %v1219, %v1456
        %v1517 = vadd.f32 %v1220, %v1459
        %v1518 = vadd.f32 %v1221, %v1464
        %v1519 = vadd.f32 %v1222, %v1467
        %v1520 = vadd.f32 %v1223, %v1472
        %v1521 = vadd.f32 %v1224, %v1475
        %v1522 = vadd.f32 %v1225, %v1480
        %v1523 = vadd.f32 %v1226, %v1483
        %v1524 = vadd.f32 %v1227, %v1488
        %v1525 = vadd.f32 %v1228, %v1491
        %v1526 = vld [vmem:[#allocation2 + $0x11] sm:$0xff]
        %v1527 = vld [vmem:[#allocation2 + $0x19] sm:$0xff]
        %v1528 = vld [vmem:[#allocation2 + $0x21] sm:$0xff]
        %v1529 = vld [vmem:[#allocation2 + $0x29] sm:$0xff]
        %v1530 = vld [vmem:[#allocation2 + $0x31] sm:$0xff]
        %v1531 = vld [vmem:[#allocation2 + $0x39] sm:$0xff]
        %v1532 = vld [vmem:[#allocation2 + $0x41] sm:$0xff]
        %v1533 = vld [vmem:[#allocation2 + $0x49] sm:$0xff]
        %v1534 = vld [vmem:[#allocation2 + $0x51] sm:$0xff]
        %v1535 = vld [vmem:[#allocation2 + $0x59] sm:$0xff]
        %v1536 = vld [vmem:[#allocation2 + $0x61] sm:$0xff]
        %v1537 = vld [vmem:[#allocation2 + $0x69] sm:$0xff]
        %v1538 = vld [vmem:[#allocation2 + $0x71] sm:$0xff]
        %v1539 = vld [vmem:[#allocation2 + $0x79] sm:$0xff]
        %v1540 = vld [vmem:[#allocation2 + $0x81] sm:$0xff]
        %v1541 = vld [vmem:[#allocation2 + $0x89] sm:$0xff]
        %v1542 = vld [vmem:[#allocation2 + $0x91] sm:$0xff]
        %v1543 = vld [vmem:[#allocation2 + $0x99] sm:$0xff]
        %v1544 = vld [vmem:[#allocation2 + $0xa1] sm:$0xff]
        %v1545 = vld [vmem:[#allocation2 + $0xa9] sm:$0xff]
        %v1546 = vld [vmem:[#allocation2 + $0xb1] sm:$0xff]
        %v1547 = vld [vmem:[#allocation2 + $0xb9] sm:$0xff]
        %v1548 = vld [vmem:[#allocation2 + $0xc1] sm:$0xff]
        %v1549 = vld [vmem:[#allocation2 + $0xc9] sm:$0xff]
        %v1550 = vld [vmem:[#allocation2 + $0xd1] sm:$0xff]
        %v1551 = vld [vmem:[#allocation2 + $0xd9] sm:$0xff]
        %v1552 = vld [vmem:[#allocation2 + $0xe1] sm:$0xff]
        %v1553 = vld [vmem:[#allocation2 + $0xe9] sm:$0xff]
        %v1554 = vld [vmem:[#allocation2 + $0xf1] sm:$0xff]
        %v1555 = vld [vmem:[#allocation2 + $0xf9] sm:$0xff]
        %v1556 = vld [vmem:[#allocation2 + $0x101] sm:$0xff]
        %v1557 = vld [vmem:[#allocation2 + $0x109] sm:$0xff]
        %v1558 = vpack.c.bf16 %v1527, %v1526
        %v1559 = vpack.c.bf16 %v1529, %v1528
        %v1560 = vpack.c.bf16 %v1531, %v1530
        %v1561 = vpack.c.bf16 %v1533, %v1532
        %v1562 = vpack.c.bf16 %v1535, %v1534
        %v1563 = vpack.c.bf16 %v1537, %v1536
        %v1564 = vpack.c.bf16 %v1539, %v1538
        %v1565 = vpack.c.bf16 %v1541, %v1540
        %v1566 = vpack.c.bf16 %v1543, %v1542
        %v1567 = vpack.c.bf16 %v1545, %v1544
        %v1568 = vpack.c.bf16 %v1547, %v1546
        %v1569 = vpack.c.bf16 %v1549, %v1548
        %v1570 = vpack.c.bf16 %v1551, %v1550
        %v1571 = vpack.c.bf16 %v1553, %v1552
        %v1572 = vpack.c.bf16 %v1555, %v1554
        %v1573 = vpack.c.bf16 %v1557, %v1556
        %v1574 = vld [vmem:[%s3 + $0x20] sm:$0xf]
        %v1575 = vld [vmem:[%s3 + $0x24] sm:$0xf]
        %v1578 = vunpack.c.l.b16 %v1574
        %v1579 = vunpack.c.l.b16 %v1575
        %v1580 = vpack.c.b16 %v1579, %v1578
        %v1583 = vsel %vm351, %v1558, 0
        %v1586 = vsel %vm351, %v1559, 0
        %v1589 = vsel %vm351, %v1560, 0
        %v1592 = vsel %vm351, %v1561, 0
        %v1595 = vsel %vm351, %v1562, 0
        %v1598 = vsel %vm351, %v1563, 0
        %v1601 = vsel %vm351, %v1564, 0
        %v1604 = vsel %vm351, %v1565, 0
        %v1607 = vsel %vm351, %v1566, 0
        %v1610 = vsel %vm351, %v1567, 0
        %v1613 = vsel %vm351, %v1568, 0
        %v1616 = vsel %vm351, %v1569, 0
        %v1619 = vsel %vm351, %v1570, 0
        %v1622 = vsel %vm351, %v1571, 0
        %v1625 = vsel %vm351, %v1572, 0
        %v1628 = vsel %vm351, %v1573, 0
        %1630 = vmatprep.subr.bf16.mxu0 0
        %1631 = vmatpush1.bf16.msra.mxu0 %v1580
        %1632 = vmatprep.subr.bf16.mxu0 0
        %1633 = vmatpush1.bf16.msra.mxu0 0
        %1634 = vmatprep.subr.bf16.mxu0 0
        %1635 = vmatpush1.bf16.msra.mxu0 0
        %1636 = vmatprep.subr.bf16.mxu0 0
        %1637 = vmatpush1.bf16.msra.mxu0 0
        %1638 = vmatprep.subr.bf16.mxu0 0
        %1639 = vmatpush1.bf16.msra.mxu0 0
        %1640 = vmatprep.subr.bf16.mxu0 0
        %1641 = vmatpush1.bf16.msra.mxu0 0
        %1642 = vmatprep.subr.bf16.mxu0 0
        %1643 = vmatpush1.bf16.msra.mxu0 0
        %1644 = vmatprep.subr.bf16.mxu0 0
        %1645 = vmatpush1.bf16.msra.mxu0 0
        %1646 = vmatprep.subr.bf16.mxu0 0
        %1647 = vmatpush1.bf16.msra.mxu0 0
        %1648 = vmatprep.subr.bf16.mxu0 0
        %1649 = vmatpush1.bf16.msra.mxu0 0
        %1650 = vmatprep.subr.bf16.mxu0 0
        %1651 = vmatpush1.bf16.msra.mxu0 0
        %1652 = vmatprep.subr.bf16.mxu0 0
        %1653 = vmatpush1.bf16.msra.mxu0 0
        %1654 = vmatprep.subr.bf16.mxu0 0
        %1655 = vmatpush1.bf16.msra.mxu0 0
        %1656 = vmatprep.subr.bf16.mxu0 0
        %1657 = vmatpush1.bf16.msra.mxu0 0
        %1658 = vmatprep.subr.bf16.mxu0 0
        %1659 = vmatpush1.bf16.msra.mxu0 0
        %1660 = vmatprep.subr.bf16.mxu0 0
        %1661 = vmatpush1.bf16.msra.mxu0 0
        %1662 = vmatprep.mubr.bf16.mxu0 0
        %1663 = vmatmul.mubr.bf16.gmra.mrb[0].mxu0 %v1583
        %v1664 = vpop.f32.mrb[0].mxu0
        %v1665 = vadd.f32 0.0, %v1664
        %v1666 = vpop.f32.mrb[0].mxu0
        %v1667 = vpop.f32.mrb[0].mxu0
        %v1668 = vadd.f32 0.0, %v1667
        %v1669 = vpop.f32.mrb[0].mxu0
        %1670 = vmatprep.mubr.bf16.mxu0 0
        %1671 = vmatmul.mubr.bf16.gmra.mrb[0].mxu0 %v1586
        %v1672 = vpop.f32.mrb[0].mxu0
        %v1673 = vadd.f32 0.0, %v1672
        %v1674 = vpop.f32.mrb[0].mxu0
        %v1675 = vpop.f32.mrb[0].mxu0
        %v1676 = vadd.f32 0.0, %v1675
        %v1677 = vpop.f32.mrb[0].mxu0
        %1678 = vmatprep.mubr.bf16.mxu0 0
        %1679 = vmatmul.mubr.bf16.gmra.mrb[0].mxu0 %v1589
        %v1680 = vpop.f32.mrb[0].mxu0
        %v1681 = vadd.f32 0.0, %v1680
        %v1682 = vpop.f32.mrb[0].mxu0
        %v1683 = vpop.f32.mrb[0].mxu0
        %v1684 = vadd.f32 0.0, %v1683
        %v1685 = vpop.f32.mrb[0].mxu0
        %1686 = vmatprep.mubr.bf16.mxu0 0
        %1687 = vmatmul.mubr.bf16.gmra.mrb[0].mxu0 %v1592
        %v1688 = vpop.f32.mrb[0].mxu0
        %v1689 = vadd.f32 0.0, %v1688
        %v1690 = vpop.f32.mrb[0].mxu0
        %v1691 = vpop.f32.mrb[0].mxu0
        %v1692 = vadd.f32 0.0, %v1691
        %v1693 = vpop.f32.mrb[0].mxu0
        %1694 = vmatprep.mubr.bf16.mxu0 0
        %1695 = vmatmul.mubr.bf16.gmra.mrb[0].mxu0 %v1595
        %v1696 = vpop.f32.mrb[0].mxu0
        %v1697 = vadd.f32 0.0, %v1696
        %v1698 = vpop.f32.mrb[0].mxu0
        %v1699 = vpop.f32.mrb[0].mxu0
        %v1700 = vadd.f32 0.0, %v1699
        %v1701 = vpop.f32.mrb[0].mxu0
        %1702 = vmatprep.mubr.bf16.mxu0 0
        %1703 = vmatmul.mubr.bf16.gmra.mrb[0].mxu0 %v1598
        %v1704 = vpop.f32.mrb[0].mxu0
        %v1705 = vadd.f32 0.0, %v1704
        %v1706 = vpop.f32.mrb[0].mxu0
        %v1707 = vpop.f32.mrb[0].mxu0
        %v1708 = vadd.f32 0.0, %v1707
        %v1709 = vpop.f32.mrb[0].mxu0
        %1710 = vmatprep.mubr.bf16.mxu0 0
        %1711 = vmatmul.mubr.bf16.gmra.mrb[0].mxu0 %v1601
        %v1712 = vpop.f32.mrb[0].mxu0
        %v1713 = vadd.f32 0.0, %v1712
        %v1714 = vpop.f32.mrb[0].mxu0
        %v1715 = vpop.f32.mrb[0].mxu0
        %v1716 = vadd.f32 0.0, %v1715
        %v1717 = vpop.f32.mrb[0].mxu0
        %1718 = vmatprep.mubr.bf16.mxu0 0
        %1719 = vmatmul.mubr.bf16.gmra.mrb[0].mxu0 %v1604
        %v1720 = vpop.f32.mrb[0].mxu0
        %v1721 = vadd.f32 0.0, %v1720
        %v1722 = vpop.f32.mrb[0].mxu0
        %v1723 = vpop.f32.mrb[0].mxu0
        %v1724 = vadd.f32 0.0, %v1723
        %v1725 = vpop.f32.mrb[0].mxu0
        %1726 = vmatprep.mubr.bf16.mxu0 0
        %1727 = vmatmul.mubr.bf16.gmra.mrb[0].mxu0 %v1607
        %v1728 = vpop.f32.mrb[0].mxu0
        %v1729 = vadd.f32 0.0, %v1728
        %v1730 = vpop.f32.mrb[0].mxu0
        %v1731 = vpop.f32.mrb[0].mxu0
        %v1732 = vadd.f32 0.0, %v1731
        %v1733 = vpop.f32.mrb[0].mxu0
        %1734 = vmatprep.mubr.bf16.mxu0 0
        %1735 = vmatmul.mubr.bf16.gmra.mrb[0].mxu0 %v1610
        %v1736 = vpop.f32.mrb[0].mxu0
        %v1737 = vadd.f32 0.0, %v1736
        %v1738 = vpop.f32.mrb[0].mxu0
        %v1739 = vpop.f32.mrb[0].mxu0
        %v1740 = vadd.f32 0.0, %v1739
        %v1741 = vpop.f32.mrb[0].mxu0
        %1742 = vmatprep.mubr.bf16.mxu0 0
        %1743 = vmatmul.mubr.bf16.gmra.mrb[0].mxu0 %v1613
        %v1744 = vpop.f32.mrb[0].mxu0
        %v1745 = vadd.f32 0.0, %v1744
        %v1746 = vpop.f32.mrb[0].mxu0
        %v1747 = vpop.f32.mrb[0].mxu0
        %v1748 = vadd.f32 0.0, %v1747
        %v1749 = vpop.f32.mrb[0].mxu0
        %1750 = vmatprep.mubr.bf16.mxu0 0
        %1751 = vmatmul.mubr.bf16.gmra.mrb[0].mxu0 %v1616
        %v1752 = vpop.f32.mrb[0].mxu0
        %v1753 = vadd.f32 0.0, %v1752
        %v1754 = vpop.f32.mrb[0].mxu0
        %v1755 = vpop.f32.mrb[0].mxu0
        %v1756 = vadd.f32 0.0, %v1755
        %v1757 = vpop.f32.mrb[0].mxu0
        %1758 = vmatprep.mubr.bf16.mxu0 0
        %1759 = vmatmul.mubr.bf16.gmra.mrb[0].mxu0 %v1619
        %v1760 = vpop.f32.mrb[0].mxu0
        %v1761 = vadd.f32 0.0, %v1760
        %v1762 = vpop.f32.mrb[0].mxu0
        %v1763 = vpop.f32.mrb[0].mxu0
        %v1764 = vadd.f32 0.0, %v1763
        %v1765 = vpop.f32.mrb[0].mxu0
        %1766 = vmatprep.mubr.bf16.mxu0 0
        %1767 = vmatmul.mubr.bf16.gmra.mrb[0].mxu0 %v1622
        %v1768 = vpop.f32.mrb[0].mxu0
        %v1769 = vadd.f32 0.0, %v1768
        %v1770 = vpop.f32.mrb[0].mxu0
        %v1771 = vpop.f32.mrb[0].mxu0
        %v1772 = vadd.f32 0.0, %v1771
        %v1773 = vpop.f32.mrb[0].mxu0
        %1774 = vmatprep.mubr.bf16.mxu0 0
        %1775 = vmatmul.mubr.bf16.gmra.mrb[0].mxu0 %v1625
        %v1776 = vpop.f32.mrb[0].mxu0
        %v1777 = vadd.f32 0.0, %v1776
        %v1778 = vpop.f32.mrb[0].mxu0
        %v1779 = vpop.f32.mrb[0].mxu0
        %v1780 = vadd.f32 0.0, %v1779
        %v1781 = vpop.f32.mrb[0].mxu0
        %1782 = vmatprep.mubr.bf16.mxu0 0
        %1783 = vmatmul.mubr.bf16.gmra.mrb[0].mxu0 %v1628
        %v1784 = vpop.f32.mrb[0].mxu0
        %v1785 = vadd.f32 0.0, %v1784
        %v1786 = vpop.f32.mrb[0].mxu0
        %v1787 = vpop.f32.mrb[0].mxu0
        %v1788 = vadd.f32 0.0, %v1787
        %v1789 = vpop.f32.mrb[0].mxu0
        %1790 = vdwg.mxu0
        %v1791 = vadd.f32 %v1494, %v1665
        %v1792 = vadd.f32 %v1495, %v1668
        %v1793 = vadd.f32 %v1496, %v1673
        %v1794 = vadd.f32 %v1497, %v1676
        %v1795 = vadd.f32 %v1498, %v1681
        %v1796 = vadd.f32 %v1499, %v1684
        %v1797 = vadd.f32 %v1500, %v1689
        %v1798 = vadd.f32 %v1501, %v1692
        %v1799 = vadd.f32 %v1502, %v1697
        %v1800 = vadd.f32 %v1503, %v1700
        %v1801 = vadd.f32 %v1504, %v1705
        %v1802 = vadd.f32 %v1505, %v1708
        %v1803 = vadd.f32 %v1506, %v1713
        %v1804 = vadd.f32 %v1507, %v1716
        %v1805 = vadd.f32 %v1508, %v1721
        %v1806 = vadd.f32 %v1509, %v1724
        %v1807 = vadd.f32 %v1510, %v1729
        %v1808 = vadd.f32 %v1511, %v1732
        %v1809 = vadd.f32 %v1512, %v1737
        %v1810 = vadd.f32 %v1513, %v1740
        %v1811 = vadd.f32 %v1514, %v1745
        %v1812 = vadd.f32 %v1515, %v1748
        %v1813 = vadd.f32 %v1516, %v1753
        %v1814 = vadd.f32 %v1517, %v1756
        %v1815 = vadd.f32 %v1518, %v1761
        %v1816 = vadd.f32 %v1519, %v1764
        %v1817 = vadd.f32 %v1520, %v1769
        %v1818 = vadd.f32 %v1521, %v1772
        %v1819 = vadd.f32 %v1522, %v1777
        %v1820 = vadd.f32 %v1523, %v1780
        %v1821 = vadd.f32 %v1524, %v1785
        %v1822 = vadd.f32 %v1525, %v1788
        %v1823 = vld [vmem:[#allocation2 + $0x12] sm:$0xff]
        %v1824 = vld [vmem:[#allocation2 + $0x1a] sm:$0xff]
        %v1825 = vld [vmem:[#allocation2 + $0x22] sm:$0xff]
        %v1826 = vld [vmem:[#allocation2 + $0x2a] sm:$0xff]
        %v1827 = vld [vmem:[#allocation2 + $0x32] sm:$0xff]
        %v1828 = vld [vmem:[#allocation2 + $0x3a] sm:$0xff]
        %v1829 = vld [vmem:[#allocation2 + $0x42] sm:$0xff]
        %v1830 = vld [vmem:[#allocation2 + $0x4a] sm:$0xff]
        %v1831 = vld [vmem:[#allocation2 + $0x52] sm:$0xff]
        %v1832 = vld [vmem:[#allocation2 + $0x5a] sm:$0xff]
        %v1833 = vld [vmem:[#allocation2 + $0x62] sm:$0xff]
        %v1834 = vld [vmem:[#allocation2 + $0x6a] sm:$0xff]
        %v1835 = vld [vmem:[#allocation2 + $0x72] sm:$0xff]
        %v1836 = vld [vmem:[#allocation2 + $0x7a] sm:$0xff]
        %v1837 = vld [vmem:[#allocation2 + $0x82] sm:$0xff]
        %v1838 = vld [vmem:[#allocation2 + $0x8a] sm:$0xff]
        %v1839 = vld [vmem:[#allocation2 + $0x92] sm:$0xff]
        %v1840 = vld [vmem:[#allocation2 + $0x9a] sm:$0xff]
        %v1841 = vld [vmem:[#allocation2 + $0xa2] sm:$0xff]
        %v1842 = vld [vmem:[#allocation2 + $0xaa] sm:$0xff]
        %v1843 = vld [vmem:[#allocation2 + $0xb2] sm:$0xff]
        %v1844 = vld [vmem:[#allocation2 + $0xba] sm:$0xff]
        %v1845 = vld [vmem:[#allocation2 + $0xc2] sm:$0xff]
        %v1846 = vld [vmem:[#allocation2 + $0xca] sm:$0xff]
        %v1847 = vld [vmem:[#allocation2 + $0xd2] sm:$0xff]
        %v1848 = vld [vmem:[#allocation2 + $0xda] sm:$0xff]
        %v1849 = vld [vmem:[#allocation2 + $0xe2] sm:$0xff]
        %v1850 = vld [vmem:[#allocation2 + $0xea] sm:$0xff]
        %v1851 = vld [vmem:[#allocation2 + $0xf2] sm:$0xff]
        %v1852 = vld [vmem:[#allocation2 + $0xfa] sm:$0xff]
        %v1853 = vld [vmem:[#allocation2 + $0x102] sm:$0xff]
        %v1854 = vld [vmem:[#allocation2 + $0x10a] sm:$0xff]
        %v1855 = vpack.c.bf16 %v1824, %v1823
        %v1856 = vpack.c.bf16 %v1826, %v1825
        %v1857 = vpack.c.bf16 %v1828, %v1827
        %v1858 = vpack.c.bf16 %v1830, %v1829
        %v1859 = vpack.c.bf16 %v1832, %v1831
        %v1860 = vpack.c.bf16 %v1834, %v1833
        %v1861 = vpack.c.bf16 %v1836, %v1835
        %v1862 = vpack.c.bf16 %v1838, %v1837
        %v1863 = vpack.c.bf16 %v1840, %v1839
        %v1864 = vpack.c.bf16 %v1842, %v1841
        %v1865 = vpack.c.bf16 %v1844, %v1843
        %v1866 = vpack.c.bf16 %v1846, %v1845
        %v1867 = vpack.c.bf16 %v1848, %v1847
        %v1868 = vpack.c.bf16 %v1850, %v1849
        %v1869 = vpack.c.bf16 %v1852, %v1851
        %v1870 = vpack.c.bf16 %v1854, %v1853
        %v1871 = vld [vmem:[%s3 + $0x28] sm:$0xf]
        %v1872 = vld [vmem:[%s3 + $0x2c] sm:$0xf]
        %v1875 = vunpack.c.l.b16 %v1871
        %v1876 = vunpack.c.l.b16 %v1872
        %v1877 = vpack.c.b16 %v1876, %v1875
        %v1880 = vsel %vm351, %v1855, 0
        %v1883 = vsel %vm351, %v1856, 0
        %v1886 = vsel %vm351, %v1857, 0
        %v1889 = vsel %vm351, %v1858, 0
        %v1892 = vsel %vm351, %v1859, 0
        %v1895 = vsel %vm351, %v1860, 0
        %v1898 = vsel %vm351, %v1861, 0
        %v1901 = vsel %vm351, %v1862, 0
        %v1904 = vsel %vm351, %v1863, 0
        %v1907 = vsel %vm351, %v1864, 0
        %v1910 = vsel %vm351, %v1865, 0
        %v1913 = vsel %vm351, %v1866, 0
        %v1916 = vsel %vm351, %v1867, 0
        %v1919 = vsel %vm351, %v1868, 0
        %v1922 = vsel %vm351, %v1869, 0
        %v1925 = vsel %vm351, %v1870, 0
        %1927 = vmatprep.subr.bf16.mxu0 0
        %1928 = vmatpush1.bf16.msra.mxu0 %v1877
        %1929 = vmatprep.subr.bf16.mxu0 0
        %1930 = vmatpush1.bf16.msra.mxu0 0
        %1931 = vmatprep.subr.bf16.mxu0 0
        %1932 = vmatpush1.bf16.msra.mxu0 0
        %1933 = vmatprep.subr.bf16.mxu0 0
        %1934 = vmatpush1.bf16.msra.mxu0 0
        %1935 = vmatprep.subr.bf16.mxu0 0
        %1936 = vmatpush1.bf16.msra.mxu0 0
        %1937 = vmatprep.subr.bf16.mxu0 0
        %1938 = vmatpush1.bf16.msra.mxu0 0
        %1939 = vmatprep.subr.bf16.mxu0 0
        %1940 = vmatpush1.bf16.msra.mxu0 0
        %1941 = vmatprep.subr.bf16.mxu0 0
        %1942 = vmatpush1.bf16.msra.mxu0 0
        %1943 = vmatprep.subr.bf16.mxu0 0
        %1944 = vmatpush1.bf16.msra.mxu0 0
        %1945 = vmatprep.subr.bf16.mxu0 0
        %1946 = vmatpush1.bf16.msra.mxu0 0
        %1947 = vmatprep.subr.bf16.mxu0 0
        %1948 = vmatpush1.bf16.msra.mxu0 0
        %1949 = vmatprep.subr.bf16.mxu0 0
        %1950 = vmatpush1.bf16.msra.mxu0 0
        %1951 = vmatprep.subr.bf16.mxu0 0
        %1952 = vmatpush1.bf16.msra.mxu0 0
        %1953 = vmatprep.subr.bf16.mxu0 0
        %1954 = vmatpush1.bf16.msra.mxu0 0
        %1955 = vmatprep.subr.bf16.mxu0 0
        %1956 = vmatpush1.bf16.msra.mxu0 0
        %1957 = vmatprep.subr.bf16.mxu0 0
        %1958 = vmatpush1.bf16.msra.mxu0 0
        %1959 = vmatprep.mubr.bf16.mxu0 0
        %1960 = vmatmul.mubr.bf16.gmra.mrb[0].mxu0 %v1880
        %v1961 = vpop.f32.mrb[0].mxu0
        %v1962 = vadd.f32 0.0, %v1961
        %v1963 = vpop.f32.mrb[0].mxu0
        %v1964 = vpop.f32.mrb[0].mxu0
        %v1965 = vadd.f32 0.0, %v1964
        %v1966 = vpop.f32.mrb[0].mxu0
        %1967 = vmatprep.mubr.bf16.mxu0 0
        %1968 = vmatmul.mubr.bf16.gmra.mrb[0].mxu0 %v1883
        %v1969 = vpop.f32.mrb[0].mxu0
        %v1970 = vadd.f32 0.0, %v1969
        %v1971 = vpop.f32.mrb[0].mxu0
        %v1972 = vpop.f32.mrb[0].mxu0
        %v1973 = vadd.f32 0.0, %v1972
        %v1974 = vpop.f32.mrb[0].mxu0
        %1975 = vmatprep.mubr.bf16.mxu0 0
        %1976 = vmatmul.mubr.bf16.gmra.mrb[0].mxu0 %v1886
        %v1977 = vpop.f32.mrb[0].mxu0
        %v1978 = vadd.f32 0.0, %v1977
        %v1979 = vpop.f32.mrb[0].mxu0
        %v1980 = vpop.f32.mrb[0].mxu0
        %v1981 = vadd.f32 0.0, %v1980
        %v1982 = vpop.f32.mrb[0].mxu0
        %1983 = vmatprep.mubr.bf16.mxu0 0
        %1984 = vmatmul.mubr.bf16.gmra.mrb[0].mxu0 %v1889
        %v1985 = vpop.f32.mrb[0].mxu0
        %v1986 = vadd.f32 0.0, %v1985
        %v1987 = vpop.f32.mrb[0].mxu0
        %v1988 = vpop.f32.mrb[0].mxu0
        %v1989 = vadd.f32 0.0, %v1988
        %v1990 = vpop.f32.mrb[0].mxu0
        %1991 = vmatprep.mubr.bf16.mxu0 0
        %1992 = vmatmul.mubr.bf16.gmra.mrb[0].mxu0 %v1892
        %v1993 = vpop.f32.mrb[0].mxu0
        %v1994 = vadd.f32 0.0, %v1993
        %v1995 = vpop.f32.mrb[0].mxu0
        %v1996 = vpop.f32.mrb[0].mxu0
        %v1997 = vadd.f32 0.0, %v1996
        %v1998 = vpop.f32.mrb[0].mxu0
        %1999 = vmatprep.mubr.bf16.mxu0 0
        %2000 = vmatmul.mubr.bf16.gmra.mrb[0].mxu0 %v1895
        %v2001 = vpop.f32.mrb[0].mxu0
        %v2002 = vadd.f32 0.0, %v2001
        %v2003 = vpop.f32.mrb[0].mxu0
        %v2004 = vpop.f32.mrb[0].mxu0
        %v2005 = vadd.f32 0.0, %v2004
        %v2006 = vpop.f32.mrb[0].mxu0
        %2007 = vmatprep.mubr.bf16.mxu0 0
        %2008 = vmatmul.mubr.bf16.gmra.mrb[0].mxu0 %v1898
        %v2009 = vpop.f32.mrb[0].mxu0
        %v2010 = vadd.f32 0.0, %v2009
        %v2011 = vpop.f32.mrb[0].mxu0
        %v2012 = vpop.f32.mrb[0].mxu0
        %v2013 = vadd.f32 0.0, %v2012
        %v2014 = vpop.f32.mrb[0].mxu0
        %2015 = vmatprep.mubr.bf16.mxu0 0
        %2016 = vmatmul.mubr.bf16.gmra.mrb[0].mxu0 %v1901
        %v2017 = vpop.f32.mrb[0].mxu0
        %v2018 = vadd.f32 0.0, %v2017
        %v2019 = vpop.f32.mrb[0].mxu0
        %v2020 = vpop.f32.mrb[0].mxu0
        %v2021 = vadd.f32 0.0, %v2020
        %v2022 = vpop.f32.mrb[0].mxu0
        %2023 = vmatprep.mubr.bf16.mxu0 0
        %2024 = vmatmul.mubr.bf16.gmra.mrb[0].mxu0 %v1904
        %v2025 = vpop.f32.mrb[0].mxu0
        %v2026 = vadd.f32 0.0, %v2025
        %v2027 = vpop.f32.mrb[0].mxu0
        %v2028 = vpop.f32.mrb[0].mxu0
        %v2029 = vadd.f32 0.0, %v2028
        %v2030 = vpop.f32.mrb[0].mxu0
        %2031 = vmatprep.mubr.bf16.mxu0 0
        %2032 = vmatmul.mubr.bf16.gmra.mrb[0].mxu0 %v1907
        %v2033 = vpop.f32.mrb[0].mxu0
        %v2034 = vadd.f32 0.0, %v2033
        %v2035 = vpop.f32.mrb[0].mxu0
        %v2036 = vpop.f32.mrb[0].mxu0
        %v2037 = vadd.f32 0.0, %v2036
        %v2038 = vpop.f32.mrb[0].mxu0
        %2039 = vmatprep.mubr.bf16.mxu0 0
        %2040 = vmatmul.mubr.bf16.gmra.mrb[0].mxu0 %v1910
        %v2041 = vpop.f32.mrb[0].mxu0
        %v2042 = vadd.f32 0.0, %v2041
        %v2043 = vpop.f32.mrb[0].mxu0
        %v2044 = vpop.f32.mrb[0].mxu0
        %v2045 = vadd.f32 0.0, %v2044
        %v2046 = vpop.f32.mrb[0].mxu0
        %2047 = vmatprep.mubr.bf16.mxu0 0
        %2048 = vmatmul.mubr.bf16.gmra.mrb[0].mxu0 %v1913
        %v2049 = vpop.f32.mrb[0].mxu0
        %v2050 = vadd.f32 0.0, %v2049
        %v2051 = vpop.f32.mrb[0].mxu0
        %v2052 = vpop.f32.mrb[0].mxu0
        %v2053 = vadd.f32 0.0, %v2052
        %v2054 = vpop.f32.mrb[0].mxu0
        %2055 = vmatprep.mubr.bf16.mxu0 0
        %2056 = vmatmul.mubr.bf16.gmra.mrb[0].mxu0 %v1916
        %v2057 = vpop.f32.mrb[0].mxu0
        %v2058 = vadd.f32 0.0, %v2057
        %v2059 = vpop.f32.mrb[0].mxu0
        %v2060 = vpop.f32.mrb[0].mxu0
        %v2061 = vadd.f32 0.0, %v2060
        %v2062 = vpop.f32.mrb[0].mxu0
        %2063 = vmatprep.mubr.bf16.mxu0 0
        %2064 = vmatmul.mubr.bf16.gmra.mrb[0].mxu0 %v1919
        %v2065 = vpop.f32.mrb[0].mxu0
        %v2066 = vadd.f32 0.0, %v2065
        %v2067 = vpop.f32.mrb[0].mxu0
        %v2068 = vpop.f32.mrb[0].mxu0
        %v2069 = vadd.f32 0.0, %v2068
        %v2070 = vpop.f32.mrb[0].mxu0
        %2071 = vmatprep.mubr.bf16.mxu0 0
        %2072 = vmatmul.mubr.bf16.gmra.mrb[0].mxu0 %v1922
        %v2073 = vpop.f32.mrb[0].mxu0
        %v2074 = vadd.f32 0.0, %v2073
        %v2075 = vpop.f32.mrb[0].mxu0
        %v2076 = vpop.f32.mrb[0].mxu0
        %v2077 = vadd.f32 0.0, %v2076
        %v2078 = vpop.f32.mrb[0].mxu0
        %2079 = vmatprep.mubr.bf16.mxu0 0
        %2080 = vmatmul.mubr.bf16.gmra.mrb[0].mxu0 %v1925
        %v2081 = vpop.f32.mrb[0].mxu0
        %v2082 = vadd.f32 0.0, %v2081
        %v2083 = vpop.f32.mrb[0].mxu0
        %v2084 = vpop.f32.mrb[0].mxu0
        %v2085 = vadd.f32 0.0, %v2084
        %v2086 = vpop.f32.mrb[0].mxu0
        %2087 = vdwg.mxu0
        %v2088 = vadd.f32 %v1791, %v1962
        %v2089 = vadd.f32 %v1792, %v1965
        %v2090 = vadd.f32 %v1793, %v1970
        %v2091 = vadd.f32 %v1794, %v1973
        %v2092 = vadd.f32 %v1795, %v1978
        %v2093 = vadd.f32 %v1796, %v1981
        %v2094 = vadd.f32 %v1797, %v1986
        %v2095 = vadd.f32 %v1798, %v1989
        %v2096 = vadd.f32 %v1799, %v1994
        %v2097 = vadd.f32 %v1800, %v1997
        %v2098 = vadd.f32 %v1801, %v2002
        %v2099 = vadd.f32 %v1802, %v2005
        %v2100 = vadd.f32 %v1803, %v2010
        %v2101 = vadd.f32 %v1804, %v2013
        %v2102 = vadd.f32 %v1805, %v2018
        %v2103 = vadd.f32 %v1806, %v2021
        %v2104 = vadd.f32 %v1807, %v2026
        %v2105 = vadd.f32 %v1808, %v2029
        %v2106 = vadd.f32 %v1809, %v2034
        %v2107 = vadd.f32 %v1810, %v2037
        %v2108 = vadd.f32 %v1811, %v2042
        %v2109 = vadd.f32 %v1812, %v2045
        %v2110 = vadd.f32 %v1813, %v2050
        %v2111 = vadd.f32 %v1814, %v2053
        %v2112 = vadd.f32 %v1815, %v2058
        %v2113 = vadd.f32 %v1816, %v2061
        %v2114 = vadd.f32 %v1817, %v2066
        %v2115 = vadd.f32 %v1818, %v2069
        %v2116 = vadd.f32 %v1819, %v2074
        %v2117 = vadd.f32 %v1820, %v2077
        %v2118 = vadd.f32 %v1821, %v2082
        %v2119 = vadd.f32 %v1822, %v2085
        %v2120 = vld [vmem:[#allocation2 + $0x20] sm:$0xff]
        %v2121 = vld [vmem:[#allocation2 + $0x28] sm:$0xff]
        %v2122 = vld [vmem:[#allocation2 + $0x30] sm:$0xff]
        %v2123 = vld [vmem:[#allocation2 + $0x38] sm:$0xff]
        %v2124 = vld [vmem:[#allocation2 + $0x40] sm:$0xff]
        %v2125 = vld [vmem:[#allocation2 + $0x48] sm:$0xff]
        %v2126 = vld [vmem:[#allocation2 + $0x50] sm:$0xff]
        %v2127 = vld [vmem:[#allocation2 + $0x58] sm:$0xff]
        %v2128 = vld [vmem:[#allocation2 + $0x60] sm:$0xff]
        %v2129 = vld [vmem:[#allocation2 + $0x68] sm:$0xff]
        %v2130 = vld [vmem:[#allocation2 + $0x70] sm:$0xff]
        %v2131 = vld [vmem:[#allocation2 + $0x78] sm:$0xff]
        %v2132 = vld [vmem:[#allocation2 + $0x80] sm:$0xff]
        %v2133 = vld [vmem:[#allocation2 + $0x88] sm:$0xff]
        %v2134 = vld [vmem:[#allocation2 + $0x90] sm:$0xff]
        %v2135 = vld [vmem:[#allocation2 + $0x98] sm:$0xff]
        %v2136 = vld [vmem:[#allocation2 + $0xa0] sm:$0xff]
        %v2137 = vld [vmem:[#allocation2 + $0xa8] sm:$0xff]
        %v2138 = vld [vmem:[#allocation2 + $0xb0] sm:$0xff]
        %v2139 = vld [vmem:[#allocation2 + $0xb8] sm:$0xff]
        %v2140 = vld [vmem:[#allocation2 + $0xc0] sm:$0xff]
        %v2141 = vld [vmem:[#allocation2 + $0xc8] sm:$0xff]
        %v2142 = vld [vmem:[#allocation2 + $0xd0] sm:$0xff]
        %v2143 = vld [vmem:[#allocation2 + $0xd8] sm:$0xff]
        %v2144 = vld [vmem:[#allocation2 + $0xe0] sm:$0xff]
        %v2145 = vld [vmem:[#allocation2 + $0xe8] sm:$0xff]
        %v2146 = vld [vmem:[#allocation2 + $0xf0] sm:$0xff]
        %v2147 = vld [vmem:[#allocation2 + $0xf8] sm:$0xff]
        %v2148 = vld [vmem:[#allocation2 + $0x100] sm:$0xff]
        %v2149 = vld [vmem:[#allocation2 + $0x108] sm:$0xff]
        %v2150 = vld [vmem:[#allocation2 + $0x110] sm:$0xff]
        %v2151 = vld [vmem:[#allocation2 + $0x118] sm:$0xff]
        %v2152 = vpack.c.bf16 %v2121, %v2120
        %v2153 = vpack.c.bf16 %v2123, %v2122
        %v2154 = vpack.c.bf16 %v2125, %v2124
        %v2155 = vpack.c.bf16 %v2127, %v2126
        %v2156 = vpack.c.bf16 %v2129, %v2128
        %v2157 = vpack.c.bf16 %v2131, %v2130
        %v2158 = vpack.c.bf16 %v2133, %v2132
        %v2159 = vpack.c.bf16 %v2135, %v2134
        %v2160 = vpack.c.bf16 %v2137, %v2136
        %v2161 = vpack.c.bf16 %v2139, %v2138
        %v2162 = vpack.c.bf16 %v2141, %v2140
        %v2163 = vpack.c.bf16 %v2143, %v2142
        %v2164 = vpack.c.bf16 %v2145, %v2144
        %v2165 = vpack.c.bf16 %v2147, %v2146
        %v2166 = vpack.c.bf16 %v2149, %v2148
        %v2167 = vpack.c.bf16 %v2151, %v2150
        %v2168 = vld [vmem:[%s3 + $0x30] sm:$0xf]
        %v2169 = vld [vmem:[%s3 + $0x34] sm:$0xf]
        %v2172 = vunpack.c.l.b16 %v2168
        %v2173 = vunpack.c.l.b16 %v2169
        %v2174 = vpack.c.b16 %v2173, %v2172
        %v2177 = vsel %vm351, %v2152, 0
        %v2180 = vsel %vm351, %v2153, 0
        %v2183 = vsel %vm351, %v2154, 0
        %v2186 = vsel %vm351, %v2155, 0
        %v2189 = vsel %vm351, %v2156, 0
        %v2192 = vsel %vm351, %v2157, 0
        %v2195 = vsel %vm351, %v2158, 0
        %v2198 = vsel %vm351, %v2159, 0
        %v2201 = vsel %vm351, %v2160, 0
        %v2204 = vsel %vm351, %v2161, 0
        %v2207 = vsel %vm351, %v2162, 0
        %v2210 = vsel %vm351, %v2163, 0
        %v2213 = vsel %vm351, %v2164, 0
        %v2216 = vsel %vm351, %v2165, 0
        %v2219 = vsel %vm351, %v2166, 0
        %v2222 = vsel %vm351, %v2167, 0
        %2224 = vmatprep.subr.bf16.mxu0 0
        %2225 = vmatpush1.bf16.msra.mxu0 %v2174
        %2226 = vmatprep.subr.bf16.mxu0 0
        %2227 = vmatpush1.bf16.msra.mxu0 0
        %2228 = vmatprep.subr.bf16.mxu0 0
        %2229 = vmatpush1.bf16.msra.mxu0 0
        %2230 = vmatprep.subr.bf16.mxu0 0
        %2231 = vmatpush1.bf16.msra.mxu0 0
        %2232 = vmatprep.subr.bf16.mxu0 0
        %2233 = vmatpush1.bf16.msra.mxu0 0
        %2234 = vmatprep.subr.bf16.mxu0 0
        %2235 = vmatpush1.bf16.msra.mxu0 0
        %2236 = vmatprep.subr.bf16.mxu0 0
        %2237 = vmatpush1.bf16.msra.mxu0 0
        %2238 = vmatprep.subr.bf16.mxu0 0
        %2239 = vmatpush1.bf16.msra.mxu0 0
        %2240 = vmatprep.subr.bf16.mxu0 0
        %2241 = vmatpush1.bf16.msra.mxu0 0
        %2242 = vmatprep.subr.bf16.mxu0 0
        %2243 = vmatpush1.bf16.msra.mxu0 0
        %2244 = vmatprep.subr.bf16.mxu0 0
        %2245 = vmatpush1.bf16.msra.mxu0 0
        %2246 = vmatprep.subr.bf16.mxu0 0
        %2247 = vmatpush1.bf16.msra.mxu0 0
        %2248 = vmatprep.subr.bf16.mxu0 0
        %2249 = vmatpush1.bf16.msra.mxu0 0
        %2250 = vmatprep.subr.bf16.mxu0 0
        %2251 = vmatpush1.bf16.msra.mxu0 0
        %2252 = vmatprep.subr.bf16.mxu0 0
        %2253 = vmatpush1.bf16.msra.mxu0 0
        %2254 = vmatprep.subr.bf16.mxu0 0
        %2255 = vmatpush1.bf16.msra.mxu0 0
        %2256 = vmatprep.mubr.bf16.mxu0 0
        %2257 = vmatmul.mubr.bf16.gmra.mrb[0].mxu0 %v2177
        %v2258 = vpop.f32.mrb[0].mxu0
        %v2259 = vadd.f32 0.0, %v2258
        %v2260 = vpop.f32.mrb[0].mxu0
        %v2261 = vpop.f32.mrb[0].mxu0
        %v2262 = vadd.f32 0.0, %v2261
        %v2263 = vpop.f32.mrb[0].mxu0
        %2264 = vmatprep.mubr.bf16.mxu0 0
        %2265 = vmatmul.mubr.bf16.gmra.mrb[0].mxu0 %v2180
        %v2266 = vpop.f32.mrb[0].mxu0
        %v2267 = vadd.f32 0.0, %v2266
        %v2268 = vpop.f32.mrb[0].mxu0
        %v2269 = vpop.f32.mrb[0].mxu0
        %v2270 = vadd.f32 0.0, %v2269
        %v2271 = vpop.f32.mrb[0].mxu0
        %2272 = vmatprep.mubr.bf16.mxu0 0
        %2273 = vmatmul.mubr.bf16.gmra.mrb[0].mxu0 %v2183
        %v2274 = vpop.f32.mrb[0].mxu0
        %v2275 = vadd.f32 0.0, %v2274
        %v2276 = vpop.f32.mrb[0].mxu0
        %v2277 = vpop.f32.mrb[0].mxu0
        %v2278 = vadd.f32 0.0, %v2277
        %v2279 = vpop.f32.mrb[0].mxu0
        %2280 = vmatprep.mubr.bf16.mxu0 0
        %2281 = vmatmul.mubr.bf16.gmra.mrb[0].mxu0 %v2186
        %v2282 = vpop.f32.mrb[0].mxu0
        %v2283 = vadd.f32 0.0, %v2282
        %v2284 = vpop.f32.mrb[0].mxu0
        %v2285 = vpop.f32.mrb[0].mxu0
        %v2286 = vadd.f32 0.0, %v2285
        %v2287 = vpop.f32.mrb[0].mxu0
        %2288 = vmatprep.mubr.bf16.mxu0 0
        %2289 = vmatmul.mubr.bf16.gmra.mrb[0].mxu0 %v2189
        %v2290 = vpop.f32.mrb[0].mxu0
        %v2291 = vadd.f32 0.0, %v2290
        %v2292 = vpop.f32.mrb[0].mxu0
        %v2293 = vpop.f32.mrb[0].mxu0
        %v2294 = vadd.f32 0.0, %v2293
        %v2295 = vpop.f32.mrb[0].mxu0
        %2296 = vmatprep.mubr.bf16.mxu0 0
        %2297 = vmatmul.mubr.bf16.gmra.mrb[0].mxu0 %v2192
        %v2298 = vpop.f32.mrb[0].mxu0
        %v2299 = vadd.f32 0.0, %v2298
        %v2300 = vpop.f32.mrb[0].mxu0
        %v2301 = vpop.f32.mrb[0].mxu0
        %v2302 = vadd.f32 0.0, %v2301
        %v2303 = vpop.f32.mrb[0].mxu0
        %2304 = vmatprep.mubr.bf16.mxu0 0
        %2305 = vmatmul.mubr.bf16.gmra.mrb[0].mxu0 %v2195
        %v2306 = vpop.f32.mrb[0].mxu0
        %v2307 = vadd.f32 0.0, %v2306
        %v2308 = vpop.f32.mrb[0].mxu0
        %v2309 = vpop.f32.mrb[0].mxu0
        %v2310 = vadd.f32 0.0, %v2309
        %v2311 = vpop.f32.mrb[0].mxu0
        %2312 = vmatprep.mubr.bf16.mxu0 0
        %2313 = vmatmul.mubr.bf16.gmra.mrb[0].mxu0 %v2198
        %v2314 = vpop.f32.mrb[0].mxu0
        %v2315 = vadd.f32 0.0, %v2314
        %v2316 = vpop.f32.mrb[0].mxu0
        %v2317 = vpop.f32.mrb[0].mxu0
        %v2318 = vadd.f32 0.0, %v2317
        %v2319 = vpop.f32.mrb[0].mxu0
        %2320 = vmatprep.mubr.bf16.mxu0 0
        %2321 = vmatmul.mubr.bf16.gmra.mrb[0].mxu0 %v2201
        %v2322 = vpop.f32.mrb[0].mxu0
        %v2323 = vadd.f32 0.0, %v2322
        %v2324 = vpop.f32.mrb[0].mxu0
        %v2325 = vpop.f32.mrb[0].mxu0
        %v2326 = vadd.f32 0.0, %v2325
        %v2327 = vpop.f32.mrb[0].mxu0
        %2328 = vmatprep.mubr.bf16.mxu0 0
        %2329 = vmatmul.mubr.bf16.gmra.mrb[0].mxu0 %v2204
        %v2330 = vpop.f32.mrb[0].mxu0
        %v2331 = vadd.f32 0.0, %v2330
        %v2332 = vpop.f32.mrb[0].mxu0
        %v2333 = vpop.f32.mrb[0].mxu0
        %v2334 = vadd.f32 0.0, %v2333
        %v2335 = vpop.f32.mrb[0].mxu0
        %2336 = vmatprep.mubr.bf16.mxu0 0
        %2337 = vmatmul.mubr.bf16.gmra.mrb[0].mxu0 %v2207
        %v2338 = vpop.f32.mrb[0].mxu0
        %v2339 = vadd.f32 0.0, %v2338
        %v2340 = vpop.f32.mrb[0].mxu0
        %v2341 = vpop.f32.mrb[0].mxu0
        %v2342 = vadd.f32 0.0, %v2341
        %v2343 = vpop.f32.mrb[0].mxu0
        %2344 = vmatprep.mubr.bf16.mxu0 0
        %2345 = vmatmul.mubr.bf16.gmra.mrb[0].mxu0 %v2210
        %v2346 = vpop.f32.mrb[0].mxu0
        %v2347 = vadd.f32 0.0, %v2346
        %v2348 = vpop.f32.mrb[0].mxu0
        %v2349 = vpop.f32.mrb[0].mxu0
        %v2350 = vadd.f32 0.0, %v2349
        %v2351 = vpop.f32.mrb[0].mxu0
        %2352 = vmatprep.mubr.bf16.mxu0 0
        %2353 = vmatmul.mubr.bf16.gmra.mrb[0].mxu0 %v2213
        %v2354 = vpop.f32.mrb[0].mxu0
        %v2355 = vadd.f32 0.0, %v2354
        %v2356 = vpop.f32.mrb[0].mxu0
        %v2357 = vpop.f32.mrb[0].mxu0
        %v2358 = vadd.f32 0.0, %v2357
        %v2359 = vpop.f32.mrb[0].mxu0
        %2360 = vmatprep.mubr.bf16.mxu0 0
        %2361 = vmatmul.mubr.bf16.gmra.mrb[0].mxu0 %v2216
        %v2362 = vpop.f32.mrb[0].mxu0
        %v2363 = vadd.f32 0.0, %v2362
        %v2364 = vpop.f32.mrb[0].mxu0
        %v2365 = vpop.f32.mrb[0].mxu0
        %v2366 = vadd.f32 0.0, %v2365
        %v2367 = vpop.f32.mrb[0].mxu0
        %2368 = vmatprep.mubr.bf16.mxu0 0
        %2369 = vmatmul.mubr.bf16.gmra.mrb[0].mxu0 %v2219
        %v2370 = vpop.f32.mrb[0].mxu0
        %v2371 = vadd.f32 0.0, %v2370
        %v2372 = vpop.f32.mrb[0].mxu0
        %v2373 = vpop.f32.mrb[0].mxu0
        %v2374 = vadd.f32 0.0, %v2373
        %v2375 = vpop.f32.mrb[0].mxu0
        %2376 = vmatprep.mubr.bf16.mxu0 0
        %2377 = vmatmul.mubr.bf16.gmra.mrb[0].mxu0 %v2222
        %v2378 = vpop.f32.mrb[0].mxu0
        %v2379 = vadd.f32 0.0, %v2378
        %v2380 = vpop.f32.mrb[0].mxu0
        %v2381 = vpop.f32.mrb[0].mxu0
        %v2382 = vadd.f32 0.0, %v2381
        %v2383 = vpop.f32.mrb[0].mxu0
        %2384 = vdwg.mxu0
        %v2385 = vadd.f32 %v2088, %v2259
        %v2386 = vadd.f32 %v2089, %v2262
        %v2387 = vadd.f32 %v2090, %v2267
        %v2388 = vadd.f32 %v2091, %v2270
        %v2389 = vadd.f32 %v2092, %v2275
        %v2390 = vadd.f32 %v2093, %v2278
        %v2391 = vadd.f32 %v2094, %v2283
        %v2392 = vadd.f32 %v2095, %v2286
        %v2393 = vadd.f32 %v2096, %v2291
        %v2394 = vadd.f32 %v2097, %v2294
        %v2395 = vadd.f32 %v2098, %v2299
        %v2396 = vadd.f32 %v2099, %v2302
        %v2397 = vadd.f32 %v2100, %v2307
        %v2398 = vadd.f32 %v2101, %v2310
        %v2399 = vadd.f32 %v2102, %v2315
        %v2400 = vadd.f32 %v2103, %v2318
        %v2401 = vadd.f32 %v2104, %v2323
        %v2402 = vadd.f32 %v2105, %v2326
        %v2403 = vadd.f32 %v2106, %v2331
        %v2404 = vadd.f32 %v2107, %v2334
        %v2405 = vadd.f32 %v2108, %v2339
        %v2406 = vadd.f32 %v2109, %v2342
        %v2407 = vadd.f32 %v2110, %v2347
        %v2408 = vadd.f32 %v2111, %v2350
        %v2409 = vadd.f32 %v2112, %v2355
        %v2410 = vadd.f32 %v2113, %v2358
        %v2411 = vadd.f32 %v2114, %v2363
        %v2412 = vadd.f32 %v2115, %v2366
        %v2413 = vadd.f32 %v2116, %v2371
        %v2414 = vadd.f32 %v2117, %v2374
        %v2415 = vadd.f32 %v2118, %v2379
        %v2416 = vadd.f32 %v2119, %v2382
        %v2417 = vld [vmem:[#allocation2 + $0x21] sm:$0xff]
        %v2418 = vld [vmem:[#allocation2 + $0x29] sm:$0xff]
        %v2419 = vld [vmem:[#allocation2 + $0x31] sm:$0xff]
        %v2420 = vld [vmem:[#allocation2 + $0x39] sm:$0xff]
        %v2421 = vld [vmem:[#allocation2 + $0x41] sm:$0xff]
        %v2422 = vld [vmem:[#allocation2 + $0x49] sm:$0xff]
        %v2423 = vld [vmem:[#allocation2 + $0x51] sm:$0xff]
        %v2424 = vld [vmem:[#allocation2 + $0x59] sm:$0xff]
        %v2425 = vld [vmem:[#allocation2 + $0x61] sm:$0xff]
        %v2426 = vld [vmem:[#allocation2 + $0x69] sm:$0xff]
        %v2427 = vld [vmem:[#allocation2 + $0x71] sm:$0xff]
        %v2428 = vld [vmem:[#allocation2 + $0x79] sm:$0xff]
        %v2429 = vld [vmem:[#allocation2 + $0x81] sm:$0xff]
        %v2430 = vld [vmem:[#allocation2 + $0x89] sm:$0xff]
        %v2431 = vld [vmem:[#allocation2 + $0x91] sm:$0xff]
        %v2432 = vld [vmem:[#allocation2 + $0x99] sm:$0xff]
        %v2433 = vld [vmem:[#allocation2 + $0xa1] sm:$0xff]
        %v2434 = vld [vmem:[#allocation2 + $0xa9] sm:$0xff]
        %v2435 = vld [vmem:[#allocation2 + $0xb1] sm:$0xff]
        %v2436 = vld [vmem:[#allocation2 + $0xb9] sm:$0xff]
        %v2437 = vld [vmem:[#allocation2 + $0xc1] sm:$0xff]
        %v2438 = vld [vmem:[#allocation2 + $0xc9] sm:$0xff]
        %v2439 = vld [vmem:[#allocation2 + $0xd1] sm:$0xff]
        %v2440 = vld [vmem:[#allocation2 + $0xd9] sm:$0xff]
        %v2441 = vld [vmem:[#allocation2 + $0xe1] sm:$0xff]
        %v2442 = vld [vmem:[#allocation2 + $0xe9] sm:$0xff]
        %v2443 = vld [vmem:[#allocation2 + $0xf1] sm:$0xff]
        %v2444 = vld [vmem:[#allocation2 + $0xf9] sm:$0xff]
        %v2445 = vld [vmem:[#allocation2 + $0x101] sm:$0xff]
        %v2446 = vld [vmem:[#allocation2 + $0x109] sm:$0xff]
        %v2447 = vld [vmem:[#allocation2 + $0x111] sm:$0xff]
        %v2448 = vld [vmem:[#allocation2 + $0x119] sm:$0xff]
        %v2449 = vpack.c.bf16 %v2418, %v2417
        %v2450 = vpack.c.bf16 %v2420, %v2419
        %v2451 = vpack.c.bf16 %v2422, %v2421
        %v2452 = vpack.c.bf16 %v2424, %v2423
        %v2453 = vpack.c.bf16 %v2426, %v2425
        %v2454 = vpack.c.bf16 %v2428, %v2427
        %v2455 = vpack.c.bf16 %v2430, %v2429
        %v2456 = vpack.c.bf16 %v2432, %v2431
        %v2457 = vpack.c.bf16 %v2434, %v2433
        %v2458 = vpack.c.bf16 %v2436, %v2435
        %v2459 = vpack.c.bf16 %v2438, %v2437
        %v2460 = vpack.c.bf16 %v2440, %v2439
        %v2461 = vpack.c.bf16 %v2442, %v2441
        %v2462 = vpack.c.bf16 %v2444, %v2443
        %v2463 = vpack.c.bf16 %v2446, %v2445
        %v2464 = vpack.c.bf16 %v2448, %v2447
        %v2465 = vld [vmem:[%s3 + $0x38] sm:$0xf]
        %v2466 = vld [vmem:[%s3 + $0x3c] sm:$0xf]
        %v2469 = vunpack.c.l.b16 %v2465
        %v2470 = vunpack.c.l.b16 %v2466
        %v2471 = vpack.c.b16 %v2470, %v2469
        %v2474 = vsel %vm351, %v2449, 0
        %v2477 = vsel %vm351, %v2450, 0
        %v2480 = vsel %vm351, %v2451, 0
        %v2483 = vsel %vm351, %v2452, 0
        %v2486 = vsel %vm351, %v2453, 0
        %v2489 = vsel %vm351, %v2454, 0
        %v2492 = vsel %vm351, %v2455, 0
        %v2495 = vsel %vm351, %v2456, 0
        %v2498 = vsel %vm351, %v2457, 0
        %v2501 = vsel %vm351, %v2458, 0
        %v2504 = vsel %vm351, %v2459, 0
        %v2507 = vsel %vm351, %v2460, 0
        %v2510 = vsel %vm351, %v2461, 0
        %v2513 = vsel %vm351, %v2462, 0
        %v2516 = vsel %vm351, %v2463, 0
        %v2519 = vsel %vm351, %v2464, 0
        %2521 = vmatprep.subr.bf16.mxu0 0
        %2522 = vmatpush1.bf16.msra.mxu0 %v2471
        %2523 = vmatprep.subr.bf16.mxu0 0
        %2524 = vmatpush1.bf16.msra.mxu0 0
        %2525 = vmatprep.subr.bf16.mxu0 0
        %2526 = vmatpush1.bf16.msra.mxu0 0
        %2527 = vmatprep.subr.bf16.mxu0 0
        %2528 = vmatpush1.bf16.msra.mxu0 0
        %2529 = vmatprep.subr.bf16.mxu0 0
        %2530 = vmatpush1.bf16.msra.mxu0 0
        %2531 = vmatprep.subr.bf16.mxu0 0
        %2532 = vmatpush1.bf16.msra.mxu0 0
        %2533 = vmatprep.subr.bf16.mxu0 0
        %2534 = vmatpush1.bf16.msra.mxu0 0
        %2535 = vmatprep.subr.bf16.mxu0 0
        %2536 = vmatpush1.bf16.msra.mxu0 0
        %2537 = vmatprep.subr.bf16.mxu0 0
        %2538 = vmatpush1.bf16.msra.mxu0 0
        %2539 = vmatprep.subr.bf16.mxu0 0
        %2540 = vmatpush1.bf16.msra.mxu0 0
        %2541 = vmatprep.subr.bf16.mxu0 0
        %2542 = vmatpush1.bf16.msra.mxu0 0
        %2543 = vmatprep.subr.bf16.mxu0 0
        %2544 = vmatpush1.bf16.msra.mxu0 0
        %2545 = vmatprep.subr.bf16.mxu0 0
        %2546 = vmatpush1.bf16.msra.mxu0 0
        %2547 = vmatprep.subr.bf16.mxu0 0
        %2548 = vmatpush1.bf16.msra.mxu0 0
        %2549 = vmatprep.subr.bf16.mxu0 0
        %2550 = vmatpush1.bf16.msra.mxu0 0
        %2551 = vmatprep.subr.bf16.mxu0 0
        %2552 = vmatpush1.bf16.msra.mxu0 0
        %2553 = vmatprep.mubr.bf16.mxu0 0
        %2554 = vmatmul.mubr.bf16.gmra.mrb[0].mxu0 %v2474
        %v2555 = vpop.f32.mrb[0].mxu0
        %v2556 = vadd.f32 0.0, %v2555
        %v2557 = vpop.f32.mrb[0].mxu0
        %v2558 = vpop.f32.mrb[0].mxu0
        %v2559 = vadd.f32 0.0, %v2558
        %v2560 = vpop.f32.mrb[0].mxu0
        %2561 = vmatprep.mubr.bf16.mxu0 0
        %2562 = vmatmul.mubr.bf16.gmra.mrb[0].mxu0 %v2477
        %v2563 = vpop.f32.mrb[0].mxu0
        %v2564 = vadd.f32 0.0, %v2563
        %v2565 = vpop.f32.mrb[0].mxu0
        %v2566 = vpop.f32.mrb[0].mxu0
        %v2567 = vadd.f32 0.0, %v2566
        %v2568 = vpop.f32.mrb[0].mxu0
        %2569 = vmatprep.mubr.bf16.mxu0 0
        %2570 = vmatmul.mubr.bf16.gmra.mrb[0].mxu0 %v2480
        %v2571 = vpop.f32.mrb[0].mxu0
        %v2572 = vadd.f32 0.0, %v2571
        %v2573 = vpop.f32.mrb[0].mxu0
        %v2574 = vpop.f32.mrb[0].mxu0
        %v2575 = vadd.f32 0.0, %v2574
        %v2576 = vpop.f32.mrb[0].mxu0
        %2577 = vmatprep.mubr.bf16.mxu0 0
        %2578 = vmatmul.mubr.bf16.gmra.mrb[0].mxu0 %v2483
        %v2579 = vpop.f32.mrb[0].mxu0
        %v2580 = vadd.f32 0.0, %v2579
        %v2581 = vpop.f32.mrb[0].mxu0
        %v2582 = vpop.f32.mrb[0].mxu0
        %v2583 = vadd.f32 0.0, %v2582
        %v2584 = vpop.f32.mrb[0].mxu0
        %2585 = vmatprep.mubr.bf16.mxu0 0
        %2586 = vmatmul.mubr.bf16.gmra.mrb[0].mxu0 %v2486
        %v2587 = vpop.f32.mrb[0].mxu0
        %v2588 = vadd.f32 0.0, %v2587
        %v2589 = vpop.f32.mrb[0].mxu0
        %v2590 = vpop.f32.mrb[0].mxu0
        %v2591 = vadd.f32 0.0, %v2590
        %v2592 = vpop.f32.mrb[0].mxu0
        %2593 = vmatprep.mubr.bf16.mxu0 0
        %2594 = vmatmul.mubr.bf16.gmra.mrb[0].mxu0 %v2489
        %v2595 = vpop.f32.mrb[0].mxu0
        %v2596 = vadd.f32 0.0, %v2595
        %v2597 = vpop.f32.mrb[0].mxu0
        %v2598 = vpop.f32.mrb[0].mxu0
        %v2599 = vadd.f32 0.0, %v2598
        %v2600 = vpop.f32.mrb[0].mxu0
        %2601 = vmatprep.mubr.bf16.mxu0 0
        %2602 = vmatmul.mubr.bf16.gmra.mrb[0].mxu0 %v2492
        %v2603 = vpop.f32.mrb[0].mxu0
        %v2604 = vadd.f32 0.0, %v2603
        %v2605 = vpop.f32.mrb[0].mxu0
        %v2606 = vpop.f32.mrb[0].mxu0
        %v2607 = vadd.f32 0.0, %v2606
        %v2608 = vpop.f32.mrb[0].mxu0
        %2609 = vmatprep.mubr.bf16.mxu0 0
        %2610 = vmatmul.mubr.bf16.gmra.mrb[0].mxu0 %v2495
        %v2611 = vpop.f32.mrb[0].mxu0
        %v2612 = vadd.f32 0.0, %v2611
        %v2613 = vpop.f32.mrb[0].mxu0
        %v2614 = vpop.f32.mrb[0].mxu0
        %v2615 = vadd.f32 0.0, %v2614
        %v2616 = vpop.f32.mrb[0].mxu0
        %2617 = vmatprep.mubr.bf16.mxu0 0
        %2618 = vmatmul.mubr.bf16.gmra.mrb[0].mxu0 %v2498
        %v2619 = vpop.f32.mrb[0].mxu0
        %v2620 = vadd.f32 0.0, %v2619
        %v2621 = vpop.f32.mrb[0].mxu0
        %v2622 = vpop.f32.mrb[0].mxu0
        %v2623 = vadd.f32 0.0, %v2622
        %v2624 = vpop.f32.mrb[0].mxu0
        %2625 = vmatprep.mubr.bf16.mxu0 0
        %2626 = vmatmul.mubr.bf16.gmra.mrb[0].mxu0 %v2501
        %v2627 = vpop.f32.mrb[0].mxu0
        %v2628 = vadd.f32 0.0, %v2627
        %v2629 = vpop.f32.mrb[0].mxu0
        %v2630 = vpop.f32.mrb[0].mxu0
        %v2631 = vadd.f32 0.0, %v2630
        %v2632 = vpop.f32.mrb[0].mxu0
        %2633 = vmatprep.mubr.bf16.mxu0 0
        %2634 = vmatmul.mubr.bf16.gmra.mrb[0].mxu0 %v2504
        %v2635 = vpop.f32.mrb[0].mxu0
        %v2636 = vadd.f32 0.0, %v2635
        %v2637 = vpop.f32.mrb[0].mxu0
        %v2638 = vpop.f32.mrb[0].mxu0
        %v2639 = vadd.f32 0.0, %v2638
        %v2640 = vpop.f32.mrb[0].mxu0
        %2641 = vmatprep.mubr.bf16.mxu0 0
        %2642 = vmatmul.mubr.bf16.gmra.mrb[0].mxu0 %v2507
        %v2643 = vpop.f32.mrb[0].mxu0
        %v2644 = vadd.f32 0.0, %v2643
        %v2645 = vpop.f32.mrb[0].mxu0
        %v2646 = vpop.f32.mrb[0].mxu0
        %v2647 = vadd.f32 0.0, %v2646
        %v2648 = vpop.f32.mrb[0].mxu0
        %2649 = vmatprep.mubr.bf16.mxu0 0
        %2650 = vmatmul.mubr.bf16.gmra.mrb[0].mxu0 %v2510
        %v2651 = vpop.f32.mrb[0].mxu0
        %v2652 = vadd.f32 0.0, %v2651
        %v2653 = vpop.f32.mrb[0].mxu0
        %v2654 = vpop.f32.mrb[0].mxu0
        %v2655 = vadd.f32 0.0, %v2654
        %v2656 = vpop.f32.mrb[0].mxu0
        %2657 = vmatprep.mubr.bf16.mxu0 0
        %2658 = vmatmul.mubr.bf16.gmra.mrb[0].mxu0 %v2513
        %v2659 = vpop.f32.mrb[0].mxu0
        %v2660 = vadd.f32 0.0, %v2659
        %v2661 = vpop.f32.mrb[0].mxu0
        %v2662 = vpop.f32.mrb[0].mxu0
        %v2663 = vadd.f32 0.0, %v2662
        %v2664 = vpop.f32.mrb[0].mxu0
        %2665 = vmatprep.mubr.bf16.mxu0 0
        %2666 = vmatmul.mubr.bf16.gmra.mrb[0].mxu0 %v2516
        %v2667 = vpop.f32.mrb[0].mxu0
        %v2668 = vadd.f32 0.0, %v2667
        %v2669 = vpop.f32.mrb[0].mxu0
        %v2670 = vpop.f32.mrb[0].mxu0
        %v2671 = vadd.f32 0.0, %v2670
        %v2672 = vpop.f32.mrb[0].mxu0
        %2673 = vmatprep.mubr.bf16.mxu0 0
        %2674 = vmatmul.mubr.bf16.gmra.mrb[0].mxu0 %v2519
        %v2675 = vpop.f32.mrb[0].mxu0
        %v2676 = vadd.f32 0.0, %v2675
        %v2677 = vpop.f32.mrb[0].mxu0
        %v2678 = vpop.f32.mrb[0].mxu0
        %v2679 = vadd.f32 0.0, %v2678
        %v2680 = vpop.f32.mrb[0].mxu0
        %2681 = vdwg.mxu0
        %v2682 = vadd.f32 %v2385, %v2556
        %v2683 = vadd.f32 %v2386, %v2559
        %v2684 = vadd.f32 %v2387, %v2564
        %v2685 = vadd.f32 %v2388, %v2567
        %v2686 = vadd.f32 %v2389, %v2572
        %v2687 = vadd.f32 %v2390, %v2575
        %v2688 = vadd.f32 %v2391, %v2580
        %v2689 = vadd.f32 %v2392, %v2583
        %v2690 = vadd.f32 %v2393, %v2588
        %v2691 = vadd.f32 %v2394, %v2591
        %v2692 = vadd.f32 %v2395, %v2596
        %v2693 = vadd.f32 %v2396, %v2599
        %v2694 = vadd.f32 %v2397, %v2604
        %v2695 = vadd.f32 %v2398, %v2607
        %v2696 = vadd.f32 %v2399, %v2612
        %v2697 = vadd.f32 %v2400, %v2615
        %v2698 = vadd.f32 %v2401, %v2620
        %v2699 = vadd.f32 %v2402, %v2623
        %v2700 = vadd.f32 %v2403, %v2628
        %v2701 = vadd.f32 %v2404, %v2631
        %v2702 = vadd.f32 %v2405, %v2636
        %v2703 = vadd.f32 %v2406, %v2639
        %v2704 = vadd.f32 %v2407, %v2644
        %v2705 = vadd.f32 %v2408, %v2647
        %v2706 = vadd.f32 %v2409, %v2652
        %v2707 = vadd.f32 %v2410, %v2655
        %v2708 = vadd.f32 %v2411, %v2660
        %v2709 = vadd.f32 %v2412, %v2663
        %v2710 = vadd.f32 %v2413, %v2668
        %v2711 = vadd.f32 %v2414, %v2671
        %v2712 = vadd.f32 %v2415, %v2676
        %v2713 = vadd.f32 %v2416, %v2679
        %v2714 = vld [vmem:[#allocation2 + $0x22] sm:$0xff]
        %v2715 = vld [vmem:[#allocation2 + $0x2a] sm:$0xff]
        %v2716 = vld [vmem:[#allocation2 + $0x32] sm:$0xff]
        %v2717 = vld [vmem:[#allocation2 + $0x3a] sm:$0xff]
        %v2718 = vld [vmem:[#allocation2 + $0x42] sm:$0xff]
        %v2719 = vld [vmem:[#allocation2 + $0x4a] sm:$0xff]
        %v2720 = vld [vmem:[#allocation2 + $0x52] sm:$0xff]
        %v2721 = vld [vmem:[#allocation2 + $0x5a] sm:$0xff]
        %v2722 = vld [vmem:[#allocation2 + $0x62] sm:$0xff]
        %v2723 = vld [vmem:[#allocation2 + $0x6a] sm:$0xff]
        %v2724 = vld [vmem:[#allocation2 + $0x72] sm:$0xff]
        %v2725 = vld [vmem:[#allocation2 + $0x7a] sm:$0xff]
        %v2726 = vld [vmem:[#allocation2 + $0x82] sm:$0xff]
        %v2727 = vld [vmem:[#allocation2 + $0x8a] sm:$0xff]
        %v2728 = vld [vmem:[#allocation2 + $0x92] sm:$0xff]
        %v2729 = vld [vmem:[#allocation2 + $0x9a] sm:$0xff]
        %v2730 = vld [vmem:[#allocation2 + $0xa2] sm:$0xff]
        %v2731 = vld [vmem:[#allocation2 + $0xaa] sm:$0xff]
        %v2732 = vld [vmem:[#allocation2 + $0xb2] sm:$0xff]
        %v2733 = vld [vmem:[#allocation2 + $0xba] sm:$0xff]
        %v2734 = vld [vmem:[#allocation2 + $0xc2] sm:$0xff]
        %v2735 = vld [vmem:[#allocation2 + $0xca] sm:$0xff]
        %v2736 = vld [vmem:[#allocation2 + $0xd2] sm:$0xff]
        %v2737 = vld [vmem:[#allocation2 + $0xda] sm:$0xff]
        %v2738 = vld [vmem:[#allocation2 + $0xe2] sm:$0xff]
        %v2739 = vld [vmem:[#allocation2 + $0xea] sm:$0xff]
        %v2740 = vld [vmem:[#allocation2 + $0xf2] sm:$0xff]
        %v2741 = vld [vmem:[#allocation2 + $0xfa] sm:$0xff]
        %v2742 = vld [vmem:[#allocation2 + $0x102] sm:$0xff]
        %v2743 = vld [vmem:[#allocation2 + $0x10a] sm:$0xff]
        %v2744 = vld [vmem:[#allocation2 + $0x112] sm:$0xff]
        %v2745 = vld [vmem:[#allocation2 + $0x11a] sm:$0xff]
        %v2746 = vpack.c.bf16 %v2715, %v2714
        %v2747 = vpack.c.bf16 %v2717, %v2716
        %v2748 = vpack.c.bf16 %v2719, %v2718
        %v2749 = vpack.c.bf16 %v2721, %v2720
        %v2750 = vpack.c.bf16 %v2723, %v2722
        %v2751 = vpack.c.bf16 %v2725, %v2724
        %v2752 = vpack.c.bf16 %v2727, %v2726
        %v2753 = vpack.c.bf16 %v2729, %v2728
        %v2754 = vpack.c.bf16 %v2731, %v2730
        %v2755 = vpack.c.bf16 %v2733, %v2732
        %v2756 = vpack.c.bf16 %v2735, %v2734
        %v2757 = vpack.c.bf16 %v2737, %v2736
        %v2758 = vpack.c.bf16 %v2739, %v2738
        %v2759 = vpack.c.bf16 %v2741, %v2740
        %v2760 = vpack.c.bf16 %v2743, %v2742
        %v2761 = vpack.c.bf16 %v2745, %v2744
        %v2762 = vld [vmem:[%s3 + $0x40] sm:$0xf]
        %v2763 = vld [vmem:[%s3 + $0x44] sm:$0xf]
        %v2766 = vunpack.c.l.b16 %v2762
        %v2767 = vunpack.c.l.b16 %v2763
        %v2768 = vpack.c.b16 %v2767, %v2766
        %v2771 = vsel %vm351, %v2746, 0
        %v2774 = vsel %vm351, %v2747, 0
        %v2777 = vsel %vm351, %v2748, 0
        %v2780 = vsel %vm351, %v2749, 0
        %v2783 = vsel %vm351, %v2750, 0
        %v2786 = vsel %vm351, %v2751, 0
        %v2789 = vsel %vm351, %v2752, 0
        %v2792 = vsel %vm351, %v2753, 0
        %v2795 = vsel %vm351, %v2754, 0
        %v2798 = vsel %vm351, %v2755, 0
        %v2801 = vsel %vm351, %v2756, 0
        %v2804 = vsel %vm351, %v2757, 0
        %v2807 = vsel %vm351, %v2758, 0
        %v2810 = vsel %vm351, %v2759, 0
        %v2813 = vsel %vm351, %v2760, 0
        %v2816 = vsel %vm351, %v2761, 0
        %2818 = vmatprep.subr.bf16.mxu0 0
        %2819 = vmatpush1.bf16.msra.mxu0 %v2768
        %2820 = vmatprep.subr.bf16.mxu0 0
        %2821 = vmatpush1.bf16.msra.mxu0 0
        %2822 = vmatprep.subr.bf16.mxu0 0
        %2823 = vmatpush1.bf16.msra.mxu0 0
        %2824 = vmatprep.subr.bf16.mxu0 0
        %2825 = vmatpush1.bf16.msra.mxu0 0
        %2826 = vmatprep.subr.bf16.mxu0 0
        %2827 = vmatpush1.bf16.msra.mxu0 0
        %2828 = vmatprep.subr.bf16.mxu0 0
        %2829 = vmatpush1.bf16.msra.mxu0 0
        %2830 = vmatprep.subr.bf16.mxu0 0
        %2831 = vmatpush1.bf16.msra.mxu0 0
        %2832 = vmatprep.subr.bf16.mxu0 0
        %2833 = vmatpush1.bf16.msra.mxu0 0
        %2834 = vmatprep.subr.bf16.mxu0 0
        %2835 = vmatpush1.bf16.msra.mxu0 0
        %2836 = vmatprep.subr.bf16.mxu0 0
        %2837 = vmatpush1.bf16.msra.mxu0 0
        %2838 = vmatprep.subr.bf16.mxu0 0
        %2839 = vmatpush1.bf16.msra.mxu0 0
        %2840 = vmatprep.subr.bf16.mxu0 0
        %2841 = vmatpush1.bf16.msra.mxu0 0
        %2842 = vmatprep.subr.bf16.mxu0 0
        %2843 = vmatpush1.bf16.msra.mxu0 0
        %2844 = vmatprep.subr.bf16.mxu0 0
        %2845 = vmatpush1.bf16.msra.mxu0 0
        %2846 = vmatprep.subr.bf16.mxu0 0
        %2847 = vmatpush1.bf16.msra.mxu0 0
        %2848 = vmatprep.subr.bf16.mxu0 0
        %2849 = vmatpush1.bf16.msra.mxu0 0
        %2850 = vmatprep.mubr.bf16.mxu0 0
        %2851 = vmatmul.mubr.bf16.gmra.mrb[0].mxu0 %v2771
        %v2852 = vpop.f32.mrb[0].mxu0
        %v2853 = vadd.f32 0.0, %v2852
        %v2854 = vpop.f32.mrb[0].mxu0
        %v2855 = vpop.f32.mrb[0].mxu0
        %v2856 = vadd.f32 0.0, %v2855
        %v2857 = vpop.f32.mrb[0].mxu0
        %2858 = vmatprep.mubr.bf16.mxu0 0
        %2859 = vmatmul.mubr.bf16.gmra.mrb[0].mxu0 %v2774
        %v2860 = vpop.f32.mrb[0].mxu0
        %v2861 = vadd.f32 0.0, %v2860
        %v2862 = vpop.f32.mrb[0].mxu0
        %v2863 = vpop.f32.mrb[0].mxu0
        %v2864 = vadd.f32 0.0, %v2863
        %v2865 = vpop.f32.mrb[0].mxu0
        %2866 = vmatprep.mubr.bf16.mxu0 0
        %2867 = vmatmul.mubr.bf16.gmra.mrb[0].mxu0 %v2777
        %v2868 = vpop.f32.mrb[0].mxu0
        %v2869 = vadd.f32 0.0, %v2868
        %v2870 = vpop.f32.mrb[0].mxu0
        %v2871 = vpop.f32.mrb[0].mxu0
        %v2872 = vadd.f32 0.0, %v2871
        %v2873 = vpop.f32.mrb[0].mxu0
        %2874 = vmatprep.mubr.bf16.mxu0 0
        %2875 = vmatmul.mubr.bf16.gmra.mrb[0].mxu0 %v2780
        %v2876 = vpop.f32.mrb[0].mxu0
        %v2877 = vadd.f32 0.0, %v2876
        %v2878 = vpop.f32.mrb[0].mxu0
        %v2879 = vpop.f32.mrb[0].mxu0
        %v2880 = vadd.f32 0.0, %v2879
        %v2881 = vpop.f32.mrb[0].mxu0
        %2882 = vmatprep.mubr.bf16.mxu0 0
        %2883 = vmatmul.mubr.bf16.gmra.mrb[0].mxu0 %v2783
        %v2884 = vpop.f32.mrb[0].mxu0
        %v2885 = vadd.f32 0.0, %v2884
        %v2886 = vpop.f32.mrb[0].mxu0
        %v2887 = vpop.f32.mrb[0].mxu0
        %v2888 = vadd.f32 0.0, %v2887
        %v2889 = vpop.f32.mrb[0].mxu0
        %2890 = vmatprep.mubr.bf16.mxu0 0
        %2891 = vmatmul.mubr.bf16.gmra.mrb[0].mxu0 %v2786
        %v2892 = vpop.f32.mrb[0].mxu0
        %v2893 = vadd.f32 0.0, %v2892
        %v2894 = vpop.f32.mrb[0].mxu0
        %v2895 = vpop.f32.mrb[0].mxu0
        %v2896 = vadd.f32 0.0, %v2895
        %v2897 = vpop.f32.mrb[0].mxu0
        %2898 = vmatprep.mubr.bf16.mxu0 0
        %2899 = vmatmul.mubr.bf16.gmra.mrb[0].mxu0 %v2789
        %v2900 = vpop.f32.mrb[0].mxu0
        %v2901 = vadd.f32 0.0, %v2900
        %v2902 = vpop.f32.mrb[0].mxu0
        %v2903 = vpop.f32.mrb[0].mxu0
        %v2904 = vadd.f32 0.0, %v2903
        %v2905 = vpop.f32.mrb[0].mxu0
        %2906 = vmatprep.mubr.bf16.mxu0 0
        %2907 = vmatmul.mubr.bf16.gmra.mrb[0].mxu0 %v2792
        %v2908 = vpop.f32.mrb[0].mxu0
        %v2909 = vadd.f32 0.0, %v2908
        %v2910 = vpop.f32.mrb[0].mxu0
        %v2911 = vpop.f32.mrb[0].mxu0
        %v2912 = vadd.f32 0.0, %v2911
        %v2913 = vpop.f32.mrb[0].mxu0
        %2914 = vmatprep.mubr.bf16.mxu0 0
        %2915 = vmatmul.mubr.bf16.gmra.mrb[0].mxu0 %v2795
        %v2916 = vpop.f32.mrb[0].mxu0
        %v2917 = vadd.f32 0.0, %v2916
        %v2918 = vpop.f32.mrb[0].mxu0
        %v2919 = vpop.f32.mrb[0].mxu0
        %v2920 = vadd.f32 0.0, %v2919
        %v2921 = vpop.f32.mrb[0].mxu0
        %2922 = vmatprep.mubr.bf16.mxu0 0
        %2923 = vmatmul.mubr.bf16.gmra.mrb[0].mxu0 %v2798
        %v2924 = vpop.f32.mrb[0].mxu0
        %v2925 = vadd.f32 0.0, %v2924
        %v2926 = vpop.f32.mrb[0].mxu0
        %v2927 = vpop.f32.mrb[0].mxu0
        %v2928 = vadd.f32 0.0, %v2927
        %v2929 = vpop.f32.mrb[0].mxu0
        %2930 = vmatprep.mubr.bf16.mxu0 0
        %2931 = vmatmul.mubr.bf16.gmra.mrb[0].mxu0 %v2801
        %v2932 = vpop.f32.mrb[0].mxu0
        %v2933 = vadd.f32 0.0, %v2932
        %v2934 = vpop.f32.mrb[0].mxu0
        %v2935 = vpop.f32.mrb[0].mxu0
        %v2936 = vadd.f32 0.0, %v2935
        %v2937 = vpop.f32.mrb[0].mxu0
        %2938 = vmatprep.mubr.bf16.mxu0 0
        %2939 = vmatmul.mubr.bf16.gmra.mrb[0].mxu0 %v2804
        %v2940 = vpop.f32.mrb[0].mxu0
        %v2941 = vadd.f32 0.0, %v2940
        %v2942 = vpop.f32.mrb[0].mxu0
        %v2943 = vpop.f32.mrb[0].mxu0
        %v2944 = vadd.f32 0.0, %v2943
        %v2945 = vpop.f32.mrb[0].mxu0
        %2946 = vmatprep.mubr.bf16.mxu0 0
        %2947 = vmatmul.mubr.bf16.gmra.mrb[0].mxu0 %v2807
        %v2948 = vpop.f32.mrb[0].mxu0
        %v2949 = vadd.f32 0.0, %v2948
        %v2950 = vpop.f32.mrb[0].mxu0
        %v2951 = vpop.f32.mrb[0].mxu0
        %v2952 = vadd.f32 0.0, %v2951
        %v2953 = vpop.f32.mrb[0].mxu0
        %2954 = vmatprep.mubr.bf16.mxu0 0
        %2955 = vmatmul.mubr.bf16.gmra.mrb[0].mxu0 %v2810
        %v2956 = vpop.f32.mrb[0].mxu0
        %v2957 = vadd.f32 0.0, %v2956
        %v2958 = vpop.f32.mrb[0].mxu0
        %v2959 = vpop.f32.mrb[0].mxu0
        %v2960 = vadd.f32 0.0, %v2959
        %v2961 = vpop.f32.mrb[0].mxu0
        %2962 = vmatprep.mubr.bf16.mxu0 0
        %2963 = vmatmul.mubr.bf16.gmra.mrb[0].mxu0 %v2813
        %v2964 = vpop.f32.mrb[0].mxu0
        %v2965 = vadd.f32 0.0, %v2964
        %v2966 = vpop.f32.mrb[0].mxu0
        %v2967 = vpop.f32.mrb[0].mxu0
        %v2968 = vadd.f32 0.0, %v2967
        %v2969 = vpop.f32.mrb[0].mxu0
        %2970 = vmatprep.mubr.bf16.mxu0 0
        %2971 = vmatmul.mubr.bf16.gmra.mrb[0].mxu0 %v2816
        %v2972 = vpop.f32.mrb[0].mxu0
        %v2973 = vadd.f32 0.0, %v2972
        %v2974 = vpop.f32.mrb[0].mxu0
        %v2975 = vpop.f32.mrb[0].mxu0
        %v2976 = vadd.f32 0.0, %v2975
        %v2977 = vpop.f32.mrb[0].mxu0
        %2978 = vdwg.mxu0
        %v2979 = vadd.f32 %v2682, %v2853
        %v2980 = vadd.f32 %v2683, %v2856
        %v2981 = vadd.f32 %v2684, %v2861
        %v2982 = vadd.f32 %v2685, %v2864
        %v2983 = vadd.f32 %v2686, %v2869
        %v2984 = vadd.f32 %v2687, %v2872
        %v2985 = vadd.f32 %v2688, %v2877
        %v2986 = vadd.f32 %v2689, %v2880
        %v2987 = vadd.f32 %v2690, %v2885
        %v2988 = vadd.f32 %v2691, %v2888
        %v2989 = vadd.f32 %v2692, %v2893
        %v2990 = vadd.f32 %v2693, %v2896
        %v2991 = vadd.f32 %v2694, %v2901
        %v2992 = vadd.f32 %v2695, %v2904
        %v2993 = vadd.f32 %v2696, %v2909
        %v2994 = vadd.f32 %v2697, %v2912
        %v2995 = vadd.f32 %v2698, %v2917
        %v2996 = vadd.f32 %v2699, %v2920
        %v2997 = vadd.f32 %v2700, %v2925
        %v2998 = vadd.f32 %v2701, %v2928
        %v2999 = vadd.f32 %v2702, %v2933
        %v3000 = vadd.f32 %v2703, %v2936
        %v3001 = vadd.f32 %v2704, %v2941
        %v3002 = vadd.f32 %v2705, %v2944
        %v3003 = vadd.f32 %v2706, %v2949
        %v3004 = vadd.f32 %v2707, %v2952
        %v3005 = vadd.f32 %v2708, %v2957
        %v3006 = vadd.f32 %v2709, %v2960
        %v3007 = vadd.f32 %v2710, %v2965
        %v3008 = vadd.f32 %v2711, %v2968
        %v3009 = vadd.f32 %v2712, %v2973
        %v3010 = vadd.f32 %v2713, %v2976
        %3011 = vst [vmem:[%s258] sm:$0xff] %v2979
        %3012 = vst [vmem:[%s258 + $0x8] sm:$0xff] %v2980
        %3013 = vst [vmem:[%s258 + $0x10] sm:$0xff] %v2981
        %3014 = vst [vmem:[%s258 + $0x18] sm:$0xff] %v2982
        %3015 = vst [vmem:[%s258 + $0x20] sm:$0xff] %v2983
        %3016 = vst [vmem:[%s258 + $0x28] sm:$0xff] %v2984
        %3017 = vst [vmem:[%s258 + $0x30] sm:$0xff] %v2985
        %3018 = vst [vmem:[%s258 + $0x38] sm:$0xff] %v2986
        %3019 = vst [vmem:[%s258 + $0x40] sm:$0xff] %v2987
        %3020 = vst [vmem:[%s258 + $0x48] sm:$0xff] %v2988
        %3021 = vst [vmem:[%s258 + $0x50] sm:$0xff] %v2989
        %3022 = vst [vmem:[%s258 + $0x58] sm:$0xff] %v2990
        %3023 = vst [vmem:[%s258 + $0x60] sm:$0xff] %v2991
        %3024 = vst [vmem:[%s258 + $0x68] sm:$0xff] %v2992
        %3025 = vst [vmem:[%s258 + $0x70] sm:$0xff] %v2993
        %3026 = vst [vmem:[%s258 + $0x78] sm:$0xff] %v2994
        %3027 = vst [vmem:[%s258 + $0x80] sm:$0xff] %v2995
        %3028 = vst [vmem:[%s258 + $0x88] sm:$0xff] %v2996
        %3029 = vst [vmem:[%s258 + $0x90] sm:$0xff] %v2997
        %3030 = vst [vmem:[%s258 + $0x98] sm:$0xff] %v2998
        %3031 = vst [vmem:[%s258 + $0xa0] sm:$0xff] %v2999
        %3032 = vst [vmem:[%s258 + $0xa8] sm:$0xff] %v3000
        %3033 = vst [vmem:[%s258 + $0xb0] sm:$0xff] %v3001
        %3034 = vst [vmem:[%s258 + $0xb8] sm:$0xff] %v3002
        %3035 = vst [vmem:[%s258 + $0xc0] sm:$0xff] %v3003
        %3036 = vst [vmem:[%s258 + $0xc8] sm:$0xff] %v3004
        %3037 = vst [vmem:[%s258 + $0xd0] sm:$0xff] %v3005
        %3038 = vst [vmem:[%s258 + $0xd8] sm:$0xff] %v3006
        %3039 = vst [vmem:[%s258 + $0xe0] sm:$0xff] %v3007
        %3040 = vst [vmem:[%s258 + $0xe8] sm:$0xff] %v3008
        %3041 = vst [vmem:[%s258 + $0xf0] sm:$0xff] %v3009
        %3042 = vst [vmem:[%s258 + $0xf8] sm:$0xff] %v3010
        %v3043 = vld [vmem:[%s270] sm:$0xff]
        %v3044 = vld [vmem:[%s270 + $0x8] sm:$0xff]
        %3045 = vmatprep.subr.mxu0 0.0
        %3046 = vmatpush1.msra.mxu0 %v2979
        %3047 = vmatprep.subr.mxu0 0.0
        %3048 = vmatpush1.msra.mxu0 %v2980
        %3049 = vmatprep.subr.mxu0 0.0
        %3050 = vmatpush1.msra.mxu0 %v2981
        %3051 = vmatprep.subr.mxu0 0.0
        %3052 = vmatpush1.msra.mxu0 %v2982
        %3053 = vmatprep.subr.mxu0 0.0
        %3054 = vmatpush1.msra.mxu0 %v2983
        %3055 = vmatprep.subr.mxu0 0.0
        %3056 = vmatpush1.msra.mxu0 %v2984
        %3057 = vmatprep.subr.mxu0 0.0
        %3058 = vmatpush1.msra.mxu0 %v2985
        %3059 = vmatprep.subr.mxu0 0.0
        %3060 = vmatpush1.msra.mxu0 %v2986
        %3061 = vmatprep.subr.mxu0 0.0
        %3062 = vmatpush1.msra.mxu0 %v2987
        %3063 = vmatprep.subr.mxu0 0.0
        %3064 = vmatpush1.msra.mxu0 %v2988
        %3065 = vmatprep.subr.mxu0 0.0
        %3066 = vmatpush1.msra.mxu0 %v2989
        %3067 = vmatprep.subr.mxu0 0.0
        %3068 = vmatpush1.msra.mxu0 %v2990
        %3069 = vmatprep.subr.mxu0 0.0
        %3070 = vmatpush1.msra.mxu0 %v2991
        %3071 = vmatprep.subr.mxu0 0.0
        %3072 = vmatpush1.msra.mxu0 %v2992
        %3073 = vmatprep.subr.mxu0 0.0
        %3074 = vmatpush1.msra.mxu0 %v2993
        %3075 = vmatprep.subr.mxu0 0.0
        %3076 = vmatpush1.msra.mxu0 %v2994
        %3077 = vmatprep.subr.mxu0 0.0
        %3078 = vmatpush1.msra.mxu0 %v2995
        %3079 = vmatprep.subr.mxu0 0.0
        %3080 = vmatpush1.msra.mxu0 %v2996
        %3081 = vmatprep.subr.mxu0 0.0
        %3082 = vmatpush1.msra.mxu0 %v2997
        %3083 = vmatprep.subr.mxu0 0.0
        %3084 = vmatpush1.msra.mxu0 %v2998
        %3085 = vmatprep.subr.mxu0 0.0
        %3086 = vmatpush1.msra.mxu0 %v2999
        %3087 = vmatprep.subr.mxu0 0.0
        %3088 = vmatpush1.msra.mxu0 %v3000
        %3089 = vmatprep.subr.mxu0 0.0
        %3090 = vmatpush1.msra.mxu0 %v3001
        %3091 = vmatprep.subr.mxu0 0.0
        %3092 = vmatpush1.msra.mxu0 %v3002
        %3093 = vmatprep.subr.mxu0 0.0
        %3094 = vmatpush1.msra.mxu0 %v3003
        %3095 = vmatprep.subr.mxu0 0.0
        %3096 = vmatpush1.msra.mxu0 %v3004
        %3097 = vmatprep.subr.mxu0 0.0
        %3098 = vmatpush1.msra.mxu0 %v3005
        %3099 = vmatprep.subr.mxu0 0.0
        %3100 = vmatpush1.msra.mxu0 %v3006
        %3101 = vmatprep.subr.mxu0 0.0
        %3102 = vmatpush1.msra.mxu0 %v3007
        %3103 = vmatprep.subr.mxu0 0.0
        %3104 = vmatpush1.msra.mxu0 %v3008
        %3105 = vmatprep.subr.mxu0 0.0
        %3106 = vmatpush1.msra.mxu0 %v3009
        %3107 = vmatprep.subr.mxu0 0.0
        %3108 = vmatpush1.msra.mxu0 %v3010
        %3109 = vmatprep.mubr.f32.mxu0 %v3044
        %3110 = vmatmul.mubr.f32.gmra.mrb[0].mxu0 %v3043
        %v3111 = vpop.f32.mrb[0].mxu0
        %v3112 = vadd.f32 0.0, %v3111
        %v3113 = vpop.f32.mrb[0].mxu0
        %3114 = vdwg.mxu0
        %3115 = vst [vmem:[%s265] sm:$0xff] %v3112
        %v3116 = vmul.f32 %v2979, %v2979
        %v3117 = vmul.f32 %v2980, %v2980
        %v3118 = vmul.f32 %v2981, %v2981
        %v3119 = vmul.f32 %v2982, %v2982
        %v3120 = vmul.f32 %v2983, %v2983
        %v3121 = vmul.f32 %v2984, %v2984
        %v3122 = vmul.f32 %v2985, %v2985
        %v3123 = vmul.f32 %v2986, %v2986
        %v3124 = vmul.f32 %v2987, %v2987
        %v3125 = vmul.f32 %v2988, %v2988
        %v3126 = vmul.f32 %v2989, %v2989
        %v3127 = vmul.f32 %v2990, %v2990
        %v3128 = vmul.f32 %v2991, %v2991
        %v3129 = vmul.f32 %v2992, %v2992
        %v3130 = vmul.f32 %v2993, %v2993
        %v3131 = vmul.f32 %v2994, %v2994
        %v3132 = vmul.f32 %v2995, %v2995
        %v3133 = vmul.f32 %v2996, %v2996
        %v3134 = vmul.f32 %v2997, %v2997
        %v3135 = vmul.f32 %v2998, %v2998
        %v3136 = vmul.f32 %v2999, %v2999
        %v3137 = vmul.f32 %v3000, %v3000
        %v3138 = vmul.f32 %v3001, %v3001
        %v3139 = vmul.f32 %v3002, %v3002
        %v3140 = vmul.f32 %v3003, %v3003
        %v3141 = vmul.f32 %v3004, %v3004
        %v3142 = vmul.f32 %v3005, %v3005
        %v3143 = vmul.f32 %v3006, %v3006
        %v3144 = vmul.f32 %v3007, %v3007
        %v3145 = vmul.f32 %v3008, %v3008
        %v3146 = vmul.f32 %v3009, %v3009
        %v3147 = vmul.f32 %v3010, %v3010
        %3148 = vmatprep.subr.mxu0 0.0
        %3149 = vmatpush1.msra.mxu0 %v3116
        %3150 = vmatprep.subr.mxu0 0.0
        %3151 = vmatpush1.msra.mxu0 %v3117
        %3152 = vmatprep.subr.mxu0 0.0
        %3153 = vmatpush1.msra.mxu0 %v3118
        %3154 = vmatprep.subr.mxu0 0.0
        %3155 = vmatpush1.msra.mxu0 %v3119
        %3156 = vmatprep.subr.mxu0 0.0
        %3157 = vmatpush1.msra.mxu0 %v3120
        %3158 = vmatprep.subr.mxu0 0.0
        %3159 = vmatpush1.msra.mxu0 %v3121
        %3160 = vmatprep.subr.mxu0 0.0
        %3161 = vmatpush1.msra.mxu0 %v3122
        %3162 = vmatprep.subr.mxu0 0.0
        %3163 = vmatpush1.msra.mxu0 %v3123
        %3164 = vmatprep.subr.mxu0 0.0
        %3165 = vmatpush1.msra.mxu0 %v3124
        %3166 = vmatprep.subr.mxu0 0.0
        %3167 = vmatpush1.msra.mxu0 %v3125
        %3168 = vmatprep.subr.mxu0 0.0
        %3169 = vmatpush1.msra.mxu0 %v3126
        %3170 = vmatprep.subr.mxu0 0.0
        %3171 = vmatpush1.msra.mxu0 %v3127
        %3172 = vmatprep.subr.mxu0 0.0
        %3173 = vmatpush1.msra.mxu0 %v3128
        %3174 = vmatprep.subr.mxu0 0.0
        %3175 = vmatpush1.msra.mxu0 %v3129
        %3176 = vmatprep.subr.mxu0 0.0
        %3177 = vmatpush1.msra.mxu0 %v3130
        %3178 = vmatprep.subr.mxu0 0.0
        %3179 = vmatpush1.msra.mxu0 %v3131
        %3180 = vmatprep.subr.mxu0 0.0
        %3181 = vmatpush1.msra.mxu0 %v3132
        %3182 = vmatprep.subr.mxu0 0.0
        %3183 = vmatpush1.msra.mxu0 %v3133
        %3184 = vmatprep.subr.mxu0 0.0
        %3185 = vmatpush1.msra.mxu0 %v3134
        %3186 = vmatprep.subr.mxu0 0.0
        %3187 = vmatpush1.msra.mxu0 %v3135
        %3188 = vmatprep.subr.mxu0 0.0
        %3189 = vmatpush1.msra.mxu0 %v3136
        %3190 = vmatprep.subr.mxu0 0.0
        %3191 = vmatpush1.msra.mxu0 %v3137
        %3192 = vmatprep.subr.mxu0 0.0
        %3193 = vmatpush1.msra.mxu0 %v3138
        %3194 = vmatprep.subr.mxu0 0.0
        %3195 = vmatpush1.msra.mxu0 %v3139
        %3196 = vmatprep.subr.mxu0 0.0
        %3197 = vmatpush1.msra.mxu0 %v3140
        %3198 = vmatprep.subr.mxu0 0.0
        %3199 = vmatpush1.msra.mxu0 %v3141
        %3200 = vmatprep.subr.mxu0 0.0
        %3201 = vmatpush1.msra.mxu0 %v3142
        %3202 = vmatprep.subr.mxu0 0.0
        %3203 = vmatpush1.msra.mxu0 %v3143
        %3204 = vmatprep.subr.mxu0 0.0
        %3205 = vmatpush1.msra.mxu0 %v3144
        %3206 = vmatprep.subr.mxu0 0.0
        %3207 = vmatpush1.msra.mxu0 %v3145
        %3208 = vmatprep.subr.mxu0 0.0
        %3209 = vmatpush1.msra.mxu0 %v3146
        %3210 = vmatprep.subr.mxu0 0.0
        %3211 = vmatpush1.msra.mxu0 %v3147
        %3212 = vmatprep.mubr.f32.mxu0 %v3044
        %3213 = vmatmul.mubr.f32.gmra.mrb[0].mxu0 %v3043
        %v3214 = vpop.f32.mrb[0].mxu0
        %v3215 = vadd.f32 0.0, %v3214
        %v3216 = vpop.f32.mrb[0].mxu0
        %3217 = vdwg.mxu0
        %3218 = vst [vmem:[%s265 + $0x8] sm:$0xff] %v3215
        %s3219 = sand.u32 %s132, 1
        %s3220 = scalar_lea.sflag [#allocation4], %s3219
        %s3221 = sand.u32 %s132, 1
        %s3222 = smul.addr %s3221, 256
        %s3223 = scalar_lea.vmem [#allocation3], %s3222
        %s3224 = sand.u32 %s158, 1
        %s3225 = scalar_lea.sflag [#allocation6], %s3224
        %s3226 = sand.u32 %s158, 1
        %s3227 = smul.addr %s3226, 16
        %s3228 = scalar_lea.vmem [#allocation5], %s3227
        // Predicated region
        $region37: #{tpu_custom_call.1} parent=35 // pred_check
          %p3229 = pneg %p142
        $region38: #{tpu_custom_call.1} parent=35 // pred_check_branch
          %3231 = sbr.rel (%p3229) target = $region40
        $region39: #{tpu_custom_call.1} parent=35 // pred_region
          %s3232 = smul.u32 32, %s23
          %s3234 = ssub.s32 4096, 4096
          %3235 = vsyncadd %s3220, %s3234
          %s3236 = smul.addr %s3232, 128
          %s3237 = scalar_lea.hbm %s4, %s3236
          %s3238 = sshll.u32 %s3223, 4
          %s3239 = int_to_ptr.vmem [resolvable:$true] %s3238
          %3244 = dma.vmem_to_hbm [thread:$0]  %s3239, 4096, %s3237, %s3220, 128, 128, 8
        $region40: #{tpu_custom_call.1} parent=35 // pred_fallthru
          _
        // Predicated region
        $region41: #{tpu_custom_call.1} parent=35 // pred_check
          %p3245 = pneg %p168
        $region42: #{tpu_custom_call.1} parent=35 // pred_check_branch
          %3247 = sbr.rel (%p3245) target = $region44
        $region43: #{tpu_custom_call.1} parent=35 // pred_region
          %s3249 = ssub.s32 256, 256
          %3250 = vsyncadd %s3225, %s3249
          %s3251 = smul.addr %s23, 2
          %s3252 = smul.addr %s3251, 128
          %s3253 = scalar_lea.hbm %s5, %s3252
          %s3254 = sshll.u32 %s3228, 4
          %s3255 = int_to_ptr.vmem [resolvable:$true] %s3254
          %3260 = dma.vmem_to_hbm [thread:$0]  %s3255, 256, %s3253, %s3225, 128, 128, 8
        $region44: #{tpu_custom_call.1} parent=35 // pred_fallthru
          _
      $region36: #{tpu_custom_call.1} parent=5 // pred_fallthru
        _
      %p3261 = scmp.le.s32.totalorder 2, %s18
      // Predicated region
      $region45: #{tpu_custom_call.1} parent=5 // pred_check
        %p3262 = pneg %p3261
      $region46: #{tpu_custom_call.1} parent=5 // pred_check_branch
        %3264 = sbr.rel (%p3262) target = $region48
      $region47: #{tpu_custom_call.1} parent=5 // pred_region
        %s3265 = ssub.s32 %s18, 2
        // Predicated region
        $region49: #{tpu_custom_call.1} parent=47 // pred_check
          %p3266 = pneg %p148
        $region50: #{tpu_custom_call.1} parent=47 // pred_check_branch
          %3268 = sbr.rel (%p3266) target = $region52
        $region51: #{tpu_custom_call.1} parent=47 // pred_region
          %s3269 = sand.u32 %s133, 1
          %s3270 = scalar_lea.sflag [#allocation4], %s3269
          %s3271 = sand.u32 %s133, 1
          %s3272 = smul.addr %s3271, 256
          %s3273 = scalar_lea.vmem [#allocation3], %s3272
          %3274 = dma.done %s3270, 4096
        $region52: #{tpu_custom_call.1} parent=47 // pred_fallthru
          _
        // Predicated region
        $region53: #{tpu_custom_call.1} parent=47 // pred_check
          %p3275 = pneg %p174
        $region54: #{tpu_custom_call.1} parent=47 // pred_check_branch
          %3277 = sbr.rel (%p3275) target = $region56
        $region55: #{tpu_custom_call.1} parent=47 // pred_region
          %s3278 = sand.u32 %s159, 1
          %s3279 = scalar_lea.sflag [#allocation6], %s3278
          %s3280 = sand.u32 %s159, 1
          %s3281 = smul.addr %s3280, 16
          %s3282 = scalar_lea.vmem [#allocation5], %s3281
          %3283 = dma.done %s3279, 256
        $region56: #{tpu_custom_call.1} parent=47 // pred_fallthru
          _
      $region48: #{tpu_custom_call.1} parent=5 // pred_fallthru
        _
    $region6: #{tpu_custom_call.1} parent=1 // loop_footer
      %s22 = sadd.s32 1, %s18
    $region7: #{tpu_custom_call.1} parent=1 // loop_footer_branch
      %17 = sbr.rel target = $region3
    $region8: #{tpu_custom_call.1} parent=1 // loop_exit
      _
    %3284 = vsyncpa [#allocation4], 1
    %s3285 = scalar_lea.sflag [#allocation4], 1
    %3286 = vsyncpa %s3285, 1
    %3287 = vsyncpa [#allocation6], 1
    %s3288 = scalar_lea.sflag [#allocation6], 1
    %3289 = vsyncpa %s3288, 1

</llo_original>
